<compile_context>
chip_gen: v7x
topology: tpu7x:2x2x1
jax: 0.10.0
libtpu: 0.0.40
codegen_flags: <defaults>
</compile_context>

<pallas_src>
import functools
import numpy as np
import jax
import jax.numpy as jnp
from jax.experimental import pallas as pl
from jax.experimental.pallas import tpu as pltpu  # noqa: F401  (kept for TPU-specific tuning hooks)

# ----------------------------- config (args) ---------------------------------
IN_NO = 1            # segmentation input channels
OUT_NO = 1
CF = 8               # channel_factor
KRNL_SIZE = 3
PADDING = 1
MODEL_IN_NO = 4      # load_mode='pad' duplicates the single input channel 4x
BN_EPS = 1e-5
HW = 16              # input spatial size baked into the fused constants


# ----------------------------- fused Pallas kernel ----------------------------

def _unet_fused_kernel(x_ref, tt_ref, aff_ref,
                       pw1e_ref, pw1o_ref, ph1e_ref, ph1o_ref,
                       pw2e_ref, pw2o_ref, ph2e_ref, ph2o_ref,
                       sh8m_ref, sh8p_ref, sh4m_ref, sh4p_ref,
                       mh1_ref, kw1_ref, mh2_ref, kw2_ref,
                       kout_ref, oshift_ref, o_ref, *, toff):
    """Entire UNet forward on a (N*16, 16) single-channel slab, all in VMEM."""
    f32 = jnp.float32

    def dot(a, b):
        return jnp.dot(a, b, preferred_element_type=f32)

    def conv3x3(x2d, idx, shm, shp):
        """3x3 conv + folded bias/BatchNorm + ReLU on a (N*H, W*Cin) slab."""
        off, rk = toff[idx]
        y0 = dot(x2d, tt_ref[off + 0 * rk: off + 1 * rk, :])   # kh = 0 tap
        y1 = dot(x2d, tt_ref[off + 1 * rk: off + 2 * rk, :])   # kh = 1 tap
        y2 = dot(x2d, tt_ref[off + 2 * rk: off + 3 * rk, :])   # kh = 2 tap
        # Vertical taps / zero padding via sparse row-shift matmuls.
        acc = y1 + dot(shm, y0) + dot(shp, y2)
        y = acc * aff_ref[idx:idx + 1, :] + aff_ref[6 + idx:7 + idx, :]
        return jnp.maximum(y, 0.0)

    def maxpool2(x2d, pwe, pwo, phe, pho):
        """2x2 / stride-2 max pool via even/odd selection matmuls + elementwise max."""
        m = jnp.maximum(dot(x2d, pwe), dot(x2d, pwo))          # pool along W (lanes)
        return jnp.maximum(dot(phe, m), dot(pho, m))           # pool along H (rows)

    sh8m, sh8p = sh8m_ref[...], sh8p_ref[...]
    sh4m, sh4p = sh4m_ref[...], sh4p_ref[...]

    x = x_ref[...]                                             # (N*16, 16), 1 channel
    # Down(in_no -> cf): maxpool + DoubleConv ('pad' duplication folded into T[0]).
    h = maxpool2(x, pw1e_ref[...], pw1o_ref[...], ph1e_ref[...], ph1o_ref[...])
    h = conv3x3(h, 0, sh8m, sh8p)
    h = conv3x3(h, 1, sh8m, sh8p)
    # Down(cf -> 2cf): maxpool + DoubleConv (output doubles as the residue).
    h = maxpool2(h, pw2e_ref[...], pw2o_ref[...], ph2e_ref[...], ph2o_ref[...])
    h = conv3x3(h, 2, sh4m, sh4p)
    h = conv3x3(h, 3, sh4m, sh4p)
    # Up(4cf -> cf): x1 == x2 == h, so upsample once; concat folded into T[4].
    h = dot(dot(mh1_ref[...], h), kw1_ref[...])
    h = conv3x3(h, 4, sh8m, sh8p)
    h = conv3x3(h, 5, sh8m, sh8p)
    # OutConv(cf -> 1): bilinear upsample, 1x1 conv + bias, sigmoid_256.
    h = dot(dot(mh2_ref[...], h), kw2_ref[...])
    y = dot(h, kout_ref[...]) + oshift_ref[...]
    o_ref[...] = 256.0 * jax.nn.sigmoid(y)                     # sigmoid_256 (greyscale)


# ----------------------------- host-side operator construction ----------------

def _toeplitz_taps(w_oihw, width):
    """Per-kh Toeplitz-over-W conv weights with the W zero padding folded away.

    Returns (3, width*Cin, width*Cout) with
      T[kh][(w+kw-P)*Cin + ci, w*Cout + co] = weight[co, ci, kh, kw].
    """
    cout, cin, k, _ = w_oihw.shape
    w_hwio = np.transpose(w_oihw.astype(np.float32), (2, 3, 1, 0))   # (K,K,Cin,Cout)
    t = np.zeros((k, width * cin, width * cout), np.float32)
    for kh in range(k):
        for kw in range(k):
            for wo in range(width):
                wi = wo + kw - PADDING
                if 0 <= wi < width:
                    t[kh, wi * cin:(wi + 1) * cin, wo * cout:(wo + 1) * cout] = w_hwio[kh, kw]
    return t


def _pool_w_mats(width, c):
    we = np.zeros((width * c, (width // 2) * c), np.float32)
    wo = np.zeros_like(we)
    for w in range(width // 2):
        for ch in range(c):
            we[(2 * w) * c + ch, w * c + ch] = 1.0
            wo[(2 * w + 1) * c + ch, w * c + ch] = 1.0
    return we, wo


def _pool_h_mats(height, n):
    he = np.zeros((height // 2, height), np.float32)
    ho = np.zeros_like(he)
    for h in range(height // 2):
        he[h, 2 * h] = 1.0
        ho[h, 2 * h + 1] = 1.0
    eye_n = np.eye(n, dtype=np.float32)
    return np.kron(eye_n, he), np.kron(eye_n, ho)


def _shift_mats(height, n):
    """Row-shift operators (batched via kron) used for the vertical conv taps."""
    eye_n = np.eye(n, dtype=np.float32)
    return (np.kron(eye_n, np.eye(height, k=-1, dtype=np.float32)),  # kh=0: uses row h-1
            np.kron(eye_n, np.eye(height, k=1, dtype=np.float32)))   # kh=2: uses row h+1


def _bilinear_matrix(n_in, n_out):
    """align_corners=True interpolation matrix (matches nn.Upsample bilinear x2)."""
    m = np.zeros((n_out, n_in), np.float32)
    scale = (n_in - 1) / (n_out - 1) if n_out > 1 else 0.0
    for i in range(n_out):
        src = i * scale
        lo = int(np.floor(src))
        hi = min(lo + 1, n_in - 1)
        frac = src - lo
        m[i, lo] += 1.0 - frac
        m[i, hi] += frac
    return m


# ----------------------------- parameters -------------------------------------

def _init_conv(key, cout, cin, k):
    kw_, kb_ = jax.random.split(key)
    fan_in = cin * k * k
    w = jax.random.normal(kw_, (cout, cin, k, k), jnp.float32) / np.sqrt(fan_in)
    b = 0.01 * jax.random.normal(kb_, (cout,), jnp.float32)
    return np.asarray(w), np.asarray(b)


def _init_bn(key, c):
    k1, k2, k3, k4 = jax.random.split(key, 4)
    gamma = 1.0 + 0.1 * jax.random.normal(k1, (c,), jnp.float32)
    beta = 0.1 * jax.random.normal(k2, (c,), jnp.float32)
    mean = 0.1 * jax.random.normal(k3, (c,), jnp.float32)
    var = 1.0 + 0.1 * jax.random.uniform(k4, (c,), jnp.float32)
    return tuple(np.asarray(t) for t in (gamma, beta, mean, var))


def _fold_bn(bias, gamma, beta, mean, var):
    # eval-mode BatchNorm folded with the conv bias into a per-channel affine.
    scale = gamma / np.sqrt(var + BN_EPS)
    shift = beta + scale * (bias - mean)
    return scale.astype(np.float32), shift.astype(np.float32)


def _init_double_conv(key, cin, cout):
    k1, k2, k3, k4 = jax.random.split(key, 4)
    w1, b1 = _init_conv(k1, cout, cin, KRNL_SIZE)
    s1, sh1 = _fold_bn(b1, *_init_bn(k2, cout))
    w2, b2 = _init_conv(k3, cout, cout, KRNL_SIZE)
    s2, sh2 = _fold_bn(b2, *_init_bn(k4, cout))
    return dict(w1=w1, scale1=s1, shift1=sh1, w2=w2, scale2=s2, shift2=sh2)


def init_params(seed=0):
    key = jax.random.PRNGKey(seed)
    k1, k2, k3, k4 = jax.random.split(key, 4)
    params = {
        "down0": _init_double_conv(k1, MODEL_IN_NO, CF),   # Down(in_no -> cf)
        "down1": _init_double_conv(k2, CF, 2 * CF),        # Down(cf -> 2cf)
        "up0":   _init_double_conv(k3, 4 * CF, CF),        # Up(4cf -> cf)
    }
    wo, bo = _init_conv(k4, OUT_NO, CF, 1)                 # OutConv 1x1 (no BN)
    params["out"] = dict(w=wo, b=bo)
    return params


# ----------------------------- forward builder ---------------------------------

def build_forward(params, batch):
    n = batch
    # Exact algebraic foldings (no semantic change):
    w1 = params["down0"]["w1"].sum(axis=1, keepdims=True)                       # 'pad' dup
    w5 = params["up0"]["w1"][:, :2 * CF] + params["up0"]["w1"][:, 2 * CF:]      # Up concat

    conv_specs = [
        (w1,                    params["down0"]["scale1"], params["down0"]["shift1"], 8),
        (params["down0"]["w2"], params["down0"]["scale2"], params["down0"]["shift2"], 8),
        (params["down1"]["w1"], params["down1"]["scale1"], params["down1"]["shift1"], 4),
        (params["down1"]["w2"], params["down1"]["scale2"], params["down1"]["shift2"], 4),
        (w5,                    params["up0"]["scale1"],   params["up0"]["shift1"],   8),
        (params["up0"]["w2"],   params["up0"]["scale2"],   params["up0"]["shift2"],   8),
    ]

    tt_blocks, scale_rows, shift_rows, toff, off = [], [], [], [], 0
    for w, sc, sf, width in conv_specs:
        taps = _toeplitz_taps(np.asarray(w, np.float32), width)   # (3, rk, 64)
        rk = taps.shape[1]
        tt_blocks.append(taps.reshape(3 * rk, -1))
        toff.append((off, rk))
        off += 3 * rk
        scale_rows.append(np.tile(np.asarray(sc, np.float32), width))
        shift_rows.append(np.tile(np.asarray(sf, np.float32), width))
    tt = np.concatenate(tt_blocks, axis=0)                        # (1080, 64), one operand
    aff = np.stack(scale_rows + shift_rows, axis=0)               # (12, 64)

    # Pooling / row-shift / upsample operators (batch folded in via kron(I_n, .)).
    pw1e, pw1o = _pool_w_mats(HW, 1)                              # 16x16 (C=1) -> 8x8
    ph1e, ph1o = _pool_h_mats(HW, n)
    pw2e, pw2o = _pool_w_mats(HW // 2, CF)                        # 8x8x8 -> 4x4x8
    ph2e, ph2o = _pool_h_mats(HW // 2, n)
    sh8m, sh8p = _shift_mats(HW // 2, n)                          # convs running at H=8
    sh4m, sh4p = _shift_mats(HW // 4, n)                          # convs running at H=4
    mh1 = np.kron(np.eye(n, dtype=np.float32), _bilinear_matrix(HW // 4, HW // 2))
    kw1 = np.kron(_bilinear_matrix(HW // 4, HW // 2).T, np.eye(2 * CF, dtype=np.float32))
    mh2 = np.kron(np.eye(n, dtype=np.float32), _bilinear_matrix(HW // 2, HW))
    kw2 = np.kron(_bilinear_matrix(HW // 2, HW).T, np.eye(CF, dtype=np.float32))
    kout = np.kron(np.eye(HW, dtype=np.float32),
                   np.asarray(params["out"]["w"], np.float32)[0, :, 0, 0].reshape(CF, 1))
    oshift = np.full((1, HW), np.float32(params["out"]["b"][0]), np.float32)

    consts = [jnp.asarray(c) for c in
              (tt, aff, pw1e, pw1o, ph1e, ph1o, pw2e, pw2o, ph2e, ph2o,
               sh8m, sh8p, sh4m, sh4p, mh1, kw1, mh2, kw2, kout, oshift)]

    # Single fused pallas_call: no grid, whole-array VMEM blocks, one input / one
    # output DMA; every intermediate stays on-chip.
    fused = pl.pallas_call(
        functools.partial(_unet_fused_kernel, toff=tuple(toff)),
        out_shape=jax.ShapeDtypeStruct((n * HW, HW), jnp.float32),
    )

    @jax.jit
    def forward(x_nchw):
        assert x_nchw.shape == (n, IN_NO, HW, HW), x_nchw.shape
        # (N, 1, 16, 16) NCHW -> (N*16, 16) slab (pure bitcast reshape, no data movement).
        x2d = x_nchw.astype(jnp.float32).reshape(n * HW, HW)
        y2d = fused(x2d, *consts)
        return y2d.reshape(n, OUT_NO, HW, HW)

    return forward


# ----------------------------- smoke test --------------------------------------

if __name__ == "__main__":
    params = init_params(0)
    forward = build_forward(params, batch=2)
    x = jax.random.normal(jax.random.PRNGKey(0), (2, IN_NO, HW, HW), jnp.float32)
    y = jax.block_until_ready(forward(x))
    assert y.shape == (2, OUT_NO, HW, HW), y.shape
    assert bool(jnp.all(jnp.isfinite(y)))
    assert bool(jnp.all(y >= 0.0)) and bool(jnp.all(y <= 256.0))   # sigmoid_256 range
    print("KERNEL_OK")
</pallas_src>

<mosaic_0001>
module attributes {stable_mosaic.version = 11 : i64} {
  func.func @_unet_fused_kernel(%arg0: memref<32x16xf32, #tpu.memory_space<vmem>>, %arg1: memref<1080x64xf32, #tpu.memory_space<vmem>>, %arg2: memref<12x64xf32, #tpu.memory_space<vmem>>, %arg3: memref<16x8xf32, #tpu.memory_space<vmem>>, %arg4: memref<16x8xf32, #tpu.memory_space<vmem>>, %arg5: memref<16x32xf32, #tpu.memory_space<vmem>>, %arg6: memref<16x32xf32, #tpu.memory_space<vmem>>, %arg7: memref<64x32xf32, #tpu.memory_space<vmem>>, %arg8: memref<64x32xf32, #tpu.memory_space<vmem>>, %arg9: memref<8x16xf32, #tpu.memory_space<vmem>>, %arg10: memref<8x16xf32, #tpu.memory_space<vmem>>, %arg11: memref<16x16xf32, #tpu.memory_space<vmem>>, %arg12: memref<16x16xf32, #tpu.memory_space<vmem>>, %arg13: memref<8x8xf32, #tpu.memory_space<vmem>>, %arg14: memref<8x8xf32, #tpu.memory_space<vmem>>, %arg15: memref<16x8xf32, #tpu.memory_space<vmem>>, %arg16: memref<64x128xf32, #tpu.memory_space<vmem>>, %arg17: memref<32x16xf32, #tpu.memory_space<vmem>>, %arg18: memref<64x128xf32, #tpu.memory_space<vmem>>, %arg19: memref<128x16xf32, #tpu.memory_space<vmem>>, %arg20: memref<1x16xf32, #tpu.memory_space<vmem>>, %arg21: memref<32x16xf32, #tpu.memory_space<vmem>>) attributes {dimension_semantics = [], scalar_prefetch = 0 : i64, scratch_operands = 0 : i64, tpu.core_type = #tpu.core_type<tc>} {
    %c0 = arith.constant 0 : index
    %c0_0 = arith.constant 0 : index
    %0 = vector.load %arg11[%c0, %c0_0] : memref<16x16xf32, #tpu.memory_space<vmem>>, vector<16x16xf32>
    %c0_1 = arith.constant 0 : index
    %c0_2 = arith.constant 0 : index
    %1 = vector.load %arg12[%c0_1, %c0_2] : memref<16x16xf32, #tpu.memory_space<vmem>>, vector<16x16xf32>
    %c0_3 = arith.constant 0 : index
    %c0_4 = arith.constant 0 : index
    %2 = vector.load %arg13[%c0_3, %c0_4] : memref<8x8xf32, #tpu.memory_space<vmem>>, vector<8x8xf32>
    %c0_5 = arith.constant 0 : index
    %c0_6 = arith.constant 0 : index
    %3 = vector.load %arg14[%c0_5, %c0_6] : memref<8x8xf32, #tpu.memory_space<vmem>>, vector<8x8xf32>
    %c0_7 = arith.constant 0 : index
    %c0_8 = arith.constant 0 : index
    %4 = vector.load %arg0[%c0_7, %c0_8] : memref<32x16xf32, #tpu.memory_space<vmem>>, vector<32x16xf32>
    %c0_9 = arith.constant 0 : index
    %c0_10 = arith.constant 0 : index
    %5 = vector.load %arg3[%c0_9, %c0_10] : memref<16x8xf32, #tpu.memory_space<vmem>>, vector<16x8xf32>
    %c0_11 = arith.constant 0 : index
    %c0_12 = arith.constant 0 : index
    %6 = vector.load %arg4[%c0_11, %c0_12] : memref<16x8xf32, #tpu.memory_space<vmem>>, vector<16x8xf32>
    %c0_13 = arith.constant 0 : index
    %c0_14 = arith.constant 0 : index
    %7 = vector.load %arg5[%c0_13, %c0_14] : memref<16x32xf32, #tpu.memory_space<vmem>>, vector<16x32xf32>
    %c0_15 = arith.constant 0 : index
    %c0_16 = arith.constant 0 : index
    %8 = vector.load %arg6[%c0_15, %c0_16] : memref<16x32xf32, #tpu.memory_space<vmem>>, vector<16x32xf32>
    %cst = arith.constant dense<0.000000e+00> : vector<32x8xf32>
    %9 = tpu.matmul %4, %5, %cst {dimension_numbers = #tpu.dot_dimension_numbers<[1], [0], [0], [1], [0, 0, 1, 1], [], []>} : vector<32x16xf32>, vector<16x8xf32>, vector<32x8xf32> -> vector<32x8xf32>
    %cst_17 = arith.constant dense<0.000000e+00> : vector<32x8xf32>
    %10 = tpu.matmul %4, %6, %cst_17 {dimension_numbers = #tpu.dot_dimension_numbers<[1], [0], [0], [1], [0, 0, 1, 1], [], []>} : vector<32x16xf32>, vector<16x8xf32>, vector<32x8xf32> -> vector<32x8xf32>
    %11 = arith.maximumf %9, %10 : vector<32x8xf32>
    %cst_18 = arith.constant dense<0.000000e+00> : vector<16x8xf32>
    %12 = tpu.matmul %7, %11, %cst_18 {dimension_numbers = #tpu.dot_dimension_numbers<[1], [0], [0], [1], [0, 0, 1, 1], [], []>} : vector<16x32xf32>, vector<32x8xf32>, vector<16x8xf32> -> vector<16x8xf32>
    %cst_19 = arith.constant dense<0.000000e+00> : vector<16x8xf32>
    %13 = tpu.matmul %8, %11, %cst_19 {dimension_numbers = #tpu.dot_dimension_numbers<[1], [0], [0], [1], [0, 0, 1, 1], [], []>} : vector<16x32xf32>, vector<32x8xf32>, vector<16x8xf32> -> vector<16x8xf32>
    %14 = arith.maximumf %12, %13 : vector<16x8xf32>
    %c0_20 = arith.constant 0 : index
    %c0_21 = arith.constant 0 : index
    %15 = vector.load %arg1[%c0_20, %c0_21] : memref<1080x64xf32, #tpu.memory_space<vmem>>, vector<8x64xf32>
    %cst_22 = arith.constant dense<0.000000e+00> : vector<16x64xf32>
    %16 = tpu.matmul %14, %15, %cst_22 {dimension_numbers = #tpu.dot_dimension_numbers<[1], [0], [0], [1], [0, 0, 1, 1], [], []>} : vector<16x8xf32>, vector<8x64xf32>, vector<16x64xf32> -> vector<16x64xf32>
    %c8 = arith.constant 8 : index
    %c0_23 = arith.constant 0 : index
    %17 = vector.load %arg1[%c8, %c0_23] : memref<1080x64xf32, #tpu.memory_space<vmem>>, vector<8x64xf32>
    %cst_24 = arith.constant dense<0.000000e+00> : vector<16x64xf32>
    %18 = tpu.matmul %14, %17, %cst_24 {dimension_numbers = #tpu.dot_dimension_numbers<[1], [0], [0], [1], [0, 0, 1, 1], [], []>} : vector<16x8xf32>, vector<8x64xf32>, vector<16x64xf32> -> vector<16x64xf32>
    %c16 = arith.constant 16 : index
    %c0_25 = arith.constant 0 : index
    %19 = vector.load %arg1[%c16, %c0_25] : memref<1080x64xf32, #tpu.memory_space<vmem>>, vector<8x64xf32>
    %cst_26 = arith.constant dense<0.000000e+00> : vector<16x64xf32>
    %20 = tpu.matmul %14, %19, %cst_26 {dimension_numbers = #tpu.dot_dimension_numbers<[1], [0], [0], [1], [0, 0, 1, 1], [], []>} : vector<16x8xf32>, vector<8x64xf32>, vector<16x64xf32> -> vector<16x64xf32>
    %cst_27 = arith.constant dense<0.000000e+00> : vector<16x64xf32>
    %21 = tpu.matmul %0, %16, %cst_27 {dimension_numbers = #tpu.dot_dimension_numbers<[1], [0], [0], [1], [0, 0, 1, 1], [], []>} : vector<16x16xf32>, vector<16x64xf32>, vector<16x64xf32> -> vector<16x64xf32>
    %22 = arith.addf %18, %21 : vector<16x64xf32>
    %cst_28 = arith.constant dense<0.000000e+00> : vector<16x64xf32>
    %23 = tpu.matmul %1, %20, %cst_28 {dimension_numbers = #tpu.dot_dimension_numbers<[1], [0], [0], [1], [0, 0, 1, 1], [], []>} : vector<16x16xf32>, vector<16x64xf32>, vector<16x64xf32> -> vector<16x64xf32>
    %24 = arith.addf %22, %23 : vector<16x64xf32>
    %c0_29 = arith.constant 0 : index
    %c0_30 = arith.constant 0 : index
    %25 = vector.load %arg2[%c0_29, %c0_30] : memref<12x64xf32, #tpu.memory_space<vmem>>, vector<1x64xf32>
    %26 = vector.broadcast %25 : vector<1x64xf32> to vector<16x64xf32>
    %27 = arith.mulf %24, %26 : vector<16x64xf32>
    %c6 = arith.constant 6 : index
    %c0_31 = arith.constant 0 : index
    %28 = vector.load %arg2[%c6, %c0_31] : memref<12x64xf32, #tpu.memory_space<vmem>>, vector<1x64xf32>
    %29 = vector.broadcast %28 : vector<1x64xf32> to vector<16x64xf32>
    %30 = arith.addf %27, %29 : vector<16x64xf32>
    %cst_32 = arith.constant 0.000000e+00 : f32
    %31 = vector.broadcast %cst_32 : f32 to vector<16x64xf32>
    %32 = arith.maximumf %30, %31 : vector<16x64xf32>
    %c24 = arith.constant 24 : index
    %c0_33 = arith.constant 0 : index
    %33 = vector.load %arg1[%c24, %c0_33] : memref<1080x64xf32, #tpu.memory_space<vmem>>, vector<64x64xf32>
    %cst_34 = arith.constant dense<0.000000e+00> : vector<16x64xf32>
    %34 = tpu.matmul %32, %33, %cst_34 {dimension_numbers = #tpu.dot_dimension_numbers<[1], [0], [0], [1], [0, 0, 1, 1], [], []>} : vector<16x64xf32>, vector<64x64xf32>, vector<16x64xf32> -> vector<16x64xf32>
    %c88 = arith.constant 88 : index
    %c0_35 = arith.constant 0 : index
    %35 = vector.load %arg1[%c88, %c0_35] : memref<1080x64xf32, #tpu.memory_space<vmem>>, vector<64x64xf32>
    %cst_36 = arith.constant dense<0.000000e+00> : vector<16x64xf32>
    %36 = tpu.matmul %32, %35, %cst_36 {dimension_numbers = #tpu.dot_dimension_numbers<[1], [0], [0], [1], [0, 0, 1, 1], [], []>} : vector<16x64xf32>, vector<64x64xf32>, vector<16x64xf32> -> vector<16x64xf32>
    %c152 = arith.constant 152 : index
    %c0_37 = arith.constant 0 : index
    %37 = vector.load %arg1[%c152, %c0_37] : memref<1080x64xf32, #tpu.memory_space<vmem>>, vector<64x64xf32>
    %cst_38 = arith.constant dense<0.000000e+00> : vector<16x64xf32>
    %38 = tpu.matmul %32, %37, %cst_38 {dimension_numbers = #tpu.dot_dimension_numbers<[1], [0], [0], [1], [0, 0, 1, 1], [], []>} : vector<16x64xf32>, vector<64x64xf32>, vector<16x64xf32> -> vector<16x64xf32>
    %cst_39 = arith.constant dense<0.000000e+00> : vector<16x64xf32>
    %39 = tpu.matmul %0, %34, %cst_39 {dimension_numbers = #tpu.dot_dimension_numbers<[1], [0], [0], [1], [0, 0, 1, 1], [], []>} : vector<16x16xf32>, vector<16x64xf32>, vector<16x64xf32> -> vector<16x64xf32>
    %40 = arith.addf %36, %39 : vector<16x64xf32>
    %cst_40 = arith.constant dense<0.000000e+00> : vector<16x64xf32>
    %41 = tpu.matmul %1, %38, %cst_40 {dimension_numbers = #tpu.dot_dimension_numbers<[1], [0], [0], [1], [0, 0, 1, 1], [], []>} : vector<16x16xf32>, vector<16x64xf32>, vector<16x64xf32> -> vector<16x64xf32>
    %42 = arith.addf %40, %41 : vector<16x64xf32>
    %c1 = arith.constant 1 : index
    %c0_41 = arith.constant 0 : index
    %43 = vector.load %arg2[%c1, %c0_41] : memref<12x64xf32, #tpu.memory_space<vmem>>, vector<1x64xf32>
    %44 = vector.broadcast %43 : vector<1x64xf32> to vector<16x64xf32>
    %45 = arith.mulf %42, %44 : vector<16x64xf32>
    %c7 = arith.constant 7 : index
    %c0_42 = arith.constant 0 : index
    %46 = vector.load %arg2[%c7, %c0_42] : memref<12x64xf32, #tpu.memory_space<vmem>>, vector<1x64xf32>
    %47 = vector.broadcast %46 : vector<1x64xf32> to vector<16x64xf32>
    %48 = arith.addf %45, %47 : vector<16x64xf32>
    %cst_43 = arith.constant 0.000000e+00 : f32
    %49 = vector.broadcast %cst_43 : f32 to vector<16x64xf32>
    %50 = arith.maximumf %48, %49 : vector<16x64xf32>
    %c0_44 = arith.constant 0 : index
    %c0_45 = arith.constant 0 : index
    %51 = vector.load %arg7[%c0_44, %c0_45] : memref<64x32xf32, #tpu.memory_space<vmem>>, vector<64x32xf32>
    %c0_46 = arith.constant 0 : index
    %c0_47 = arith.constant 0 : index
    %52 = vector.load %arg8[%c0_46, %c0_47] : memref<64x32xf32, #tpu.memory_space<vmem>>, vector<64x32xf32>
    %c0_48 = arith.constant 0 : index
    %c0_49 = arith.constant 0 : index
    %53 = vector.load %arg9[%c0_48, %c0_49] : memref<8x16xf32, #tpu.memory_space<vmem>>, vector<8x16xf32>
    %c0_50 = arith.constant 0 : index
    %c0_51 = arith.constant 0 : index
    %54 = vector.load %arg10[%c0_50, %c0_51] : memref<8x16xf32, #tpu.memory_space<vmem>>, vector<8x16xf32>
    %cst_52 = arith.constant dense<0.000000e+00> : vector<16x32xf32>
    %55 = tpu.matmul %50, %51, %cst_52 {dimension_numbers = #tpu.dot_dimension_numbers<[1], [0], [0], [1], [0, 0, 1, 1], [], []>} : vector<16x64xf32>, vector<64x32xf32>, vector<16x32xf32> -> vector<16x32xf32>
    %cst_53 = arith.constant dense<0.000000e+00> : vector<16x32xf32>
    %56 = tpu.matmul %50, %52, %cst_53 {dimension_numbers = #tpu.dot_dimension_numbers<[1], [0], [0], [1], [0, 0, 1, 1], [], []>} : vector<16x64xf32>, vector<64x32xf32>, vector<16x32xf32> -> vector<16x32xf32>
    %57 = arith.maximumf %55, %56 : vector<16x32xf32>
    %cst_54 = arith.constant dense<0.000000e+00> : vector<8x32xf32>
    %58 = tpu.matmul %53, %57, %cst_54 {dimension_numbers = #tpu.dot_dimension_numbers<[1], [0], [0], [1], [0, 0, 1, 1], [], []>} : vector<8x16xf32>, vector<16x32xf32>, vector<8x32xf32> -> vector<8x32xf32>
    %cst_55 = arith.constant dense<0.000000e+00> : vector<8x32xf32>
    %59 = tpu.matmul %54, %57, %cst_55 {dimension_numbers = #tpu.dot_dimension_numbers<[1], [0], [0], [1], [0, 0, 1, 1], [], []>} : vector<8x16xf32>, vector<16x32xf32>, vector<8x32xf32> -> vector<8x32xf32>
    %60 = arith.maximumf %58, %59 : vector<8x32xf32>
    %c216 = arith.constant 216 : index
    %c0_56 = arith.constant 0 : index
    %61 = vector.load %arg1[%c216, %c0_56] : memref<1080x64xf32, #tpu.memory_space<vmem>>, vector<32x64xf32>
    %cst_57 = arith.constant dense<0.000000e+00> : vector<8x64xf32>
    %62 = tpu.matmul %60, %61, %cst_57 {dimension_numbers = #tpu.dot_dimension_numbers<[1], [0], [0], [1], [0, 0, 1, 1], [], []>} : vector<8x32xf32>, vector<32x64xf32>, vector<8x64xf32> -> vector<8x64xf32>
    %c248 = arith.constant 248 : index
    %c0_58 = arith.constant 0 : index
    %63 = vector.load %arg1[%c248, %c0_58] : memref<1080x64xf32, #tpu.memory_space<vmem>>, vector<32x64xf32>
    %cst_59 = arith.constant dense<0.000000e+00> : vector<8x64xf32>
    %64 = tpu.matmul %60, %63, %cst_59 {dimension_numbers = #tpu.dot_dimension_numbers<[1], [0], [0], [1], [0, 0, 1, 1], [], []>} : vector<8x32xf32>, vector<32x64xf32>, vector<8x64xf32> -> vector<8x64xf32>
    %c280 = arith.constant 280 : index
    %c0_60 = arith.constant 0 : index
    %65 = vector.load %arg1[%c280, %c0_60] : memref<1080x64xf32, #tpu.memory_space<vmem>>, vector<32x64xf32>
    %cst_61 = arith.constant dense<0.000000e+00> : vector<8x64xf32>
    %66 = tpu.matmul %60, %65, %cst_61 {dimension_numbers = #tpu.dot_dimension_numbers<[1], [0], [0], [1], [0, 0, 1, 1], [], []>} : vector<8x32xf32>, vector<32x64xf32>, vector<8x64xf32> -> vector<8x64xf32>
    %cst_62 = arith.constant dense<0.000000e+00> : vector<8x64xf32>
    %67 = tpu.matmul %2, %62, %cst_62 {dimension_numbers = #tpu.dot_dimension_numbers<[1], [0], [0], [1], [0, 0, 1, 1], [], []>} : vector<8x8xf32>, vector<8x64xf32>, vector<8x64xf32> -> vector<8x64xf32>
    %68 = arith.addf %64, %67 : vector<8x64xf32>
    %cst_63 = arith.constant dense<0.000000e+00> : vector<8x64xf32>
    %69 = tpu.matmul %3, %66, %cst_63 {dimension_numbers = #tpu.dot_dimension_numbers<[1], [0], [0], [1], [0, 0, 1, 1], [], []>} : vector<8x8xf32>, vector<8x64xf32>, vector<8x64xf32> -> vector<8x64xf32>
    %70 = arith.addf %68, %69 : vector<8x64xf32>
    %c2 = arith.constant 2 : index
    %c0_64 = arith.constant 0 : index
    %71 = vector.load %arg2[%c2, %c0_64] : memref<12x64xf32, #tpu.memory_space<vmem>>, vector<1x64xf32>
    %72 = vector.broadcast %71 : vector<1x64xf32> to vector<8x64xf32>
    %73 = arith.mulf %70, %72 : vector<8x64xf32>
    %c8_65 = arith.constant 8 : index
    %c0_66 = arith.constant 0 : index
    %74 = vector.load %arg2[%c8_65, %c0_66] : memref<12x64xf32, #tpu.memory_space<vmem>>, vector<1x64xf32>
    %75 = vector.broadcast %74 : vector<1x64xf32> to vector<8x64xf32>
    %76 = arith.addf %73, %75 : vector<8x64xf32>
    %cst_67 = arith.constant 0.000000e+00 : f32
    %77 = vector.broadcast %cst_67 : f32 to vector<8x64xf32>
    %78 = arith.maximumf %76, %77 : vector<8x64xf32>
    %c312 = arith.constant 312 : index
    %c0_68 = arith.constant 0 : index
    %79 = vector.load %arg1[%c312, %c0_68] : memref<1080x64xf32, #tpu.memory_space<vmem>>, vector<64x64xf32>
    %cst_69 = arith.constant dense<0.000000e+00> : vector<8x64xf32>
    %80 = tpu.matmul %78, %79, %cst_69 {dimension_numbers = #tpu.dot_dimension_numbers<[1], [0], [0], [1], [0, 0, 1, 1], [], []>} : vector<8x64xf32>, vector<64x64xf32>, vector<8x64xf32> -> vector<8x64xf32>
    %c376 = arith.constant 376 : index
    %c0_70 = arith.constant 0 : index
    %81 = vector.load %arg1[%c376, %c0_70] : memref<1080x64xf32, #tpu.memory_space<vmem>>, vector<64x64xf32>
    %cst_71 = arith.constant dense<0.000000e+00> : vector<8x64xf32>
    %82 = tpu.matmul %78, %81, %cst_71 {dimension_numbers = #tpu.dot_dimension_numbers<[1], [0], [0], [1], [0, 0, 1, 1], [], []>} : vector<8x64xf32>, vector<64x64xf32>, vector<8x64xf32> -> vector<8x64xf32>
    %c440 = arith.constant 440 : index
    %c0_72 = arith.constant 0 : index
    %83 = vector.load %arg1[%c440, %c0_72] : memref<1080x64xf32, #tpu.memory_space<vmem>>, vector<64x64xf32>
    %cst_73 = arith.constant dense<0.000000e+00> : vector<8x64xf32>
    %84 = tpu.matmul %78, %83, %cst_73 {dimension_numbers = #tpu.dot_dimension_numbers<[1], [0], [0], [1], [0, 0, 1, 1], [], []>} : vector<8x64xf32>, vector<64x64xf32>, vector<8x64xf32> -> vector<8x64xf32>
    %cst_74 = arith.constant dense<0.000000e+00> : vector<8x64xf32>
    %85 = tpu.matmul %2, %80, %cst_74 {dimension_numbers = #tpu.dot_dimension_numbers<[1], [0], [0], [1], [0, 0, 1, 1], [], []>} : vector<8x8xf32>, vector<8x64xf32>, vector<8x64xf32> -> vector<8x64xf32>
    %86 = arith.addf %82, %85 : vector<8x64xf32>
    %cst_75 = arith.constant dense<0.000000e+00> : vector<8x64xf32>
    %87 = tpu.matmul %3, %84, %cst_75 {dimension_numbers = #tpu.dot_dimension_numbers<[1], [0], [0], [1], [0, 0, 1, 1], [], []>} : vector<8x8xf32>, vector<8x64xf32>, vector<8x64xf32> -> vector<8x64xf32>
    %88 = arith.addf %86, %87 : vector<8x64xf32>
    %c3 = arith.constant 3 : index
    %c0_76 = arith.constant 0 : index
    %89 = vector.load %arg2[%c3, %c0_76] : memref<12x64xf32, #tpu.memory_space<vmem>>, vector<1x64xf32>
    %90 = vector.broadcast %89 : vector<1x64xf32> to vector<8x64xf32>
    %91 = arith.mulf %88, %90 : vector<8x64xf32>
    %c9 = arith.constant 9 : index
    %c0_77 = arith.constant 0 : index
    %92 = vector.load %arg2[%c9, %c0_77] : memref<12x64xf32, #tpu.memory_space<vmem>>, vector<1x64xf32>
    %93 = vector.broadcast %92 : vector<1x64xf32> to vector<8x64xf32>
    %94 = arith.addf %91, %93 : vector<8x64xf32>
    %cst_78 = arith.constant 0.000000e+00 : f32
    %95 = vector.broadcast %cst_78 : f32 to vector<8x64xf32>
    %96 = arith.maximumf %94, %95 : vector<8x64xf32>
    %c0_79 = arith.constant 0 : index
    %c0_80 = arith.constant 0 : index
    %97 = vector.load %arg15[%c0_79, %c0_80] : memref<16x8xf32, #tpu.memory_space<vmem>>, vector<16x8xf32>
    %cst_81 = arith.constant dense<0.000000e+00> : vector<16x64xf32>
    %98 = tpu.matmul %97, %96, %cst_81 {dimension_numbers = #tpu.dot_dimension_numbers<[1], [0], [0], [1], [0, 0, 1, 1], [], []>} : vector<16x8xf32>, vector<8x64xf32>, vector<16x64xf32> -> vector<16x64xf32>
    %c0_82 = arith.constant 0 : index
    %c0_83 = arith.constant 0 : index
    %99 = vector.load %arg16[%c0_82, %c0_83] : memref<64x128xf32, #tpu.memory_space<vmem>>, vector<64x128xf32>
    %cst_84 = arith.constant dense<0.000000e+00> : vector<16x128xf32>
    %100 = tpu.matmul %98, %99, %cst_84 {dimension_numbers = #tpu.dot_dimension_numbers<[1], [0], [0], [1], [0, 0, 1, 1], [], []>} : vector<16x64xf32>, vector<64x128xf32>, vector<16x128xf32> -> vector<16x128xf32>
    %c504 = arith.constant 504 : index
    %c0_85 = arith.constant 0 : index
    %101 = vector.load %arg1[%c504, %c0_85] : memref<1080x64xf32, #tpu.memory_space<vmem>>, vector<128x64xf32>
    %cst_86 = arith.constant dense<0.000000e+00> : vector<16x64xf32>
    %102 = tpu.matmul %100, %101, %cst_86 {dimension_numbers = #tpu.dot_dimension_numbers<[1], [0], [0], [1], [0, 0, 1, 1], [], []>} : vector<16x128xf32>, vector<128x64xf32>, vector<16x64xf32> -> vector<16x64xf32>
    %c632 = arith.constant 632 : index
    %c0_87 = arith.constant 0 : index
    %103 = vector.load %arg1[%c632, %c0_87] : memref<1080x64xf32, #tpu.memory_space<vmem>>, vector<128x64xf32>
    %cst_88 = arith.constant dense<0.000000e+00> : vector<16x64xf32>
    %104 = tpu.matmul %100, %103, %cst_88 {dimension_numbers = #tpu.dot_dimension_numbers<[1], [0], [0], [1], [0, 0, 1, 1], [], []>} : vector<16x128xf32>, vector<128x64xf32>, vector<16x64xf32> -> vector<16x64xf32>
    %c760 = arith.constant 760 : index
    %c0_89 = arith.constant 0 : index
    %105 = vector.load %arg1[%c760, %c0_89] : memref<1080x64xf32, #tpu.memory_space<vmem>>, vector<128x64xf32>
    %cst_90 = arith.constant dense<0.000000e+00> : vector<16x64xf32>
    %106 = tpu.matmul %100, %105, %cst_90 {dimension_numbers = #tpu.dot_dimension_numbers<[1], [0], [0], [1], [0, 0, 1, 1], [], []>} : vector<16x128xf32>, vector<128x64xf32>, vector<16x64xf32> -> vector<16x64xf32>
    %cst_91 = arith.constant dense<0.000000e+00> : vector<16x64xf32>
    %107 = tpu.matmul %0, %102, %cst_91 {dimension_numbers = #tpu.dot_dimension_numbers<[1], [0], [0], [1], [0, 0, 1, 1], [], []>} : vector<16x16xf32>, vector<16x64xf32>, vector<16x64xf32> -> vector<16x64xf32>
    %108 = arith.addf %104, %107 : vector<16x64xf32>
    %cst_92 = arith.constant dense<0.000000e+00> : vector<16x64xf32>
    %109 = tpu.matmul %1, %106, %cst_92 {dimension_numbers = #tpu.dot_dimension_numbers<[1], [0], [0], [1], [0, 0, 1, 1], [], []>} : vector<16x16xf32>, vector<16x64xf32>, vector<16x64xf32> -> vector<16x64xf32>
    %110 = arith.addf %108, %109 : vector<16x64xf32>
    %c4 = arith.constant 4 : index
    %c0_93 = arith.constant 0 : index
    %111 = vector.load %arg2[%c4, %c0_93] : memref<12x64xf32, #tpu.memory_space<vmem>>, vector<1x64xf32>
    %112 = vector.broadcast %111 : vector<1x64xf32> to vector<16x64xf32>
    %113 = arith.mulf %110, %112 : vector<16x64xf32>
    %c10 = arith.constant 10 : index
    %c0_94 = arith.constant 0 : index
    %114 = vector.load %arg2[%c10, %c0_94] : memref<12x64xf32, #tpu.memory_space<vmem>>, vector<1x64xf32>
    %115 = vector.broadcast %114 : vector<1x64xf32> to vector<16x64xf32>
    %116 = arith.addf %113, %115 : vector<16x64xf32>
    %cst_95 = arith.constant 0.000000e+00 : f32
    %117 = vector.broadcast %cst_95 : f32 to vector<16x64xf32>
    %118 = arith.maximumf %116, %117 : vector<16x64xf32>
    %c888 = arith.constant 888 : index
    %c0_96 = arith.constant 0 : index
    %119 = vector.load %arg1[%c888, %c0_96] : memref<1080x64xf32, #tpu.memory_space<vmem>>, vector<64x64xf32>
    %cst_97 = arith.constant dense<0.000000e+00> : vector<16x64xf32>
    %120 = tpu.matmul %118, %119, %cst_97 {dimension_numbers = #tpu.dot_dimension_numbers<[1], [0], [0], [1], [0, 0, 1, 1], [], []>} : vector<16x64xf32>, vector<64x64xf32>, vector<16x64xf32> -> vector<16x64xf32>
    %c952 = arith.constant 952 : index
    %c0_98 = arith.constant 0 : index
    %121 = vector.load %arg1[%c952, %c0_98] : memref<1080x64xf32, #tpu.memory_space<vmem>>, vector<64x64xf32>
    %cst_99 = arith.constant dense<0.000000e+00> : vector<16x64xf32>
    %122 = tpu.matmul %118, %121, %cst_99 {dimension_numbers = #tpu.dot_dimension_numbers<[1], [0], [0], [1], [0, 0, 1, 1], [], []>} : vector<16x64xf32>, vector<64x64xf32>, vector<16x64xf32> -> vector<16x64xf32>
    %c1016 = arith.constant 1016 : index
    %c0_100 = arith.constant 0 : index
    %123 = vector.load %arg1[%c1016, %c0_100] : memref<1080x64xf32, #tpu.memory_space<vmem>>, vector<64x64xf32>
    %cst_101 = arith.constant dense<0.000000e+00> : vector<16x64xf32>
    %124 = tpu.matmul %118, %123, %cst_101 {dimension_numbers = #tpu.dot_dimension_numbers<[1], [0], [0], [1], [0, 0, 1, 1], [], []>} : vector<16x64xf32>, vector<64x64xf32>, vector<16x64xf32> -> vector<16x64xf32>
    %cst_102 = arith.constant dense<0.000000e+00> : vector<16x64xf32>
    %125 = tpu.matmul %0, %120, %cst_102 {dimension_numbers = #tpu.dot_dimension_numbers<[1], [0], [0], [1], [0, 0, 1, 1], [], []>} : vector<16x16xf32>, vector<16x64xf32>, vector<16x64xf32> -> vector<16x64xf32>
    %126 = arith.addf %122, %125 : vector<16x64xf32>
    %cst_103 = arith.constant dense<0.000000e+00> : vector<16x64xf32>
    %127 = tpu.matmul %1, %124, %cst_103 {dimension_numbers = #tpu.dot_dimension_numbers<[1], [0], [0], [1], [0, 0, 1, 1], [], []>} : vector<16x16xf32>, vector<16x64xf32>, vector<16x64xf32> -> vector<16x64xf32>
    %128 = arith.addf %126, %127 : vector<16x64xf32>
    %c5 = arith.constant 5 : index
    %c0_104 = arith.constant 0 : index
    %129 = vector.load %arg2[%c5, %c0_104] : memref<12x64xf32, #tpu.memory_space<vmem>>, vector<1x64xf32>
    %130 = vector.broadcast %129 : vector<1x64xf32> to vector<16x64xf32>
    %131 = arith.mulf %128, %130 : vector<16x64xf32>
    %c11 = arith.constant 11 : index
    %c0_105 = arith.constant 0 : index
    %132 = vector.load %arg2[%c11, %c0_105] : memref<12x64xf32, #tpu.memory_space<vmem>>, vector<1x64xf32>
    %133 = vector.broadcast %132 : vector<1x64xf32> to vector<16x64xf32>
    %134 = arith.addf %131, %133 : vector<16x64xf32>
    %cst_106 = arith.constant 0.000000e+00 : f32
    %135 = vector.broadcast %cst_106 : f32 to vector<16x64xf32>
    %136 = arith.maximumf %134, %135 : vector<16x64xf32>
    %c0_107 = arith.constant 0 : index
    %c0_108 = arith.constant 0 : index
    %137 = vector.load %arg17[%c0_107, %c0_108] : memref<32x16xf32, #tpu.memory_space<vmem>>, vector<32x16xf32>
    %cst_109 = arith.constant dense<0.000000e+00> : vector<32x64xf32>
    %138 = tpu.matmul %137, %136, %cst_109 {dimension_numbers = #tpu.dot_dimension_numbers<[1], [0], [0], [1], [0, 0, 1, 1], [], []>} : vector<32x16xf32>, vector<16x64xf32>, vector<32x64xf32> -> vector<32x64xf32>
    %c0_110 = arith.constant 0 : index
    %c0_111 = arith.constant 0 : index
    %139 = vector.load %arg18[%c0_110, %c0_111] : memref<64x128xf32, #tpu.memory_space<vmem>>, vector<64x128xf32>
    %cst_112 = arith.constant dense<0.000000e+00> : vector<32x128xf32>
    %140 = tpu.matmul %138, %139, %cst_112 {dimension_numbers = #tpu.dot_dimension_numbers<[1], [0], [0], [1], [0, 0, 1, 1], [], []>} : vector<32x64xf32>, vector<64x128xf32>, vector<32x128xf32> -> vector<32x128xf32>
    %c0_113 = arith.constant 0 : index
    %c0_114 = arith.constant 0 : index
    %141 = vector.load %arg19[%c0_113, %c0_114] : memref<128x16xf32, #tpu.memory_space<vmem>>, vector<128x16xf32>
    %cst_115 = arith.constant dense<0.000000e+00> : vector<32x16xf32>
    %142 = tpu.matmul %140, %141, %cst_115 {dimension_numbers = #tpu.dot_dimension_numbers<[1], [0], [0], [1], [0, 0, 1, 1], [], []>} : vector<32x128xf32>, vector<128x16xf32>, vector<32x16xf32> -> vector<32x16xf32>
    %c0_116 = arith.constant 0 : index
    %c0_117 = arith.constant 0 : index
    %143 = vector.load %arg20[%c0_116, %c0_117] : memref<1x16xf32, #tpu.memory_space<vmem>>, vector<1x16xf32>
    %144 = vector.broadcast %143 : vector<1x16xf32> to vector<32x16xf32>
    %145 = arith.addf %142, %144 : vector<32x16xf32>
    %146 = arith.negf %145 : vector<32x16xf32>
    %147 = math.exp %146 : vector<32x16xf32>
    %cst_118 = arith.constant 1.000000e+00 : f32
    %148 = vector.broadcast %cst_118 : f32 to vector<32x16xf32>
    %149 = arith.addf %148, %147 : vector<32x16xf32>
    %150 = arith.divf %148, %149 : vector<32x16xf32>
    %cst_119 = arith.constant 2.560000e+02 : f32
    %151 = vector.broadcast %cst_119 : f32 to vector<32x16xf32>
    %152 = arith.mulf %151, %150 : vector<32x16xf32>
    %c0_120 = arith.constant 0 : index
    %c0_121 = arith.constant 0 : index
    %153 = vector.load %arg21[%c0_120, %c0_121] : memref<32x16xf32, #tpu.memory_space<vmem>>, vector<32x16xf32>
    tpu.vector_store %arg21[%c0_120, %c0_121], %152 {strides = array<i32>} : memref<32x16xf32, #tpu.memory_space<vmem>>, vector<32x16xf32>,
    return
  }
}

</mosaic_0001>

<llo_original>
// kernel: forward.1
$region0: #{forward.1}
  #allocation0 [shape = 'u32[]', space=smem, size = 0x4, offset = 0x4, fixed_abs, tag = 'smem constant byte address 0x4 - core index']
  #allocation1 [shape = 'u32[144,128]{1,0:T(1,128)}', space=vmem, size = 0x12000, scoped, tag = 'internal scratch']
  %s0 = inlined_call_operand.hbm [shape: f32[32,16], index: 0, kind: input, shape index: {}]
  %s1 = inlined_call_operand.hbm [shape: f32[1080,64], index: 1, kind: input, shape index: {}]
  %s2 = inlined_call_operand.hbm [shape: f32[12,64], index: 2, kind: input, shape index: {}]
  %s3 = inlined_call_operand.hbm [shape: f32[16,8], index: 3, kind: input, shape index: {}]
  %s4 = inlined_call_operand.hbm [shape: f32[16,8], index: 4, kind: input, shape index: {}]
  %s5 = inlined_call_operand.hbm [shape: f32[16,32], index: 5, kind: input, shape index: {}]
  %s6 = inlined_call_operand.hbm [shape: f32[16,32], index: 6, kind: input, shape index: {}]
  %s7 = inlined_call_operand.hbm [shape: f32[64,32], index: 7, kind: input, shape index: {}]
  %s8 = inlined_call_operand.hbm [shape: f32[64,32], index: 8, kind: input, shape index: {}]
  %s9 = inlined_call_operand.hbm [shape: f32[8,16], index: 9, kind: input, shape index: {}]
  %s10 = inlined_call_operand.hbm [shape: f32[8,16], index: 10, kind: input, shape index: {}]
  %s11 = inlined_call_operand.hbm [shape: f32[16,16], index: 11, kind: input, shape index: {}]
  %s12 = inlined_call_operand.hbm [shape: f32[16,16], index: 12, kind: input, shape index: {}]
  %s13 = inlined_call_operand.hbm [shape: f32[8,8], index: 13, kind: input, shape index: {}]
  %s14 = inlined_call_operand.vmem [shape: f32[8,8], index: 14, kind: input, shape index: {}]
  %s15 = inlined_call_operand.hbm [shape: f32[16,8], index: 15, kind: input, shape index: {}]
  %s16 = inlined_call_operand.hbm [shape: f32[64,128], index: 16, kind: input, shape index: {}]
  %s17 = inlined_call_operand.hbm [shape: f32[32,16], index: 17, kind: input, shape index: {}]
  %s18 = inlined_call_operand.vmem [shape: f32[64,128], index: 18, kind: input, shape index: {}]
  %s19 = inlined_call_operand.hbm [shape: f32[128,16], index: 19, kind: input, shape index: {}]
  %s20 = inlined_call_operand.vmem [shape: f32[1,16], index: 20, kind: input, shape index: {}]
  %s21 = inlined_call_operand.hbm [shape: f32[32,16], index: 21, kind: output, shape index: {}]
  %s22 = sld [smem:[#allocation0]]
  $region166: #{forward.1} parent=0
    _
  %s24 = ssub.s32 1, %s22
  %s25 = scalar_select 0, %s24, %s22
  $region1: #{forward.1} parent=0
    #allocation2 [shape = 'u8[16384]{0}', space=vmem, size = 0x4000, scoped, tag = 'input window, operand 0, single buffered']
    #allocation3 [shape = 's32[1]{0}', space=sflag, size = 0x4, scoped, tag = 'scoped memory for forward.1']
    #allocation4 [shape = 's32[1]{0}', space=sflag, size = 0x4, scoped, tag = 'scoped memory for forward.1']
    #allocation5 [shape = 'u8[552960]{0}', space=vmem, size = 0x87000, scoped, tag = 'input window, operand 1, single buffered']
    #allocation6 [shape = 's32[1]{0}', space=sflag, size = 0x4, scoped, tag = 'scoped memory for forward.1']
    #allocation7 [shape = 'u8[8192]{0}', space=vmem, size = 0x2000, scoped, tag = 'input window, operand 2, single buffered']
    #allocation8 [shape = 'u8[8192]{0}', space=vmem, size = 0x2000, scoped, tag = 'input window, operand 3, single buffered']
    #allocation9 [shape = 's32[1]{0}', space=sflag, size = 0x4, scoped, tag = 'scoped memory for forward.1']
    #allocation10 [shape = 'u8[8192]{0}', space=vmem, size = 0x2000, scoped, tag = 'input window, operand 4, single buffered']
    #allocation11 [shape = 'u8[8192]{0}', space=vmem, size = 0x2000, scoped, tag = 'input window, operand 5, single buffered']
    #allocation12 [shape = 's32[1]{0}', space=sflag, size = 0x4, scoped, tag = 'scoped memory for forward.1']
    #allocation13 [shape = 'u8[8192]{0}', space=vmem, size = 0x2000, scoped, tag = 'input window, operand 6, single buffered']
    #allocation14 [shape = 'u8[32768]{0}', space=vmem, size = 0x8000, scoped, tag = 'input window, operand 7, single buffered']
    #allocation15 [shape = 's32[1]{0}', space=sflag, size = 0x4, scoped, tag = 'scoped memory for forward.1']
    #allocation16 [shape = 'u8[32768]{0}', space=vmem, size = 0x8000, scoped, tag = 'input window, operand 8, single buffered']
    #allocation17 [shape = 'u8[4096]{0}', space=vmem, size = 0x1000, scoped, tag = 'input window, operand 9, single buffered']
    #allocation18 [shape = 's32[1]{0}', space=sflag, size = 0x4, scoped, tag = 'scoped memory for forward.1']
    #allocation19 [shape = 'u8[4096]{0}', space=vmem, size = 0x1000, scoped, tag = 'input window, operand 10, single buffered']
    #allocation20 [shape = 'u8[8192]{0}', space=vmem, size = 0x2000, scoped, tag = 'input window, operand 11, single buffered']
    #allocation21 [shape = 's32[1]{0}', space=sflag, size = 0x4, scoped, tag = 'scoped memory for forward.1']
    #allocation22 [shape = 'u8[8192]{0}', space=vmem, size = 0x2000, scoped, tag = 'input window, operand 12, single buffered']
    #allocation23 [shape = 'u8[4096]{0}', space=vmem, size = 0x1000, scoped, tag = 'input window, operand 13, single buffered']
    #allocation24 [shape = 's32[1]{0}', space=sflag, size = 0x4, scoped, tag = 'scoped memory for forward.1']
    #allocation25 [shape = 'u8[8192]{0}', space=vmem, size = 0x2000, scoped, tag = 'input window, operand 15, single buffered']
    #allocation26 [shape = 'u8[32768]{0}', space=vmem, size = 0x8000, scoped, tag = 'input window, operand 16, single buffered']
    #allocation27 [shape = 's32[1]{0}', space=sflag, size = 0x4, scoped, tag = 'scoped memory for forward.1']
    #allocation28 [shape = 'u8[16384]{0}', space=vmem, size = 0x4000, scoped, tag = 'input window, operand 17, single buffered']
    #allocation29 [shape = 'u8[65536]{0}', space=vmem, size = 0x10000, scoped, tag = 'input window, operand 19, single buffered']
    #allocation30 [shape = 's32[1]{0}', space=sflag, size = 0x4, scoped, tag = 'scoped memory for forward.1']
    #allocation31 [shape = 'u8[16384]{0}', space=vmem, size = 0x4000, scoped, tag = 'output window, operand 0, single buffered']
    %26 = vsyncpa [#allocation3], 0
    %27 = vsyncpa [#allocation6], 0
    %28 = vsyncpa [#allocation9], 0
    %29 = vsyncpa [#allocation12], 0
    %30 = vsyncpa [#allocation15], 0
    %31 = vsyncpa [#allocation18], 0
    %32 = vsyncpa [#allocation21], 0
    %33 = vsyncpa [#allocation24], 0
    %34 = vsyncpa [#allocation27], 0
    %35 = vsyncpa [#allocation30], 0
    %36 = vsyncpa [#allocation4], 0
    // Predicated region
    $region2: #{forward.1} parent=1 // pred_check
      _
    $region3: #{forward.1} parent=1 // pred_check_branch
      %38 = sbr.rel (0) target = $region5
    $region4: #{forward.1} parent=1 // pred_region
      %s40 = ssub.s32 512, 512
      %41 = vsyncadd [#allocation3], %s40
      %s42 = sshll.u32 [#allocation2], 4
      %s43 = int_to_ptr.vmem [resolvable:$true] %s42
      %48 = dma.hbm_to_vmem [thread:$0]  %s0, 512, %s43, [#allocation3], 128, 128, 8
    $region5: #{forward.1} parent=1 // pred_fallthru
      _
    // Predicated region
    $region6: #{forward.1} parent=1 // pred_check
      _
    $region7: #{forward.1} parent=1 // pred_check_branch
      %50 = sbr.rel (0) target = $region9
    $region8: #{forward.1} parent=1 // pred_region
      %s52 = ssub.s32 17280, 17280
      %53 = vsyncadd [#allocation6], %s52
      %s54 = sshll.u32 [#allocation5], 4
      %s55 = int_to_ptr.vmem [resolvable:$true] %s54
      %60 = dma.hbm_to_vmem [thread:$0]  %s1, 17280, %s55, [#allocation6], 128, 128, 8
    $region9: #{forward.1} parent=1 // pred_fallthru
      _
    // Predicated region
    $region10: #{forward.1} parent=1 // pred_check
      _
    $region11: #{forward.1} parent=1 // pred_check_branch
      %62 = sbr.rel (0) target = $region13
    $region12: #{forward.1} parent=1 // pred_region
      %s64 = ssub.s32 256, 256
      %65 = vsyncadd [#allocation6], %s64
      %s66 = sshll.u32 [#allocation7], 4
      %s67 = int_to_ptr.vmem [resolvable:$true] %s66
      %72 = dma.hbm_to_vmem [thread:$0]  %s2, 256, %s67, [#allocation6], 128, 128, 8
    $region13: #{forward.1} parent=1 // pred_fallthru
      _
    // Predicated region
    $region14: #{forward.1} parent=1 // pred_check
      _
    $region15: #{forward.1} parent=1 // pred_check_branch
      %74 = sbr.rel (0) target = $region17
    $region16: #{forward.1} parent=1 // pred_region
      %s76 = ssub.s32 256, 256
      %77 = vsyncadd [#allocation9], %s76
      %s78 = sshll.u32 [#allocation8], 4
      %s79 = int_to_ptr.vmem [resolvable:$true] %s78
      %84 = dma.hbm_to_vmem [thread:$0]  %s3, 256, %s79, [#allocation9], 128, 128, 8
    $region17: #{forward.1} parent=1 // pred_fallthru
      _
    // Predicated region
    $region18: #{forward.1} parent=1 // pred_check
      _
    $region19: #{forward.1} parent=1 // pred_check_branch
      %86 = sbr.rel (0) target = $region21
    $region20: #{forward.1} parent=1 // pred_region
      %s88 = ssub.s32 256, 256
      %89 = vsyncadd [#allocation9], %s88
      %s90 = sshll.u32 [#allocation10], 4
      %s91 = int_to_ptr.vmem [resolvable:$true] %s90
      %96 = dma.hbm_to_vmem [thread:$0]  %s4, 256, %s91, [#allocation9], 128, 128, 8
    $region21: #{forward.1} parent=1 // pred_fallthru
      _
    // Predicated region
    $region22: #{forward.1} parent=1 // pred_check
      _
    $region23: #{forward.1} parent=1 // pred_check_branch
      %98 = sbr.rel (0) target = $region25
    $region24: #{forward.1} parent=1 // pred_region
      %s100 = ssub.s32 256, 256
      %101 = vsyncadd [#allocation12], %s100
      %s102 = sshll.u32 [#allocation11], 4
      %s103 = int_to_ptr.vmem [resolvable:$true] %s102
      %108 = dma.hbm_to_vmem [thread:$0]  %s5, 256, %s103, [#allocation12], 128, 128, 8
    $region25: #{forward.1} parent=1 // pred_fallthru
      _
    // Predicated region
    $region26: #{forward.1} parent=1 // pred_check
      _
    $region27: #{forward.1} parent=1 // pred_check_branch
      %110 = sbr.rel (0) target = $region29
    $region28: #{forward.1} parent=1 // pred_region
      %s112 = ssub.s32 256, 256
      %113 = vsyncadd [#allocation12], %s112
      %s114 = sshll.u32 [#allocation13], 4
      %s115 = int_to_ptr.vmem [resolvable:$true] %s114
      %120 = dma.hbm_to_vmem [thread:$0]  %s6, 256, %s115, [#allocation12], 128, 128, 8
    $region29: #{forward.1} parent=1 // pred_fallthru
      _
    // Predicated region
    $region30: #{forward.1} parent=1 // pred_check
      _
    $region31: #{forward.1} parent=1 // pred_check_branch
      %122 = sbr.rel (0) target = $region33
    $region32: #{forward.1} parent=1 // pred_region
      %s124 = ssub.s32 1024, 1024
      %125 = vsyncadd [#allocation15], %s124
      %s126 = sshll.u32 [#allocation14], 4
      %s127 = int_to_ptr.vmem [resolvable:$true] %s126
      %132 = dma.hbm_to_vmem [thread:$0]  %s7, 1024, %s127, [#allocation15], 128, 128, 8
    $region33: #{forward.1} parent=1 // pred_fallthru
      _
    // Predicated region
    $region34: #{forward.1} parent=1 // pred_check
      _
    $region35: #{forward.1} parent=1 // pred_check_branch
      %134 = sbr.rel (0) target = $region37
    $region36: #{forward.1} parent=1 // pred_region
      %s136 = ssub.s32 1024, 1024
      %137 = vsyncadd [#allocation15], %s136
      %s138 = sshll.u32 [#allocation16], 4
      %s139 = int_to_ptr.vmem [resolvable:$true] %s138
      %144 = dma.hbm_to_vmem [thread:$0]  %s8, 1024, %s139, [#allocation15], 128, 128, 8
    $region37: #{forward.1} parent=1 // pred_fallthru
      _
    // Predicated region
    $region38: #{forward.1} parent=1 // pred_check
      _
    $region39: #{forward.1} parent=1 // pred_check_branch
      %146 = sbr.rel (0) target = $region41
    $region40: #{forward.1} parent=1 // pred_region
      %s148 = ssub.s32 128, 128
      %149 = vsyncadd [#allocation18], %s148
      %s151 = sshll.u32 [#allocation17], 4
      %s152 = int_to_ptr.vmem [resolvable:$true] %s151
      %154 = dma.hbm_to_vmem [thread:$0]  %s9, 128, %s152, [#allocation18]
    $region41: #{forward.1} parent=1 // pred_fallthru
      _
    // Predicated region
    $region42: #{forward.1} parent=1 // pred_check
      _
    $region43: #{forward.1} parent=1 // pred_check_branch
      %156 = sbr.rel (0) target = $region45
    $region44: #{forward.1} parent=1 // pred_region
      %s158 = ssub.s32 128, 128
      %159 = vsyncadd [#allocation18], %s158
      %s161 = sshll.u32 [#allocation19], 4
      %s162 = int_to_ptr.vmem [resolvable:$true] %s161
      %164 = dma.hbm_to_vmem [thread:$0]  %s10, 128, %s162, [#allocation18]
    $region45: #{forward.1} parent=1 // pred_fallthru
      _
    // Predicated region
    $region46: #{forward.1} parent=1 // pred_check
      _
    $region47: #{forward.1} parent=1 // pred_check_branch
      %166 = sbr.rel (0) target = $region49
    $region48: #{forward.1} parent=1 // pred_region
      %s168 = ssub.s32 256, 256
      %169 = vsyncadd [#allocation21], %s168
      %s170 = sshll.u32 [#allocation20], 4
      %s171 = int_to_ptr.vmem [resolvable:$true] %s170
      %176 = dma.hbm_to_vmem [thread:$0]  %s11, 256, %s171, [#allocation21], 128, 128, 8
    $region49: #{forward.1} parent=1 // pred_fallthru
      _
    // Predicated region
    $region50: #{forward.1} parent=1 // pred_check
      _
    $region51: #{forward.1} parent=1 // pred_check_branch
      %178 = sbr.rel (0) target = $region53
    $region52: #{forward.1} parent=1 // pred_region
      %s180 = ssub.s32 256, 256
      %181 = vsyncadd [#allocation21], %s180
      %s182 = sshll.u32 [#allocation22], 4
      %s183 = int_to_ptr.vmem [resolvable:$true] %s182
      %188 = dma.hbm_to_vmem [thread:$0]  %s12, 256, %s183, [#allocation21], 128, 128, 8
    $region53: #{forward.1} parent=1 // pred_fallthru
      _
    // Predicated region
    $region54: #{forward.1} parent=1 // pred_check
      _
    $region55: #{forward.1} parent=1 // pred_check_branch
      %190 = sbr.rel (0) target = $region57
    $region56: #{forward.1} parent=1 // pred_region
      %s192 = ssub.s32 128, 128
      %193 = vsyncadd [#allocation24], %s192
      %s195 = sshll.u32 [#allocation23], 4
      %s196 = int_to_ptr.vmem [resolvable:$true] %s195
      %198 = dma.hbm_to_vmem [thread:$0]  %s13, 128, %s196, [#allocation24]
    $region57: #{forward.1} parent=1 // pred_fallthru
      _
    // Predicated region
    $region58: #{forward.1} parent=1 // pred_check
      _
    $region59: #{forward.1} parent=1 // pred_check_branch
      %200 = sbr.rel (0) target = $region61
    $region60: #{forward.1} parent=1 // pred_region
      _
    $region61: #{forward.1} parent=1 // pred_fallthru
      _
    // Predicated region
    $region62: #{forward.1} parent=1 // pred_check
      _
    $region63: #{forward.1} parent=1 // pred_check_branch
      %202 = sbr.rel (0) target = $region65
    $region64: #{forward.1} parent=1 // pred_region
      %s204 = ssub.s32 256, 256
      %205 = vsyncadd [#allocation24], %s204
      %s206 = sshll.u32 [#allocation25], 4
      %s207 = int_to_ptr.vmem [resolvable:$true] %s206
      %212 = dma.hbm_to_vmem [thread:$0]  %s15, 256, %s207, [#allocation24], 128, 128, 8
    $region65: #{forward.1} parent=1 // pred_fallthru
      _
    // Predicated region
    $region66: #{forward.1} parent=1 // pred_check
      _
    $region67: #{forward.1} parent=1 // pred_check_branch
      %214 = sbr.rel (0) target = $region69
    $region68: #{forward.1} parent=1 // pred_region
      %s216 = ssub.s32 1024, 1024
      %217 = vsyncadd [#allocation27], %s216
      %s218 = sshll.u32 [#allocation26], 4
      %s219 = int_to_ptr.vmem [resolvable:$true] %s218
      %224 = dma.hbm_to_vmem [thread:$0]  %s16, 1024, %s219, [#allocation27], 128, 128, 8
    $region69: #{forward.1} parent=1 // pred_fallthru
      _
    // Predicated region
    $region70: #{forward.1} parent=1 // pred_check
      _
    $region71: #{forward.1} parent=1 // pred_check_branch
      %226 = sbr.rel (0) target = $region73
    $region72: #{forward.1} parent=1 // pred_region
      %s228 = ssub.s32 512, 512
      %229 = vsyncadd [#allocation27], %s228
      %s230 = sshll.u32 [#allocation28], 4
      %s231 = int_to_ptr.vmem [resolvable:$true] %s230
      %236 = dma.hbm_to_vmem [thread:$0]  %s17, 512, %s231, [#allocation27], 128, 128, 8
    $region73: #{forward.1} parent=1 // pred_fallthru
      _
    // Predicated region
    $region74: #{forward.1} parent=1 // pred_check
      _
    $region75: #{forward.1} parent=1 // pred_check_branch
      %238 = sbr.rel (0) target = $region77
    $region76: #{forward.1} parent=1 // pred_region
      _
    $region77: #{forward.1} parent=1 // pred_fallthru
      _
    // Predicated region
    $region78: #{forward.1} parent=1 // pred_check
      _
    $region79: #{forward.1} parent=1 // pred_check_branch
      %240 = sbr.rel (0) target = $region81
    $region80: #{forward.1} parent=1 // pred_region
      %s242 = ssub.s32 2048, 2048
      %243 = vsyncadd [#allocation30], %s242
      %s244 = sshll.u32 [#allocation29], 4
      %s245 = int_to_ptr.vmem [resolvable:$true] %s244
      %250 = dma.hbm_to_vmem [thread:$0]  %s19, 2048, %s245, [#allocation30], 128, 128, 8
    $region81: #{forward.1} parent=1 // pred_fallthru
      _
    // Predicated region
    $region82: #{forward.1} parent=1 // pred_check
      _
    $region83: #{forward.1} parent=1 // pred_check_branch
      %252 = sbr.rel (0) target = $region85
    $region84: #{forward.1} parent=1 // pred_region
      _
    $region85: #{forward.1} parent=1 // pred_fallthru
      _
    // Predicated region
    $region86: #{forward.1} parent=1 // pred_check
      _
    $region87: #{forward.1} parent=1 // pred_check_branch
      %254 = sbr.rel (0) target = $region89
    $region88: #{forward.1} parent=1 // pred_region
      %255 = dma.done [#allocation3], 512
    $region89: #{forward.1} parent=1 // pred_fallthru
      _
    // Predicated region
    $region90: #{forward.1} parent=1 // pred_check
      _
    $region91: #{forward.1} parent=1 // pred_check_branch
      %257 = sbr.rel (0) target = $region93
    $region92: #{forward.1} parent=1 // pred_region
      %258 = dma.done [#allocation6], 17280
    $region93: #{forward.1} parent=1 // pred_fallthru
      _
    // Predicated region
    $region94: #{forward.1} parent=1 // pred_check
      _
    $region95: #{forward.1} parent=1 // pred_check_branch
      %260 = sbr.rel (0) target = $region97
    $region96: #{forward.1} parent=1 // pred_region
      %261 = dma.done [#allocation6], 256
    $region97: #{forward.1} parent=1 // pred_fallthru
      _
    // Predicated region
    $region98: #{forward.1} parent=1 // pred_check
      _
    $region99: #{forward.1} parent=1 // pred_check_branch
      %263 = sbr.rel (0) target = $region101
    $region100: #{forward.1} parent=1 // pred_region
      %264 = dma.done [#allocation9], 256
    $region101: #{forward.1} parent=1 // pred_fallthru
      _
    // Predicated region
    $region102: #{forward.1} parent=1 // pred_check
      _
    $region103: #{forward.1} parent=1 // pred_check_branch
      %266 = sbr.rel (0) target = $region105
    $region104: #{forward.1} parent=1 // pred_region
      %267 = dma.done [#allocation9], 256
    $region105: #{forward.1} parent=1 // pred_fallthru
      _
    // Predicated region
    $region106: #{forward.1} parent=1 // pred_check
      _
    $region107: #{forward.1} parent=1 // pred_check_branch
      %269 = sbr.rel (0) target = $region109
    $region108: #{forward.1} parent=1 // pred_region
      %270 = dma.done [#allocation12], 256
    $region109: #{forward.1} parent=1 // pred_fallthru
      _
    // Predicated region
    $region110: #{forward.1} parent=1 // pred_check
      _
    $region111: #{forward.1} parent=1 // pred_check_branch
      %272 = sbr.rel (0) target = $region113
    $region112: #{forward.1} parent=1 // pred_region
      %273 = dma.done [#allocation12], 256
    $region113: #{forward.1} parent=1 // pred_fallthru
      _
    // Predicated region
    $region114: #{forward.1} parent=1 // pred_check
      _
    $region115: #{forward.1} parent=1 // pred_check_branch
      %275 = sbr.rel (0) target = $region117
    $region116: #{forward.1} parent=1 // pred_region
      %276 = dma.done [#allocation15], 1024
    $region117: #{forward.1} parent=1 // pred_fallthru
      _
    // Predicated region
    $region118: #{forward.1} parent=1 // pred_check
      _
    $region119: #{forward.1} parent=1 // pred_check_branch
      %278 = sbr.rel (0) target = $region121
    $region120: #{forward.1} parent=1 // pred_region
      %279 = dma.done [#allocation15], 1024
    $region121: #{forward.1} parent=1 // pred_fallthru
      _
    // Predicated region
    $region122: #{forward.1} parent=1 // pred_check
      _
    $region123: #{forward.1} parent=1 // pred_check_branch
      %281 = sbr.rel (0) target = $region125
    $region124: #{forward.1} parent=1 // pred_region
      %282 = dma.done [#allocation18], 128
    $region125: #{forward.1} parent=1 // pred_fallthru
      _
    // Predicated region
    $region126: #{forward.1} parent=1 // pred_check
      _
    $region127: #{forward.1} parent=1 // pred_check_branch
      %284 = sbr.rel (0) target = $region129
    $region128: #{forward.1} parent=1 // pred_region
      %285 = dma.done [#allocation18], 128
    $region129: #{forward.1} parent=1 // pred_fallthru
      _
    // Predicated region
    $region130: #{forward.1} parent=1 // pred_check
      _
    $region131: #{forward.1} parent=1 // pred_check_branch
      %287 = sbr.rel (0) target = $region133
    $region132: #{forward.1} parent=1 // pred_region
      %288 = dma.done [#allocation21], 256
    $region133: #{forward.1} parent=1 // pred_fallthru
      _
    // Predicated region
    $region134: #{forward.1} parent=1 // pred_check
      _
    $region135: #{forward.1} parent=1 // pred_check_branch
      %290 = sbr.rel (0) target = $region137
    $region136: #{forward.1} parent=1 // pred_region
      %291 = dma.done [#allocation21], 256
    $region137: #{forward.1} parent=1 // pred_fallthru
      _
    // Predicated region
    $region138: #{forward.1} parent=1 // pred_check
      _
    $region139: #{forward.1} parent=1 // pred_check_branch
      %293 = sbr.rel (0) target = $region141
    $region140: #{forward.1} parent=1 // pred_region
      %294 = dma.done [#allocation24], 128
    $region141: #{forward.1} parent=1 // pred_fallthru
      _
    // Predicated region
    $region142: #{forward.1} parent=1 // pred_check
      _
    $region143: #{forward.1} parent=1 // pred_check_branch
      %296 = sbr.rel (0) target = $region145
    $region144: #{forward.1} parent=1 // pred_region
      %297 = dma.done [#allocation24], 256
    $region145: #{forward.1} parent=1 // pred_fallthru
      _
    // Predicated region
    $region146: #{forward.1} parent=1 // pred_check
      _
    $region147: #{forward.1} parent=1 // pred_check_branch
      %299 = sbr.rel (0) target = $region149
    $region148: #{forward.1} parent=1 // pred_region
      %300 = dma.done [#allocation27], 1024
    $region149: #{forward.1} parent=1 // pred_fallthru
      _
    // Predicated region
    $region150: #{forward.1} parent=1 // pred_check
      _
    $region151: #{forward.1} parent=1 // pred_check_branch
      %302 = sbr.rel (0) target = $region153
    $region152: #{forward.1} parent=1 // pred_region
      %303 = dma.done [#allocation27], 512
    $region153: #{forward.1} parent=1 // pred_fallthru
      _
    // Predicated region
    $region154: #{forward.1} parent=1 // pred_check
      _
    $region155: #{forward.1} parent=1 // pred_check_branch
      %305 = sbr.rel (0) target = $region157
    $region156: #{forward.1} parent=1 // pred_region
      %306 = dma.done [#allocation30], 2048
    $region157: #{forward.1} parent=1 // pred_fallthru
      _
    %v307 = vld [vmem:[#allocation20] sm:$0xff]
    %v308 = vld [vmem:[#allocation20 + $0x8] sm:$0xff]
    %v309 = vld [vmem:[#allocation22] sm:$0xff]
    %v310 = vld [vmem:[#allocation22 + $0x8] sm:$0xff]
    %v311 = vld [vmem:[#allocation23] sm:$0xff]
    %v312 = vld [vmem:[%s14] sm:$0xff]
    %v313 = vld [vmem:[#allocation2] sm:$0xff]
    %v314 = vld [vmem:[#allocation2 + $0x8] sm:$0xff]
    %v315 = vld [vmem:[#allocation2 + $0x10] sm:$0xff]
    %v316 = vld [vmem:[#allocation2 + $0x18] sm:$0xff]
    %v317 = vld [vmem:[#allocation8] sm:$0xff]
    %v318 = vld [vmem:[#allocation8 + $0x8] sm:$0xff]
    %v319 = vld [vmem:[#allocation10] sm:$0xff]
    %v320 = vld [vmem:[#allocation10 + $0x8] sm:$0xff]
    %v321 = vld [vmem:[#allocation11] sm:$0xff]
    %v322 = vld [vmem:[#allocation11 + $0x8] sm:$0xff]
    %v323 = vld [vmem:[#allocation13] sm:$0xff]
    %v324 = vld [vmem:[#allocation13 + $0x8] sm:$0xff]
    %vm325 = vcmask 130048
    %v327 = vsel %vm325, %v313, 0
    %v330 = vsel %vm325, %v314, 0
    %v333 = vsel %vm325, %v315, 0
    %v336 = vsel %vm325, %v316, 0
    %338 = vmatprep.subr.mxu0 0.0
    %339 = vmatpush1.msra.mxu0 %v317
    %340 = vmatprep.subr.mxu0 0.0
    %341 = vmatpush1.msra.mxu0 %v318
    %342 = vmatprep.subr.mxu0 0.0
    %343 = vmatpush1.msra.mxu0 0.0
    %344 = vmatprep.subr.mxu0 0.0
    %345 = vmatpush1.msra.mxu0 0.0
    %346 = vmatprep.subr.mxu0 0.0
    %347 = vmatpush1.msra.mxu0 0.0
    %348 = vmatprep.subr.mxu0 0.0
    %349 = vmatpush1.msra.mxu0 0.0
    %350 = vmatprep.subr.mxu0 0.0
    %351 = vmatpush1.msra.mxu0 0.0
    %352 = vmatprep.subr.mxu0 0.0
    %353 = vmatpush1.msra.mxu0 0.0
    %354 = vmatprep.subr.mxu0 0.0
    %355 = vmatpush1.msra.mxu0 0.0
    %356 = vmatprep.subr.mxu0 0.0
    %357 = vmatpush1.msra.mxu0 0.0
    %358 = vmatprep.subr.mxu0 0.0
    %359 = vmatpush1.msra.mxu0 0.0
    %360 = vmatprep.subr.mxu0 0.0
    %361 = vmatpush1.msra.mxu0 0.0
    %362 = vmatprep.subr.mxu0 0.0
    %363 = vmatpush1.msra.mxu0 0.0
    %364 = vmatprep.subr.mxu0 0.0
    %365 = vmatpush1.msra.mxu0 0.0
    %366 = vmatprep.subr.mxu0 0.0
    %367 = vmatpush1.msra.mxu0 0.0
    %368 = vmatprep.subr.mxu0 0.0
    %369 = vmatpush1.msra.mxu0 0.0
    %370 = vmatprep.subr.mxu0 0.0
    %371 = vmatpush1.msra.mxu0 0.0
    %372 = vmatprep.subr.mxu0 0.0
    %373 = vmatpush1.msra.mxu0 0.0
    %374 = vmatprep.subr.mxu0 0.0
    %375 = vmatpush1.msra.mxu0 0.0
    %376 = vmatprep.subr.mxu0 0.0
    %377 = vmatpush1.msra.mxu0 0.0
    %378 = vmatprep.subr.mxu0 0.0
    %379 = vmatpush1.msra.mxu0 0.0
    %380 = vmatprep.subr.mxu0 0.0
    %381 = vmatpush1.msra.mxu0 0.0
    %382 = vmatprep.subr.mxu0 0.0
    %383 = vmatpush1.msra.mxu0 0.0
    %384 = vmatprep.subr.mxu0 0.0
    %385 = vmatpush1.msra.mxu0 0.0
    %386 = vmatprep.subr.mxu0 0.0
    %387 = vmatpush1.msra.mxu0 0.0
    %388 = vmatprep.subr.mxu0 0.0
    %389 = vmatpush1.msra.mxu0 0.0
    %390 = vmatprep.subr.mxu0 0.0
    %391 = vmatpush1.msra.mxu0 0.0
    %392 = vmatprep.subr.mxu0 0.0
    %393 = vmatpush1.msra.mxu0 0.0
    %394 = vmatprep.subr.mxu0 0.0
    %395 = vmatpush1.msra.mxu0 0.0
    %396 = vmatprep.subr.mxu0 0.0
    %397 = vmatpush1.msra.mxu0 0.0
    %398 = vmatprep.subr.mxu0 0.0
    %399 = vmatpush1.msra.mxu0 0.0
    %400 = vmatprep.subr.mxu0 0.0
    %401 = vmatpush1.msra.mxu0 0.0
    %402 = vmatprep.mubr.f32.mxu0 0.0
    %403 = vmatmul.mubr.f32.gmra.mrb[0].mxu0 %v327
    %v404 = vpop.f32.mrb[0].mxu0
    %v405 = vadd.f32 0.0, %v404
    %v406 = vpop.f32.mrb[0].mxu0
    %407 = vmatprep.mubr.f32.mxu0 0.0
    %408 = vmatmul.mubr.f32.gmra.mrb[0].mxu0 %v330
    %v409 = vpop.f32.mrb[0].mxu0
    %v410 = vadd.f32 0.0, %v409
    %v411 = vpop.f32.mrb[0].mxu0
    %412 = vmatprep.mubr.f32.mxu0 0.0
    %413 = vmatmul.mubr.f32.gmra.mrb[0].mxu0 %v333
    %v414 = vpop.f32.mrb[0].mxu0
    %v415 = vadd.f32 0.0, %v414
    %v416 = vpop.f32.mrb[0].mxu0
    %417 = vmatprep.mubr.f32.mxu0 0.0
    %418 = vmatmul.mubr.f32.gmra.mrb[0].mxu0 %v336
    %v419 = vpop.f32.mrb[0].mxu0
    %v420 = vadd.f32 0.0, %v419
    %v421 = vpop.f32.mrb[0].mxu0
    %422 = vdwg.mxu0
    %423 = vmatprep.subr.mxu0 0.0
    %424 = vmatpush1.msra.mxu0 %v319
    %425 = vmatprep.subr.mxu0 0.0
    %426 = vmatpush1.msra.mxu0 %v320
    %427 = vmatprep.subr.mxu0 0.0
    %428 = vmatpush1.msra.mxu0 0.0
    %429 = vmatprep.subr.mxu0 0.0
    %430 = vmatpush1.msra.mxu0 0.0
    %431 = vmatprep.subr.mxu0 0.0
    %432 = vmatpush1.msra.mxu0 0.0
    %433 = vmatprep.subr.mxu0 0.0
    %434 = vmatpush1.msra.mxu0 0.0
    %435 = vmatprep.subr.mxu0 0.0
    %436 = vmatpush1.msra.mxu0 0.0
    %437 = vmatprep.subr.mxu0 0.0
    %438 = vmatpush1.msra.mxu0 0.0
    %439 = vmatprep.subr.mxu0 0.0
    %440 = vmatpush1.msra.mxu0 0.0
    %441 = vmatprep.subr.mxu0 0.0
    %442 = vmatpush1.msra.mxu0 0.0
    %443 = vmatprep.subr.mxu0 0.0
    %444 = vmatpush1.msra.mxu0 0.0
    %445 = vmatprep.subr.mxu0 0.0
    %446 = vmatpush1.msra.mxu0 0.0
    %447 = vmatprep.subr.mxu0 0.0
    %448 = vmatpush1.msra.mxu0 0.0
    %449 = vmatprep.subr.mxu0 0.0
    %450 = vmatpush1.msra.mxu0 0.0
    %451 = vmatprep.subr.mxu0 0.0
    %452 = vmatpush1.msra.mxu0 0.0
    %453 = vmatprep.subr.mxu0 0.0
    %454 = vmatpush1.msra.mxu0 0.0
    %455 = vmatprep.subr.mxu0 0.0
    %456 = vmatpush1.msra.mxu0 0.0
    %457 = vmatprep.subr.mxu0 0.0
    %458 = vmatpush1.msra.mxu0 0.0
    %459 = vmatprep.subr.mxu0 0.0
    %460 = vmatpush1.msra.mxu0 0.0
    %461 = vmatprep.subr.mxu0 0.0
    %462 = vmatpush1.msra.mxu0 0.0
    %463 = vmatprep.subr.mxu0 0.0
    %464 = vmatpush1.msra.mxu0 0.0
    %465 = vmatprep.subr.mxu0 0.0
    %466 = vmatpush1.msra.mxu0 0.0
    %467 = vmatprep.subr.mxu0 0.0
    %468 = vmatpush1.msra.mxu0 0.0
    %469 = vmatprep.subr.mxu0 0.0
    %470 = vmatpush1.msra.mxu0 0.0
    %471 = vmatprep.subr.mxu0 0.0
    %472 = vmatpush1.msra.mxu0 0.0
    %473 = vmatprep.subr.mxu0 0.0
    %474 = vmatpush1.msra.mxu0 0.0
    %475 = vmatprep.subr.mxu0 0.0
    %476 = vmatpush1.msra.mxu0 0.0
    %477 = vmatprep.subr.mxu0 0.0
    %478 = vmatpush1.msra.mxu0 0.0
    %479 = vmatprep.subr.mxu0 0.0
    %480 = vmatpush1.msra.mxu0 0.0
    %481 = vmatprep.subr.mxu0 0.0
    %482 = vmatpush1.msra.mxu0 0.0
    %483 = vmatprep.subr.mxu0 0.0
    %484 = vmatpush1.msra.mxu0 0.0
    %485 = vmatprep.subr.mxu0 0.0
    %486 = vmatpush1.msra.mxu0 0.0
    %487 = vmatprep.mubr.f32.mxu0 0.0
    %488 = vmatmul.mubr.f32.gmra.mrb[0].mxu0 %v327
    %v489 = vpop.f32.mrb[0].mxu0
    %v490 = vadd.f32 0.0, %v489
    %v491 = vpop.f32.mrb[0].mxu0
    %492 = vmatprep.mubr.f32.mxu0 0.0
    %493 = vmatmul.mubr.f32.gmra.mrb[0].mxu0 %v330
    %v494 = vpop.f32.mrb[0].mxu0
    %v495 = vadd.f32 0.0, %v494
    %v496 = vpop.f32.mrb[0].mxu0
    %497 = vmatprep.mubr.f32.mxu0 0.0
    %498 = vmatmul.mubr.f32.gmra.mrb[0].mxu0 %v333
    %v499 = vpop.f32.mrb[0].mxu0
    %v500 = vadd.f32 0.0, %v499
    %v501 = vpop.f32.mrb[0].mxu0
    %502 = vmatprep.mubr.f32.mxu0 0.0
    %503 = vmatmul.mubr.f32.gmra.mrb[0].mxu0 %v336
    %v504 = vpop.f32.mrb[0].mxu0
    %v505 = vadd.f32 0.0, %v504
    %v506 = vpop.f32.mrb[0].mxu0
    %507 = vdwg.mxu0
    %v508 = vmax.f32 %v405, %v490
    %v509 = vmax.f32 %v410, %v495
    %v510 = vmax.f32 %v415, %v500
    %v511 = vmax.f32 %v420, %v505
    %vm512 = vcmask 261120
    %v514 = vsel %vm512, %v321, 0
    %v517 = vsel %vm512, %v322, 0
    %519 = vmatprep.subr.mxu0 0.0
    %520 = vmatpush1.msra.mxu0 %v508
    %521 = vmatprep.subr.mxu0 0.0
    %522 = vmatpush1.msra.mxu0 %v509
    %523 = vmatprep.subr.mxu0 0.0
    %524 = vmatpush1.msra.mxu0 %v510
    %525 = vmatprep.subr.mxu0 0.0
    %526 = vmatpush1.msra.mxu0 %v511
    %527 = vmatprep.subr.mxu0 0.0
    %528 = vmatpush1.msra.mxu0 0.0
    %529 = vmatprep.subr.mxu0 0.0
    %530 = vmatpush1.msra.mxu0 0.0
    %531 = vmatprep.subr.mxu0 0.0
    %532 = vmatpush1.msra.mxu0 0.0
    %533 = vmatprep.subr.mxu0 0.0
    %534 = vmatpush1.msra.mxu0 0.0
    %535 = vmatprep.subr.mxu0 0.0
    %536 = vmatpush1.msra.mxu0 0.0
    %537 = vmatprep.subr.mxu0 0.0
    %538 = vmatpush1.msra.mxu0 0.0
    %539 = vmatprep.subr.mxu0 0.0
    %540 = vmatpush1.msra.mxu0 0.0
    %541 = vmatprep.subr.mxu0 0.0
    %542 = vmatpush1.msra.mxu0 0.0
    %543 = vmatprep.subr.mxu0 0.0
    %544 = vmatpush1.msra.mxu0 0.0
    %545 = vmatprep.subr.mxu0 0.0
    %546 = vmatpush1.msra.mxu0 0.0
    %547 = vmatprep.subr.mxu0 0.0
    %548 = vmatpush1.msra.mxu0 0.0
    %549 = vmatprep.subr.mxu0 0.0
    %550 = vmatpush1.msra.mxu0 0.0
    %551 = vmatprep.subr.mxu0 0.0
    %552 = vmatpush1.msra.mxu0 0.0
    %553 = vmatprep.subr.mxu0 0.0
    %554 = vmatpush1.msra.mxu0 0.0
    %555 = vmatprep.subr.mxu0 0.0
    %556 = vmatpush1.msra.mxu0 0.0
    %557 = vmatprep.subr.mxu0 0.0
    %558 = vmatpush1.msra.mxu0 0.0
    %559 = vmatprep.subr.mxu0 0.0
    %560 = vmatpush1.msra.mxu0 0.0
    %561 = vmatprep.subr.mxu0 0.0
    %562 = vmatpush1.msra.mxu0 0.0
    %563 = vmatprep.subr.mxu0 0.0
    %564 = vmatpush1.msra.mxu0 0.0
    %565 = vmatprep.subr.mxu0 0.0
    %566 = vmatpush1.msra.mxu0 0.0
    %567 = vmatprep.subr.mxu0 0.0
    %568 = vmatpush1.msra.mxu0 0.0
    %569 = vmatprep.subr.mxu0 0.0
    %570 = vmatpush1.msra.mxu0 0.0
    %571 = vmatprep.subr.mxu0 0.0
    %572 = vmatpush1.msra.mxu0 0.0
    %573 = vmatprep.subr.mxu0 0.0
    %574 = vmatpush1.msra.mxu0 0.0
    %575 = vmatprep.subr.mxu0 0.0
    %576 = vmatpush1.msra.mxu0 0.0
    %577 = vmatprep.subr.mxu0 0.0
    %578 = vmatpush1.msra.mxu0 0.0
    %579 = vmatprep.subr.mxu0 0.0
    %580 = vmatpush1.msra.mxu0 0.0
    %581 = vmatprep.subr.mxu0 0.0
    %582 = vmatpush1.msra.mxu0 0.0
    %583 = vmatprep.mubr.f32.mxu0 0.0
    %584 = vmatmul.mubr.f32.gmra.mrb[0].mxu0 %v514
    %v585 = vpop.f32.mrb[0].mxu0
    %v586 = vadd.f32 0.0, %v585
    %v587 = vpop.f32.mrb[0].mxu0
    %588 = vmatprep.mubr.f32.mxu0 0.0
    %589 = vmatmul.mubr.f32.gmra.mrb[0].mxu0 %v517
    %v590 = vpop.f32.mrb[0].mxu0
    %v591 = vadd.f32 0.0, %v590
    %v592 = vpop.f32.mrb[0].mxu0
    %593 = vdwg.mxu0
    %v595 = vsel %vm512, %v323, 0
    %v598 = vsel %vm512, %v324, 0
    %600 = vmatprep.subr.mxu0 0.0
    %601 = vmatpush1.msra.mxu0 %v508
    %602 = vmatprep.subr.mxu0 0.0
    %603 = vmatpush1.msra.mxu0 %v509
    %604 = vmatprep.subr.mxu0 0.0
    %605 = vmatpush1.msra.mxu0 %v510
    %606 = vmatprep.subr.mxu0 0.0
    %607 = vmatpush1.msra.mxu0 %v511
    %608 = vmatprep.subr.mxu0 0.0
    %609 = vmatpush1.msra.mxu0 0.0
    %610 = vmatprep.subr.mxu0 0.0
    %611 = vmatpush1.msra.mxu0 0.0
    %612 = vmatprep.subr.mxu0 0.0
    %613 = vmatpush1.msra.mxu0 0.0
    %614 = vmatprep.subr.mxu0 0.0
    %615 = vmatpush1.msra.mxu0 0.0
    %616 = vmatprep.subr.mxu0 0.0
    %617 = vmatpush1.msra.mxu0 0.0
    %618 = vmatprep.subr.mxu0 0.0
    %619 = vmatpush1.msra.mxu0 0.0
    %620 = vmatprep.subr.mxu0 0.0
    %621 = vmatpush1.msra.mxu0 0.0
    %622 = vmatprep.subr.mxu0 0.0
    %623 = vmatpush1.msra.mxu0 0.0
    %624 = vmatprep.subr.mxu0 0.0
    %625 = vmatpush1.msra.mxu0 0.0
    %626 = vmatprep.subr.mxu0 0.0
    %627 = vmatpush1.msra.mxu0 0.0
    %628 = vmatprep.subr.mxu0 0.0
    %629 = vmatpush1.msra.mxu0 0.0
    %630 = vmatprep.subr.mxu0 0.0
    %631 = vmatpush1.msra.mxu0 0.0
    %632 = vmatprep.subr.mxu0 0.0
    %633 = vmatpush1.msra.mxu0 0.0
    %634 = vmatprep.subr.mxu0 0.0
    %635 = vmatpush1.msra.mxu0 0.0
    %636 = vmatprep.subr.mxu0 0.0
    %637 = vmatpush1.msra.mxu0 0.0
    %638 = vmatprep.subr.mxu0 0.0
    %639 = vmatpush1.msra.mxu0 0.0
    %640 = vmatprep.subr.mxu0 0.0
    %641 = vmatpush1.msra.mxu0 0.0
    %642 = vmatprep.subr.mxu0 0.0
    %643 = vmatpush1.msra.mxu0 0.0
    %644 = vmatprep.subr.mxu0 0.0
    %645 = vmatpush1.msra.mxu0 0.0
    %646 = vmatprep.subr.mxu0 0.0
    %647 = vmatpush1.msra.mxu0 0.0
    %648 = vmatprep.subr.mxu0 0.0
    %649 = vmatpush1.msra.mxu0 0.0
    %650 = vmatprep.subr.mxu0 0.0
    %651 = vmatpush1.msra.mxu0 0.0
    %652 = vmatprep.subr.mxu0 0.0
    %653 = vmatpush1.msra.mxu0 0.0
    %654 = vmatprep.subr.mxu0 0.0
    %655 = vmatpush1.msra.mxu0 0.0
    %656 = vmatprep.subr.mxu0 0.0
    %657 = vmatpush1.msra.mxu0 0.0
    %658 = vmatprep.subr.mxu0 0.0
    %659 = vmatpush1.msra.mxu0 0.0
    %660 = vmatprep.subr.mxu0 0.0
    %661 = vmatpush1.msra.mxu0 0.0
    %662 = vmatprep.subr.mxu0 0.0
    %663 = vmatpush1.msra.mxu0 0.0
    %664 = vmatprep.mubr.f32.mxu0 0.0
    %665 = vmatmul.mubr.f32.gmra.mrb[0].mxu0 %v595
    %v666 = vpop.f32.mrb[0].mxu0
    %v667 = vadd.f32 0.0, %v666
    %v668 = vpop.f32.mrb[0].mxu0
    %669 = vmatprep.mubr.f32.mxu0 0.0
    %670 = vmatmul.mubr.f32.gmra.mrb[0].mxu0 %v598
    %v671 = vpop.f32.mrb[0].mxu0
    %v672 = vadd.f32 0.0, %v671
    %v673 = vpop.f32.mrb[0].mxu0
    %674 = vdwg.mxu0
    %v675 = vmax.f32 %v586, %v667
    %v676 = vmax.f32 %v591, %v672
    %v677 = vld [vmem:[#allocation5] sm:$0xff]
    %vm678 = vcmask 64512
    %v680 = vsel %vm678, %v675, 0
    %v683 = vsel %vm678, %v676, 0
    %685 = vmatprep.subr.mxu0 0.0
    %686 = vmatpush1.msra.mxu0 %v677
    %687 = vmatprep.subr.mxu0 0.0
    %688 = vmatpush1.msra.mxu0 0.0
    %689 = vmatprep.subr.mxu0 0.0
    %690 = vmatpush1.msra.mxu0 0.0
    %691 = vmatprep.subr.mxu0 0.0
    %692 = vmatpush1.msra.mxu0 0.0
    %693 = vmatprep.subr.mxu0 0.0
    %694 = vmatpush1.msra.mxu0 0.0
    %695 = vmatprep.subr.mxu0 0.0
    %696 = vmatpush1.msra.mxu0 0.0
    %697 = vmatprep.subr.mxu0 0.0
    %698 = vmatpush1.msra.mxu0 0.0
    %699 = vmatprep.subr.mxu0 0.0
    %700 = vmatpush1.msra.mxu0 0.0
    %701 = vmatprep.subr.mxu0 0.0
    %702 = vmatpush1.msra.mxu0 0.0
    %703 = vmatprep.subr.mxu0 0.0
    %704 = vmatpush1.msra.mxu0 0.0
    %705 = vmatprep.subr.mxu0 0.0
    %706 = vmatpush1.msra.mxu0 0.0
    %707 = vmatprep.subr.mxu0 0.0
    %708 = vmatpush1.msra.mxu0 0.0
    %709 = vmatprep.subr.mxu0 0.0
    %710 = vmatpush1.msra.mxu0 0.0
    %711 = vmatprep.subr.mxu0 0.0
    %712 = vmatpush1.msra.mxu0 0.0
    %713 = vmatprep.subr.mxu0 0.0
    %714 = vmatpush1.msra.mxu0 0.0
    %715 = vmatprep.subr.mxu0 0.0
    %716 = vmatpush1.msra.mxu0 0.0
    %717 = vmatprep.subr.mxu0 0.0
    %718 = vmatpush1.msra.mxu0 0.0
    %719 = vmatprep.subr.mxu0 0.0
    %720 = vmatpush1.msra.mxu0 0.0
    %721 = vmatprep.subr.mxu0 0.0
    %722 = vmatpush1.msra.mxu0 0.0
    %723 = vmatprep.subr.mxu0 0.0
    %724 = vmatpush1.msra.mxu0 0.0
    %725 = vmatprep.subr.mxu0 0.0
    %726 = vmatpush1.msra.mxu0 0.0
    %727 = vmatprep.subr.mxu0 0.0
    %728 = vmatpush1.msra.mxu0 0.0
    %729 = vmatprep.subr.mxu0 0.0
    %730 = vmatpush1.msra.mxu0 0.0
    %731 = vmatprep.subr.mxu0 0.0
    %732 = vmatpush1.msra.mxu0 0.0
    %733 = vmatprep.subr.mxu0 0.0
    %734 = vmatpush1.msra.mxu0 0.0
    %735 = vmatprep.subr.mxu0 0.0
    %736 = vmatpush1.msra.mxu0 0.0
    %737 = vmatprep.subr.mxu0 0.0
    %738 = vmatpush1.msra.mxu0 0.0
    %739 = vmatprep.subr.mxu0 0.0
    %740 = vmatpush1.msra.mxu0 0.0
    %741 = vmatprep.subr.mxu0 0.0
    %742 = vmatpush1.msra.mxu0 0.0
    %743 = vmatprep.subr.mxu0 0.0
    %744 = vmatpush1.msra.mxu0 0.0
    %745 = vmatprep.subr.mxu0 0.0
    %746 = vmatpush1.msra.mxu0 0.0
    %747 = vmatprep.subr.mxu0 0.0
    %748 = vmatpush1.msra.mxu0 0.0
    %749 = vmatprep.mubr.f32.mxu0 0.0
    %750 = vmatmul.mubr.f32.gmra.mrb[0].mxu0 %v680
    %v751 = vpop.f32.mrb[0].mxu0
    %v752 = vadd.f32 0.0, %v751
    %v753 = vpop.f32.mrb[0].mxu0
    %754 = vmatprep.mubr.f32.mxu0 0.0
    %755 = vmatmul.mubr.f32.gmra.mrb[0].mxu0 %v683
    %v756 = vpop.f32.mrb[0].mxu0
    %v757 = vadd.f32 0.0, %v756
    %v758 = vpop.f32.mrb[0].mxu0
    %759 = vdwg.mxu0
    %v760 = vld [vmem:[#allocation5 + $0x8] sm:$0xff]
    %v761 = vld [vmem:[#allocation5 + $0x10] sm:$0xff]
    %762 = vmatprep.subr.mxu0 0.0
    %763 = vmatpush1.msra.mxu0 %v761
    %764 = vmatprep.subr.mxu0 0.0
    %765 = vmatpush1.msra.mxu0 0.0
    %766 = vmatprep.subr.mxu0 0.0
    %767 = vmatpush1.msra.mxu0 0.0
    %768 = vmatprep.subr.mxu0 0.0
    %769 = vmatpush1.msra.mxu0 0.0
    %770 = vmatprep.subr.mxu0 0.0
    %771 = vmatpush1.msra.mxu0 0.0
    %772 = vmatprep.subr.mxu0 0.0
    %773 = vmatpush1.msra.mxu0 0.0
    %774 = vmatprep.subr.mxu0 0.0
    %775 = vmatpush1.msra.mxu0 0.0
    %776 = vmatprep.subr.mxu0 0.0
    %777 = vmatpush1.msra.mxu0 0.0
    %778 = vmatprep.subr.mxu0 0.0
    %779 = vmatpush1.msra.mxu0 0.0
    %780 = vmatprep.subr.mxu0 0.0
    %781 = vmatpush1.msra.mxu0 0.0
    %782 = vmatprep.subr.mxu0 0.0
    %783 = vmatpush1.msra.mxu0 0.0
    %784 = vmatprep.subr.mxu0 0.0
    %785 = vmatpush1.msra.mxu0 0.0
    %786 = vmatprep.subr.mxu0 0.0
    %787 = vmatpush1.msra.mxu0 0.0
    %788 = vmatprep.subr.mxu0 0.0
    %789 = vmatpush1.msra.mxu0 0.0
    %790 = vmatprep.subr.mxu0 0.0
    %791 = vmatpush1.msra.mxu0 0.0
    %792 = vmatprep.subr.mxu0 0.0
    %793 = vmatpush1.msra.mxu0 0.0
    %794 = vmatprep.subr.mxu0 0.0
    %795 = vmatpush1.msra.mxu0 0.0
    %796 = vmatprep.subr.mxu0 0.0
    %797 = vmatpush1.msra.mxu0 0.0
    %798 = vmatprep.subr.mxu0 0.0
    %799 = vmatpush1.msra.mxu0 0.0
    %800 = vmatprep.subr.mxu0 0.0
    %801 = vmatpush1.msra.mxu0 0.0
    %802 = vmatprep.subr.mxu0 0.0
    %803 = vmatpush1.msra.mxu0 0.0
    %804 = vmatprep.subr.mxu0 0.0
    %805 = vmatpush1.msra.mxu0 0.0
    %806 = vmatprep.subr.mxu0 0.0
    %807 = vmatpush1.msra.mxu0 0.0
    %808 = vmatprep.subr.mxu0 0.0
    %809 = vmatpush1.msra.mxu0 0.0
    %810 = vmatprep.subr.mxu0 0.0
    %811 = vmatpush1.msra.mxu0 0.0
    %812 = vmatprep.subr.mxu0 0.0
    %813 = vmatpush1.msra.mxu0 0.0
    %814 = vmatprep.subr.mxu0 0.0
    %815 = vmatpush1.msra.mxu0 0.0
    %816 = vmatprep.subr.mxu0 0.0
    %817 = vmatpush1.msra.mxu0 0.0
    %818 = vmatprep.subr.mxu0 0.0
    %819 = vmatpush1.msra.mxu0 0.0
    %820 = vmatprep.subr.mxu0 0.0
    %821 = vmatpush1.msra.mxu0 0.0
    %822 = vmatprep.subr.mxu0 0.0
    %823 = vmatpush1.msra.mxu0 0.0
    %824 = vmatprep.subr.mxu0 0.0
    %825 = vmatpush1.msra.mxu0 0.0
    %826 = vmatprep.mubr.f32.mxu0 0.0
    %827 = vmatmul.mubr.f32.gmra.mrb[0].mxu0 %v680
    %v828 = vpop.f32.mrb[0].mxu0
    %v829 = vadd.f32 0.0, %v828
    %v830 = vpop.f32.mrb[0].mxu0
    %831 = vmatprep.mubr.f32.mxu0 0.0
    %832 = vmatmul.mubr.f32.gmra.mrb[0].mxu0 %v683
    %v833 = vpop.f32.mrb[0].mxu0
    %v834 = vadd.f32 0.0, %v833
    %v835 = vpop.f32.mrb[0].mxu0
    %836 = vdwg.mxu0
    %v838 = vsel %vm325, %v307, 0
    %v841 = vsel %vm325, %v308, 0
    %843 = vmatprep.subr.mxu0 0.0
    %844 = vmatpush1.msra.mxu0 %v752
    %845 = vmatprep.subr.mxu0 0.0
    %846 = vmatpush1.msra.mxu0 %v757
    %847 = vmatprep.subr.mxu0 0.0
    %848 = vmatpush1.msra.mxu0 0.0
    %849 = vmatprep.subr.mxu0 0.0
    %850 = vmatpush1.msra.mxu0 0.0
    %851 = vmatprep.subr.mxu0 0.0
    %852 = vmatpush1.msra.mxu0 0.0
    %853 = vmatprep.subr.mxu0 0.0
    %854 = vmatpush1.msra.mxu0 0.0
    %855 = vmatprep.subr.mxu0 0.0
    %856 = vmatpush1.msra.mxu0 0.0
    %857 = vmatprep.subr.mxu0 0.0
    %858 = vmatpush1.msra.mxu0 0.0
    %859 = vmatprep.subr.mxu0 0.0
    %860 = vmatpush1.msra.mxu0 0.0
    %861 = vmatprep.subr.mxu0 0.0
    %862 = vmatpush1.msra.mxu0 0.0
    %863 = vmatprep.subr.mxu0 0.0
    %864 = vmatpush1.msra.mxu0 0.0
    %865 = vmatprep.subr.mxu0 0.0
    %866 = vmatpush1.msra.mxu0 0.0
    %867 = vmatprep.subr.mxu0 0.0
    %868 = vmatpush1.msra.mxu0 0.0
    %869 = vmatprep.subr.mxu0 0.0
    %870 = vmatpush1.msra.mxu0 0.0
    %871 = vmatprep.subr.mxu0 0.0
    %872 = vmatpush1.msra.mxu0 0.0
    %873 = vmatprep.subr.mxu0 0.0
    %874 = vmatpush1.msra.mxu0 0.0
    %875 = vmatprep.subr.mxu0 0.0
    %876 = vmatpush1.msra.mxu0 0.0
    %877 = vmatprep.subr.mxu0 0.0
    %878 = vmatpush1.msra.mxu0 0.0
    %879 = vmatprep.subr.mxu0 0.0
    %880 = vmatpush1.msra.mxu0 0.0
    %881 = vmatprep.subr.mxu0 0.0
    %882 = vmatpush1.msra.mxu0 0.0
    %883 = vmatprep.subr.mxu0 0.0
    %884 = vmatpush1.msra.mxu0 0.0
    %885 = vmatprep.subr.mxu0 0.0
    %886 = vmatpush1.msra.mxu0 0.0
    %887 = vmatprep.subr.mxu0 0.0
    %888 = vmatpush1.msra.mxu0 0.0
    %889 = vmatprep.subr.mxu0 0.0
    %890 = vmatpush1.msra.mxu0 0.0
    %891 = vmatprep.subr.mxu0 0.0
    %892 = vmatpush1.msra.mxu0 0.0
    %893 = vmatprep.subr.mxu0 0.0
    %894 = vmatpush1.msra.mxu0 0.0
    %895 = vmatprep.subr.mxu0 0.0
    %896 = vmatpush1.msra.mxu0 0.0
    %897 = vmatprep.subr.mxu0 0.0
    %898 = vmatpush1.msra.mxu0 0.0
    %899 = vmatprep.subr.mxu0 0.0
    %900 = vmatpush1.msra.mxu0 0.0
    %901 = vmatprep.subr.mxu0 0.0
    %902 = vmatpush1.msra.mxu0 0.0
    %903 = vmatprep.subr.mxu0 0.0
    %904 = vmatpush1.msra.mxu0 0.0
    %905 = vmatprep.subr.mxu0 0.0
    %906 = vmatpush1.msra.mxu0 0.0
    %907 = vmatprep.mubr.f32.mxu0 0.0
    %908 = vmatmul.mubr.f32.gmra.mrb[0].mxu0 %v838
    %v909 = vpop.f32.mrb[0].mxu0
    %v910 = vadd.f32 0.0, %v909
    %v911 = vpop.f32.mrb[0].mxu0
    %912 = vmatprep.mubr.f32.mxu0 0.0
    %913 = vmatmul.mubr.f32.gmra.mrb[0].mxu0 %v841
    %v914 = vpop.f32.mrb[0].mxu0
    %v915 = vadd.f32 0.0, %v914
    %v916 = vpop.f32.mrb[0].mxu0
    %917 = vdwg.mxu0
    %918 = vmatprep.subr.mxu0 0.0
    %919 = vmatpush1.msra.mxu0 %v760
    %920 = vmatprep.subr.mxu0 0.0
    %921 = vmatpush1.msra.mxu0 0.0
    %922 = vmatprep.subr.mxu0 0.0
    %923 = vmatpush1.msra.mxu0 0.0
    %924 = vmatprep.subr.mxu0 0.0
    %925 = vmatpush1.msra.mxu0 0.0
    %926 = vmatprep.subr.mxu0 0.0
    %927 = vmatpush1.msra.mxu0 0.0
    %928 = vmatprep.subr.mxu0 0.0
    %929 = vmatpush1.msra.mxu0 0.0
    %930 = vmatprep.subr.mxu0 0.0
    %931 = vmatpush1.msra.mxu0 0.0
    %932 = vmatprep.subr.mxu0 0.0
    %933 = vmatpush1.msra.mxu0 0.0
    %934 = vmatprep.subr.mxu0 0.0
    %935 = vmatpush1.msra.mxu0 0.0
    %936 = vmatprep.subr.mxu0 0.0
    %937 = vmatpush1.msra.mxu0 0.0
    %938 = vmatprep.subr.mxu0 0.0
    %939 = vmatpush1.msra.mxu0 0.0
    %940 = vmatprep.subr.mxu0 0.0
    %941 = vmatpush1.msra.mxu0 0.0
    %942 = vmatprep.subr.mxu0 0.0
    %943 = vmatpush1.msra.mxu0 0.0
    %944 = vmatprep.subr.mxu0 0.0
    %945 = vmatpush1.msra.mxu0 0.0
    %946 = vmatprep.subr.mxu0 0.0
    %947 = vmatpush1.msra.mxu0 0.0
    %948 = vmatprep.subr.mxu0 0.0
    %949 = vmatpush1.msra.mxu0 0.0
    %950 = vmatprep.subr.mxu0 0.0
    %951 = vmatpush1.msra.mxu0 0.0
    %952 = vmatprep.subr.mxu0 0.0
    %953 = vmatpush1.msra.mxu0 0.0
    %954 = vmatprep.subr.mxu0 0.0
    %955 = vmatpush1.msra.mxu0 0.0
    %956 = vmatprep.subr.mxu0 0.0
    %957 = vmatpush1.msra.mxu0 0.0
    %958 = vmatprep.subr.mxu0 0.0
    %959 = vmatpush1.msra.mxu0 0.0
    %960 = vmatprep.subr.mxu0 0.0
    %961 = vmatpush1.msra.mxu0 0.0
    %962 = vmatprep.subr.mxu0 0.0
    %963 = vmatpush1.msra.mxu0 0.0
    %964 = vmatprep.subr.mxu0 0.0
    %965 = vmatpush1.msra.mxu0 0.0
    %966 = vmatprep.subr.mxu0 0.0
    %967 = vmatpush1.msra.mxu0 0.0
    %968 = vmatprep.subr.mxu0 0.0
    %969 = vmatpush1.msra.mxu0 0.0
    %970 = vmatprep.subr.mxu0 0.0
    %971 = vmatpush1.msra.mxu0 0.0
    %972 = vmatprep.subr.mxu0 0.0
    %973 = vmatpush1.msra.mxu0 0.0
    %974 = vmatprep.subr.mxu0 0.0
    %975 = vmatpush1.msra.mxu0 0.0
    %976 = vmatprep.subr.mxu0 0.0
    %977 = vmatpush1.msra.mxu0 0.0
    %978 = vmatprep.subr.mxu0 0.0
    %979 = vmatpush1.msra.mxu0 0.0
    %980 = vmatprep.subr.mxu0 0.0
    %981 = vmatpush1.msra.mxu0 0.0
    %982 = vmatprep.mubr.f32.mxu0 0.0
    %983 = vmatmul.mubr.f32.gmra.mrb[0].mxu0 %v680
    %v984 = vpop.f32.mrb[0].mxu0
    %v985 = vadd.f32 %v910, %v984
    %v986 = vpop.f32.mrb[0].mxu0
    %987 = vmatprep.mubr.f32.mxu0 0.0
    %988 = vmatmul.mubr.f32.gmra.mrb[0].mxu0 %v683
    %v989 = vpop.f32.mrb[0].mxu0
    %v990 = vadd.f32 %v915, %v989
    %v991 = vpop.f32.mrb[0].mxu0
    %992 = vdwg.mxu0
    %v994 = vsel %vm325, %v309, 0
    %v997 = vsel %vm325, %v310, 0
    %999 = vmatprep.subr.mxu0 0.0
    %1000 = vmatpush1.msra.mxu0 %v829
    %1001 = vmatprep.subr.mxu0 0.0
    %1002 = vmatpush1.msra.mxu0 %v834
    %1003 = vmatprep.subr.mxu0 0.0
    %1004 = vmatpush1.msra.mxu0 0.0
    %1005 = vmatprep.subr.mxu0 0.0
    %1006 = vmatpush1.msra.mxu0 0.0
    %1007 = vmatprep.subr.mxu0 0.0
    %1008 = vmatpush1.msra.mxu0 0.0
    %1009 = vmatprep.subr.mxu0 0.0
    %1010 = vmatpush1.msra.mxu0 0.0
    %1011 = vmatprep.subr.mxu0 0.0
    %1012 = vmatpush1.msra.mxu0 0.0
    %1013 = vmatprep.subr.mxu0 0.0
    %1014 = vmatpush1.msra.mxu0 0.0
    %1015 = vmatprep.subr.mxu0 0.0
    %1016 = vmatpush1.msra.mxu0 0.0
    %1017 = vmatprep.subr.mxu0 0.0
    %1018 = vmatpush1.msra.mxu0 0.0
    %1019 = vmatprep.subr.mxu0 0.0
    %1020 = vmatpush1.msra.mxu0 0.0
    %1021 = vmatprep.subr.mxu0 0.0
    %1022 = vmatpush1.msra.mxu0 0.0
    %1023 = vmatprep.subr.mxu0 0.0
    %1024 = vmatpush1.msra.mxu0 0.0
    %1025 = vmatprep.subr.mxu0 0.0
    %1026 = vmatpush1.msra.mxu0 0.0
    %1027 = vmatprep.subr.mxu0 0.0
    %1028 = vmatpush1.msra.mxu0 0.0
    %1029 = vmatprep.subr.mxu0 0.0
    %1030 = vmatpush1.msra.mxu0 0.0
    %1031 = vmatprep.subr.mxu0 0.0
    %1032 = vmatpush1.msra.mxu0 0.0
    %1033 = vmatprep.subr.mxu0 0.0
    %1034 = vmatpush1.msra.mxu0 0.0
    %1035 = vmatprep.subr.mxu0 0.0
    %1036 = vmatpush1.msra.mxu0 0.0
    %1037 = vmatprep.subr.mxu0 0.0
    %1038 = vmatpush1.msra.mxu0 0.0
    %1039 = vmatprep.subr.mxu0 0.0
    %1040 = vmatpush1.msra.mxu0 0.0
    %1041 = vmatprep.subr.mxu0 0.0
    %1042 = vmatpush1.msra.mxu0 0.0
    %1043 = vmatprep.subr.mxu0 0.0
    %1044 = vmatpush1.msra.mxu0 0.0
    %1045 = vmatprep.subr.mxu0 0.0
    %1046 = vmatpush1.msra.mxu0 0.0
    %1047 = vmatprep.subr.mxu0 0.0
    %1048 = vmatpush1.msra.mxu0 0.0
    %1049 = vmatprep.subr.mxu0 0.0
    %1050 = vmatpush1.msra.mxu0 0.0
    %1051 = vmatprep.subr.mxu0 0.0
    %1052 = vmatpush1.msra.mxu0 0.0
    %1053 = vmatprep.subr.mxu0 0.0
    %1054 = vmatpush1.msra.mxu0 0.0
    %1055 = vmatprep.subr.mxu0 0.0
    %1056 = vmatpush1.msra.mxu0 0.0
    %1057 = vmatprep.subr.mxu0 0.0
    %1058 = vmatpush1.msra.mxu0 0.0
    %1059 = vmatprep.subr.mxu0 0.0
    %1060 = vmatpush1.msra.mxu0 0.0
    %1061 = vmatprep.subr.mxu0 0.0
    %1062 = vmatpush1.msra.mxu0 0.0
    %1063 = vmatprep.mubr.f32.mxu0 0.0
    %1064 = vmatmul.mubr.f32.gmra.mrb[0].mxu0 %v994
    %v1065 = vpop.f32.mrb[0].mxu0
    %v1066 = vadd.f32 0.0, %v1065
    %v1067 = vpop.f32.mrb[0].mxu0
    %1068 = vmatprep.mubr.f32.mxu0 0.0
    %1069 = vmatmul.mubr.f32.gmra.mrb[0].mxu0 %v997
    %v1070 = vpop.f32.mrb[0].mxu0
    %v1071 = vadd.f32 0.0, %v1070
    %v1072 = vpop.f32.mrb[0].mxu0
    %1073 = vdwg.mxu0
    %v1074 = vadd.f32 %v985, %v1066
    %v1075 = vadd.f32 %v990, %v1071
    %v1076 = vld [vmem:[#allocation7] sm:$0x1]
    %v1077 = vlaneseq
    %v1078 = vshrl.u32 %v1077, 7
    %v1079 = vsub.s32 0, %v1078
    %v1080 = vrot.slane %v1076, %v1079
    %v1081 = vmul.f32 %v1074, %v1080
    %v1082 = vmul.f32 %v1075, %v1080
    %v1083 = vld [vmem:[#allocation7 + $0x6] sm:$0x1]
    %v1084 = vlaneseq
    %v1085 = vshrl.u32 %v1084, 7
    %v1086 = vsub.s32 0, %v1085
    %v1087 = vrot.slane %v1083, %v1086
    %v1088 = vadd.f32 %v1081, %v1087
    %v1089 = vadd.f32 %v1082, %v1087
    %v1090 = vmax.f32 %v1088, 0.0
    %v1091 = vmax.f32 %v1089, 0.0
    %v1092 = vld [vmem:[#allocation5 + $0x18] sm:$0xff]
    %v1093 = vld [vmem:[#allocation5 + $0x20] sm:$0xff]
    %v1094 = vld [vmem:[#allocation5 + $0x28] sm:$0xff]
    %v1095 = vld [vmem:[#allocation5 + $0x30] sm:$0xff]
    %v1096 = vld [vmem:[#allocation5 + $0x38] sm:$0xff]
    %v1097 = vld [vmem:[#allocation5 + $0x40] sm:$0xff]
    %v1098 = vld [vmem:[#allocation5 + $0x48] sm:$0xff]
    %v1099 = vld [vmem:[#allocation5 + $0x50] sm:$0xff]
    %vm1100 = vcmask 523264
    %v1102 = vsel %vm1100, %v1090, 0
    %v1105 = vsel %vm1100, %v1091, 0
    %1107 = vmatprep.subr.mxu0 0.0
    %1108 = vmatpush1.msra.mxu0 %v1092
    %1109 = vmatprep.subr.mxu0 0.0
    %1110 = vmatpush1.msra.mxu0 %v1093
    %1111 = vmatprep.subr.mxu0 0.0
    %1112 = vmatpush1.msra.mxu0 %v1094
    %1113 = vmatprep.subr.mxu0 0.0
    %1114 = vmatpush1.msra.mxu0 %v1095
    %1115 = vmatprep.subr.mxu0 0.0
    %1116 = vmatpush1.msra.mxu0 %v1096
    %1117 = vmatprep.subr.mxu0 0.0
    %1118 = vmatpush1.msra.mxu0 %v1097
    %1119 = vmatprep.subr.mxu0 0.0
    %1120 = vmatpush1.msra.mxu0 %v1098
    %1121 = vmatprep.subr.mxu0 0.0
    %1122 = vmatpush1.msra.mxu0 %v1099
    %1123 = vmatprep.subr.mxu0 0.0
    %1124 = vmatpush1.msra.mxu0 0.0
    %1125 = vmatprep.subr.mxu0 0.0
    %1126 = vmatpush1.msra.mxu0 0.0
    %1127 = vmatprep.subr.mxu0 0.0
    %1128 = vmatpush1.msra.mxu0 0.0
    %1129 = vmatprep.subr.mxu0 0.0
    %1130 = vmatpush1.msra.mxu0 0.0
    %1131 = vmatprep.subr.mxu0 0.0
    %1132 = vmatpush1.msra.mxu0 0.0
    %1133 = vmatprep.subr.mxu0 0.0
    %1134 = vmatpush1.msra.mxu0 0.0
    %1135 = vmatprep.subr.mxu0 0.0
    %1136 = vmatpush1.msra.mxu0 0.0
    %1137 = vmatprep.subr.mxu0 0.0
    %1138 = vmatpush1.msra.mxu0 0.0
    %1139 = vmatprep.subr.mxu0 0.0
    %1140 = vmatpush1.msra.mxu0 0.0
    %1141 = vmatprep.subr.mxu0 0.0
    %1142 = vmatpush1.msra.mxu0 0.0
    %1143 = vmatprep.subr.mxu0 0.0
    %1144 = vmatpush1.msra.mxu0 0.0
    %1145 = vmatprep.subr.mxu0 0.0
    %1146 = vmatpush1.msra.mxu0 0.0
    %1147 = vmatprep.subr.mxu0 0.0
    %1148 = vmatpush1.msra.mxu0 0.0
    %1149 = vmatprep.subr.mxu0 0.0
    %1150 = vmatpush1.msra.mxu0 0.0
    %1151 = vmatprep.subr.mxu0 0.0
    %1152 = vmatpush1.msra.mxu0 0.0
    %1153 = vmatprep.subr.mxu0 0.0
    %1154 = vmatpush1.msra.mxu0 0.0
    %1155 = vmatprep.subr.mxu0 0.0
    %1156 = vmatpush1.msra.mxu0 0.0
    %1157 = vmatprep.subr.mxu0 0.0
    %1158 = vmatpush1.msra.mxu0 0.0
    %1159 = vmatprep.subr.mxu0 0.0
    %1160 = vmatpush1.msra.mxu0 0.0
    %1161 = vmatprep.subr.mxu0 0.0
    %1162 = vmatpush1.msra.mxu0 0.0
    %1163 = vmatprep.subr.mxu0 0.0
    %1164 = vmatpush1.msra.mxu0 0.0
    %1165 = vmatprep.subr.mxu0 0.0
    %1166 = vmatpush1.msra.mxu0 0.0
    %1167 = vmatprep.subr.mxu0 0.0
    %1168 = vmatpush1.msra.mxu0 0.0
    %1169 = vmatprep.subr.mxu0 0.0
    %1170 = vmatpush1.msra.mxu0 0.0
    %1171 = vmatprep.mubr.f32.mxu0 0.0
    %1172 = vmatmul.mubr.f32.gmra.mrb[0].mxu0 %v1102
    %v1173 = vpop.f32.mrb[0].mxu0
    %v1174 = vadd.f32 0.0, %v1173
    %v1175 = vpop.f32.mrb[0].mxu0
    %1176 = vmatprep.mubr.f32.mxu0 0.0
    %1177 = vmatmul.mubr.f32.gmra.mrb[0].mxu0 %v1105
    %v1178 = vpop.f32.mrb[0].mxu0
    %v1179 = vadd.f32 0.0, %v1178
    %v1180 = vpop.f32.mrb[0].mxu0
    %1181 = vdwg.mxu0
    %v1182 = vld [vmem:[#allocation5 + $0x58] sm:$0xff]
    %v1183 = vld [vmem:[#allocation5 + $0x60] sm:$0xff]
    %v1184 = vld [vmem:[#allocation5 + $0x68] sm:$0xff]
    %v1185 = vld [vmem:[#allocation5 + $0x70] sm:$0xff]
    %v1186 = vld [vmem:[#allocation5 + $0x78] sm:$0xff]
    %v1187 = vld [vmem:[#allocation5 + $0x80] sm:$0xff]
    %v1188 = vld [vmem:[#allocation5 + $0x88] sm:$0xff]
    %v1189 = vld [vmem:[#allocation5 + $0x90] sm:$0xff]
    %v1190 = vld [vmem:[#allocation5 + $0x98] sm:$0xff]
    %v1191 = vld [vmem:[#allocation5 + $0xa0] sm:$0xff]
    %v1192 = vld [vmem:[#allocation5 + $0xa8] sm:$0xff]
    %v1193 = vld [vmem:[#allocation5 + $0xb0] sm:$0xff]
    %v1194 = vld [vmem:[#allocation5 + $0xb8] sm:$0xff]
    %v1195 = vld [vmem:[#allocation5 + $0xc0] sm:$0xff]
    %v1196 = vld [vmem:[#allocation5 + $0xc8] sm:$0xff]
    %v1197 = vld [vmem:[#allocation5 + $0xd0] sm:$0xff]
    %1198 = vmatprep.subr.mxu0 0.0
    %1199 = vmatpush1.msra.mxu0 %v1190
    %1200 = vmatprep.subr.mxu0 0.0
    %1201 = vmatpush1.msra.mxu0 %v1191
    %1202 = vmatprep.subr.mxu0 0.0
    %1203 = vmatpush1.msra.mxu0 %v1192
    %1204 = vmatprep.subr.mxu0 0.0
    %1205 = vmatpush1.msra.mxu0 %v1193
    %1206 = vmatprep.subr.mxu0 0.0
    %1207 = vmatpush1.msra.mxu0 %v1194
    %1208 = vmatprep.subr.mxu0 0.0
    %1209 = vmatpush1.msra.mxu0 %v1195
    %1210 = vmatprep.subr.mxu0 0.0
    %1211 = vmatpush1.msra.mxu0 %v1196
    %1212 = vmatprep.subr.mxu0 0.0
    %1213 = vmatpush1.msra.mxu0 %v1197
    %1214 = vmatprep.subr.mxu0 0.0
    %1215 = vmatpush1.msra.mxu0 0.0
    %1216 = vmatprep.subr.mxu0 0.0
    %1217 = vmatpush1.msra.mxu0 0.0
    %1218 = vmatprep.subr.mxu0 0.0
    %1219 = vmatpush1.msra.mxu0 0.0
    %1220 = vmatprep.subr.mxu0 0.0
    %1221 = vmatpush1.msra.mxu0 0.0
    %1222 = vmatprep.subr.mxu0 0.0
    %1223 = vmatpush1.msra.mxu0 0.0
    %1224 = vmatprep.subr.mxu0 0.0
    %1225 = vmatpush1.msra.mxu0 0.0
    %1226 = vmatprep.subr.mxu0 0.0
    %1227 = vmatpush1.msra.mxu0 0.0
    %1228 = vmatprep.subr.mxu0 0.0
    %1229 = vmatpush1.msra.mxu0 0.0
    %1230 = vmatprep.subr.mxu0 0.0
    %1231 = vmatpush1.msra.mxu0 0.0
    %1232 = vmatprep.subr.mxu0 0.0
    %1233 = vmatpush1.msra.mxu0 0.0
    %1234 = vmatprep.subr.mxu0 0.0
    %1235 = vmatpush1.msra.mxu0 0.0
    %1236 = vmatprep.subr.mxu0 0.0
    %1237 = vmatpush1.msra.mxu0 0.0
    %1238 = vmatprep.subr.mxu0 0.0
    %1239 = vmatpush1.msra.mxu0 0.0
    %1240 = vmatprep.subr.mxu0 0.0
    %1241 = vmatpush1.msra.mxu0 0.0
    %1242 = vmatprep.subr.mxu0 0.0
    %1243 = vmatpush1.msra.mxu0 0.0
    %1244 = vmatprep.subr.mxu0 0.0
    %1245 = vmatpush1.msra.mxu0 0.0
    %1246 = vmatprep.subr.mxu0 0.0
    %1247 = vmatpush1.msra.mxu0 0.0
    %1248 = vmatprep.subr.mxu0 0.0
    %1249 = vmatpush1.msra.mxu0 0.0
    %1250 = vmatprep.subr.mxu0 0.0
    %1251 = vmatpush1.msra.mxu0 0.0
    %1252 = vmatprep.subr.mxu0 0.0
    %1253 = vmatpush1.msra.mxu0 0.0
    %1254 = vmatprep.subr.mxu0 0.0
    %1255 = vmatpush1.msra.mxu0 0.0
    %1256 = vmatprep.subr.mxu0 0.0
    %1257 = vmatpush1.msra.mxu0 0.0
    %1258 = vmatprep.subr.mxu0 0.0
    %1259 = vmatpush1.msra.mxu0 0.0
    %1260 = vmatprep.subr.mxu0 0.0
    %1261 = vmatpush1.msra.mxu0 0.0
    %1262 = vmatprep.mubr.f32.mxu0 0.0
    %1263 = vmatmul.mubr.f32.gmra.mrb[0].mxu0 %v1102
    %v1264 = vpop.f32.mrb[0].mxu0
    %v1265 = vadd.f32 0.0, %v1264
    %v1266 = vpop.f32.mrb[0].mxu0
    %1267 = vmatprep.mubr.f32.mxu0 0.0
    %1268 = vmatmul.mubr.f32.gmra.mrb[0].mxu0 %v1105
    %v1269 = vpop.f32.mrb[0].mxu0
    %v1270 = vadd.f32 0.0, %v1269
    %v1271 = vpop.f32.mrb[0].mxu0
    %1272 = vdwg.mxu0
    %1273 = vmatprep.subr.mxu0 0.0
    %1274 = vmatpush1.msra.mxu0 %v1174
    %1275 = vmatprep.subr.mxu0 0.0
    %1276 = vmatpush1.msra.mxu0 %v1179
    %1277 = vmatprep.subr.mxu0 0.0
    %1278 = vmatpush1.msra.mxu0 0.0
    %1279 = vmatprep.subr.mxu0 0.0
    %1280 = vmatpush1.msra.mxu0 0.0
    %1281 = vmatprep.subr.mxu0 0.0
    %1282 = vmatpush1.msra.mxu0 0.0
    %1283 = vmatprep.subr.mxu0 0.0
    %1284 = vmatpush1.msra.mxu0 0.0
    %1285 = vmatprep.subr.mxu0 0.0
    %1286 = vmatpush1.msra.mxu0 0.0
    %1287 = vmatprep.subr.mxu0 0.0
    %1288 = vmatpush1.msra.mxu0 0.0
    %1289 = vmatprep.subr.mxu0 0.0
    %1290 = vmatpush1.msra.mxu0 0.0
    %1291 = vmatprep.subr.mxu0 0.0
    %1292 = vmatpush1.msra.mxu0 0.0
    %1293 = vmatprep.subr.mxu0 0.0
    %1294 = vmatpush1.msra.mxu0 0.0
    %1295 = vmatprep.subr.mxu0 0.0
    %1296 = vmatpush1.msra.mxu0 0.0
    %1297 = vmatprep.subr.mxu0 0.0
    %1298 = vmatpush1.msra.mxu0 0.0
    %1299 = vmatprep.subr.mxu0 0.0
    %1300 = vmatpush1.msra.mxu0 0.0
    %1301 = vmatprep.subr.mxu0 0.0
    %1302 = vmatpush1.msra.mxu0 0.0
    %1303 = vmatprep.subr.mxu0 0.0
    %1304 = vmatpush1.msra.mxu0 0.0
    %1305 = vmatprep.subr.mxu0 0.0
    %1306 = vmatpush1.msra.mxu0 0.0
    %1307 = vmatprep.subr.mxu0 0.0
    %1308 = vmatpush1.msra.mxu0 0.0
    %1309 = vmatprep.subr.mxu0 0.0
    %1310 = vmatpush1.msra.mxu0 0.0
    %1311 = vmatprep.subr.mxu0 0.0
    %1312 = vmatpush1.msra.mxu0 0.0
    %1313 = vmatprep.subr.mxu0 0.0
    %1314 = vmatpush1.msra.mxu0 0.0
    %1315 = vmatprep.subr.mxu0 0.0
    %1316 = vmatpush1.msra.mxu0 0.0
    %1317 = vmatprep.subr.mxu0 0.0
    %1318 = vmatpush1.msra.mxu0 0.0
    %1319 = vmatprep.subr.mxu0 0.0
    %1320 = vmatpush1.msra.mxu0 0.0
    %1321 = vmatprep.subr.mxu0 0.0
    %1322 = vmatpush1.msra.mxu0 0.0
    %1323 = vmatprep.subr.mxu0 0.0
    %1324 = vmatpush1.msra.mxu0 0.0
    %1325 = vmatprep.subr.mxu0 0.0
    %1326 = vmatpush1.msra.mxu0 0.0
    %1327 = vmatprep.subr.mxu0 0.0
    %1328 = vmatpush1.msra.mxu0 0.0
    %1329 = vmatprep.subr.mxu0 0.0
    %1330 = vmatpush1.msra.mxu0 0.0
    %1331 = vmatprep.subr.mxu0 0.0
    %1332 = vmatpush1.msra.mxu0 0.0
    %1333 = vmatprep.subr.mxu0 0.0
    %1334 = vmatpush1.msra.mxu0 0.0
    %1335 = vmatprep.subr.mxu0 0.0
    %1336 = vmatpush1.msra.mxu0 0.0
    %1337 = vmatprep.mubr.f32.mxu0 0.0
    %1338 = vmatmul.mubr.f32.gmra.mrb[0].mxu0 %v838
    %v1339 = vpop.f32.mrb[0].mxu0
    %v1340 = vadd.f32 0.0, %v1339
    %v1341 = vpop.f32.mrb[0].mxu0
    %1342 = vmatprep.mubr.f32.mxu0 0.0
    %1343 = vmatmul.mubr.f32.gmra.mrb[0].mxu0 %v841
    %v1344 = vpop.f32.mrb[0].mxu0
    %v1345 = vadd.f32 0.0, %v1344
    %v1346 = vpop.f32.mrb[0].mxu0
    %1347 = vdwg.mxu0
    %1348 = vmatprep.subr.mxu0 0.0
    %1349 = vmatpush1.msra.mxu0 %v1182
    %1350 = vmatprep.subr.mxu0 0.0
    %1351 = vmatpush1.msra.mxu0 %v1183
    %1352 = vmatprep.subr.mxu0 0.0
    %1353 = vmatpush1.msra.mxu0 %v1184
    %1354 = vmatprep.subr.mxu0 0.0
    %1355 = vmatpush1.msra.mxu0 %v1185
    %1356 = vmatprep.subr.mxu0 0.0
    %1357 = vmatpush1.msra.mxu0 %v1186
    %1358 = vmatprep.subr.mxu0 0.0
    %1359 = vmatpush1.msra.mxu0 %v1187
    %1360 = vmatprep.subr.mxu0 0.0
    %1361 = vmatpush1.msra.mxu0 %v1188
    %1362 = vmatprep.subr.mxu0 0.0
    %1363 = vmatpush1.msra.mxu0 %v1189
    %1364 = vmatprep.subr.mxu0 0.0
    %1365 = vmatpush1.msra.mxu0 0.0
    %1366 = vmatprep.subr.mxu0 0.0
    %1367 = vmatpush1.msra.mxu0 0.0
    %1368 = vmatprep.subr.mxu0 0.0
    %1369 = vmatpush1.msra.mxu0 0.0
    %1370 = vmatprep.subr.mxu0 0.0
    %1371 = vmatpush1.msra.mxu0 0.0
    %1372 = vmatprep.subr.mxu0 0.0
    %1373 = vmatpush1.msra.mxu0 0.0
    %1374 = vmatprep.subr.mxu0 0.0
    %1375 = vmatpush1.msra.mxu0 0.0
    %1376 = vmatprep.subr.mxu0 0.0
    %1377 = vmatpush1.msra.mxu0 0.0
    %1378 = vmatprep.subr.mxu0 0.0
    %1379 = vmatpush1.msra.mxu0 0.0
    %1380 = vmatprep.subr.mxu0 0.0
    %1381 = vmatpush1.msra.mxu0 0.0
    %1382 = vmatprep.subr.mxu0 0.0
    %1383 = vmatpush1.msra.mxu0 0.0
    %1384 = vmatprep.subr.mxu0 0.0
    %1385 = vmatpush1.msra.mxu0 0.0
    %1386 = vmatprep.subr.mxu0 0.0
    %1387 = vmatpush1.msra.mxu0 0.0
    %1388 = vmatprep.subr.mxu0 0.0
    %1389 = vmatpush1.msra.mxu0 0.0
    %1390 = vmatprep.subr.mxu0 0.0
    %1391 = vmatpush1.msra.mxu0 0.0
    %1392 = vmatprep.subr.mxu0 0.0
    %1393 = vmatpush1.msra.mxu0 0.0
    %1394 = vmatprep.subr.mxu0 0.0
    %1395 = vmatpush1.msra.mxu0 0.0
    %1396 = vmatprep.subr.mxu0 0.0
    %1397 = vmatpush1.msra.mxu0 0.0
    %1398 = vmatprep.subr.mxu0 0.0
    %1399 = vmatpush1.msra.mxu0 0.0
    %1400 = vmatprep.subr.mxu0 0.0
    %1401 = vmatpush1.msra.mxu0 0.0
    %1402 = vmatprep.subr.mxu0 0.0
    %1403 = vmatpush1.msra.mxu0 0.0
    %1404 = vmatprep.subr.mxu0 0.0
    %1405 = vmatpush1.msra.mxu0 0.0
    %1406 = vmatprep.subr.mxu0 0.0
    %1407 = vmatpush1.msra.mxu0 0.0
    %1408 = vmatprep.subr.mxu0 0.0
    %1409 = vmatpush1.msra.mxu0 0.0
    %1410 = vmatprep.subr.mxu0 0.0
    %1411 = vmatpush1.msra.mxu0 0.0
    %1412 = vmatprep.mubr.f32.mxu0 0.0
    %1413 = vmatmul.mubr.f32.gmra.mrb[0].mxu0 %v1102
    %v1414 = vpop.f32.mrb[0].mxu0
    %v1415 = vadd.f32 %v1340, %v1414
    %v1416 = vpop.f32.mrb[0].mxu0
    %1417 = vmatprep.mubr.f32.mxu0 0.0
    %1418 = vmatmul.mubr.f32.gmra.mrb[0].mxu0 %v1105
    %v1419 = vpop.f32.mrb[0].mxu0
    %v1420 = vadd.f32 %v1345, %v1419
    %v1421 = vpop.f32.mrb[0].mxu0
    %1422 = vdwg.mxu0
    %1423 = vmatprep.subr.mxu0 0.0
    %1424 = vmatpush1.msra.mxu0 %v1265
    %1425 = vmatprep.subr.mxu0 0.0
    %1426 = vmatpush1.msra.mxu0 %v1270
    %1427 = vmatprep.subr.mxu0 0.0
    %1428 = vmatpush1.msra.mxu0 0.0
    %1429 = vmatprep.subr.mxu0 0.0
    %1430 = vmatpush1.msra.mxu0 0.0
    %1431 = vmatprep.subr.mxu0 0.0
    %1432 = vmatpush1.msra.mxu0 0.0
    %1433 = vmatprep.subr.mxu0 0.0
    %1434 = vmatpush1.msra.mxu0 0.0
    %1435 = vmatprep.subr.mxu0 0.0
    %1436 = vmatpush1.msra.mxu0 0.0
    %1437 = vmatprep.subr.mxu0 0.0
    %1438 = vmatpush1.msra.mxu0 0.0
    %1439 = vmatprep.subr.mxu0 0.0
    %1440 = vmatpush1.msra.mxu0 0.0
    %1441 = vmatprep.subr.mxu0 0.0
    %1442 = vmatpush1.msra.mxu0 0.0
    %1443 = vmatprep.subr.mxu0 0.0
    %1444 = vmatpush1.msra.mxu0 0.0
    %1445 = vmatprep.subr.mxu0 0.0
    %1446 = vmatpush1.msra.mxu0 0.0
    %1447 = vmatprep.subr.mxu0 0.0
    %1448 = vmatpush1.msra.mxu0 0.0
    %1449 = vmatprep.subr.mxu0 0.0
    %1450 = vmatpush1.msra.mxu0 0.0
    %1451 = vmatprep.subr.mxu0 0.0
    %1452 = vmatpush1.msra.mxu0 0.0
    %1453 = vmatprep.subr.mxu0 0.0
    %1454 = vmatpush1.msra.mxu0 0.0
    %1455 = vmatprep.subr.mxu0 0.0
    %1456 = vmatpush1.msra.mxu0 0.0
    %1457 = vmatprep.subr.mxu0 0.0
    %1458 = vmatpush1.msra.mxu0 0.0
    %1459 = vmatprep.subr.mxu0 0.0
    %1460 = vmatpush1.msra.mxu0 0.0
    %1461 = vmatprep.subr.mxu0 0.0
    %1462 = vmatpush1.msra.mxu0 0.0
    %1463 = vmatprep.subr.mxu0 0.0
    %1464 = vmatpush1.msra.mxu0 0.0
    %1465 = vmatprep.subr.mxu0 0.0
    %1466 = vmatpush1.msra.mxu0 0.0
    %1467 = vmatprep.subr.mxu0 0.0
    %1468 = vmatpush1.msra.mxu0 0.0
    %1469 = vmatprep.subr.mxu0 0.0
    %1470 = vmatpush1.msra.mxu0 0.0
    %1471 = vmatprep.subr.mxu0 0.0
    %1472 = vmatpush1.msra.mxu0 0.0
    %1473 = vmatprep.subr.mxu0 0.0
    %1474 = vmatpush1.msra.mxu0 0.0
    %1475 = vmatprep.subr.mxu0 0.0
    %1476 = vmatpush1.msra.mxu0 0.0
    %1477 = vmatprep.subr.mxu0 0.0
    %1478 = vmatpush1.msra.mxu0 0.0
    %1479 = vmatprep.subr.mxu0 0.0
    %1480 = vmatpush1.msra.mxu0 0.0
    %1481 = vmatprep.subr.mxu0 0.0
    %1482 = vmatpush1.msra.mxu0 0.0
    %1483 = vmatprep.subr.mxu0 0.0
    %1484 = vmatpush1.msra.mxu0 0.0
    %1485 = vmatprep.subr.mxu0 0.0
    %1486 = vmatpush1.msra.mxu0 0.0
    %1487 = vmatprep.mubr.f32.mxu0 0.0
    %1488 = vmatmul.mubr.f32.gmra.mrb[0].mxu0 %v994
    %v1489 = vpop.f32.mrb[0].mxu0
    %v1490 = vadd.f32 0.0, %v1489
    %v1491 = vpop.f32.mrb[0].mxu0
    %1492 = vmatprep.mubr.f32.mxu0 0.0
    %1493 = vmatmul.mubr.f32.gmra.mrb[0].mxu0 %v997
    %v1494 = vpop.f32.mrb[0].mxu0
    %v1495 = vadd.f32 0.0, %v1494
    %v1496 = vpop.f32.mrb[0].mxu0
    %1497 = vdwg.mxu0
    %v1498 = vadd.f32 %v1415, %v1490
    %v1499 = vadd.f32 %v1420, %v1495
    %v1500 = vld [vmem:[#allocation7 + $0x1] sm:$0x1]
    %v1501 = vlaneseq
    %v1502 = vshrl.u32 %v1501, 7
    %v1503 = vsub.s32 0, %v1502
    %v1504 = vrot.slane %v1500, %v1503
    %v1505 = vmul.f32 %v1498, %v1504
    %v1506 = vmul.f32 %v1499, %v1504
    %v1507 = vld [vmem:[#allocation7 + $0x7] sm:$0x1]
    %v1508 = vlaneseq
    %v1509 = vshrl.u32 %v1508, 7
    %v1510 = vsub.s32 0, %v1509
    %v1511 = vrot.slane %v1507, %v1510
    %v1512 = vadd.f32 %v1505, %v1511
    %v1513 = vadd.f32 %v1506, %v1511
    %v1514 = vmax.f32 %v1512, 0.0
    %v1515 = vmax.f32 %v1513, 0.0
    %v1516 = vld [vmem:[#allocation14] sm:$0xff]
    %v1517 = vld [vmem:[#allocation14 + $0x8] sm:$0xff]
    %v1518 = vld [vmem:[#allocation14 + $0x10] sm:$0xff]
    %v1519 = vld [vmem:[#allocation14 + $0x18] sm:$0xff]
    %v1520 = vld [vmem:[#allocation14 + $0x20] sm:$0xff]
    %v1521 = vld [vmem:[#allocation14 + $0x28] sm:$0xff]
    %v1522 = vld [vmem:[#allocation14 + $0x30] sm:$0xff]
    %v1523 = vld [vmem:[#allocation14 + $0x38] sm:$0xff]
    %v1524 = vld [vmem:[#allocation16] sm:$0xff]
    %v1525 = vld [vmem:[#allocation16 + $0x8] sm:$0xff]
    %v1526 = vld [vmem:[#allocation16 + $0x10] sm:$0xff]
    %v1527 = vld [vmem:[#allocation16 + $0x18] sm:$0xff]
    %v1528 = vld [vmem:[#allocation16 + $0x20] sm:$0xff]
    %v1529 = vld [vmem:[#allocation16 + $0x28] sm:$0xff]
    %v1530 = vld [vmem:[#allocation16 + $0x30] sm:$0xff]
    %v1531 = vld [vmem:[#allocation16 + $0x38] sm:$0xff]
    %v1532 = vld [vmem:[#allocation17] sm:$0xff]
    %v1533 = vld [vmem:[#allocation19] sm:$0xff]
    %v1535 = vsel %vm1100, %v1514, 0
    %v1538 = vsel %vm1100, %v1515, 0
    %1540 = vmatprep.subr.mxu0 0.0
    %1541 = vmatpush1.msra.mxu0 %v1516
    %1542 = vmatprep.subr.mxu0 0.0
    %1543 = vmatpush1.msra.mxu0 %v1517
    %1544 = vmatprep.subr.mxu0 0.0
    %1545 = vmatpush1.msra.mxu0 %v1518
    %1546 = vmatprep.subr.mxu0 0.0
    %1547 = vmatpush1.msra.mxu0 %v1519
    %1548 = vmatprep.subr.mxu0 0.0
    %1549 = vmatpush1.msra.mxu0 %v1520
    %1550 = vmatprep.subr.mxu0 0.0
    %1551 = vmatpush1.msra.mxu0 %v1521
    %1552 = vmatprep.subr.mxu0 0.0
    %1553 = vmatpush1.msra.mxu0 %v1522
    %1554 = vmatprep.subr.mxu0 0.0
    %1555 = vmatpush1.msra.mxu0 %v1523
    %1556 = vmatprep.subr.mxu0 0.0
    %1557 = vmatpush1.msra.mxu0 0.0
    %1558 = vmatprep.subr.mxu0 0.0
    %1559 = vmatpush1.msra.mxu0 0.0
    %1560 = vmatprep.subr.mxu0 0.0
    %1561 = vmatpush1.msra.mxu0 0.0
    %1562 = vmatprep.subr.mxu0 0.0
    %1563 = vmatpush1.msra.mxu0 0.0
    %1564 = vmatprep.subr.mxu0 0.0
    %1565 = vmatpush1.msra.mxu0 0.0
    %1566 = vmatprep.subr.mxu0 0.0
    %1567 = vmatpush1.msra.mxu0 0.0
    %1568 = vmatprep.subr.mxu0 0.0
    %1569 = vmatpush1.msra.mxu0 0.0
    %1570 = vmatprep.subr.mxu0 0.0
    %1571 = vmatpush1.msra.mxu0 0.0
    %1572 = vmatprep.subr.mxu0 0.0
    %1573 = vmatpush1.msra.mxu0 0.0
    %1574 = vmatprep.subr.mxu0 0.0
    %1575 = vmatpush1.msra.mxu0 0.0
    %1576 = vmatprep.subr.mxu0 0.0
    %1577 = vmatpush1.msra.mxu0 0.0
    %1578 = vmatprep.subr.mxu0 0.0
    %1579 = vmatpush1.msra.mxu0 0.0
    %1580 = vmatprep.subr.mxu0 0.0
    %1581 = vmatpush1.msra.mxu0 0.0
    %1582 = vmatprep.subr.mxu0 0.0
    %1583 = vmatpush1.msra.mxu0 0.0
    %1584 = vmatprep.subr.mxu0 0.0
    %1585 = vmatpush1.msra.mxu0 0.0
    %1586 = vmatprep.subr.mxu0 0.0
    %1587 = vmatpush1.msra.mxu0 0.0
    %1588 = vmatprep.subr.mxu0 0.0
    %1589 = vmatpush1.msra.mxu0 0.0
    %1590 = vmatprep.subr.mxu0 0.0
    %1591 = vmatpush1.msra.mxu0 0.0
    %1592 = vmatprep.subr.mxu0 0.0
    %1593 = vmatpush1.msra.mxu0 0.0
    %1594 = vmatprep.subr.mxu0 0.0
    %1595 = vmatpush1.msra.mxu0 0.0
    %1596 = vmatprep.subr.mxu0 0.0
    %1597 = vmatpush1.msra.mxu0 0.0
    %1598 = vmatprep.subr.mxu0 0.0
    %1599 = vmatpush1.msra.mxu0 0.0
    %1600 = vmatprep.subr.mxu0 0.0
    %1601 = vmatpush1.msra.mxu0 0.0
    %1602 = vmatprep.subr.mxu0 0.0
    %1603 = vmatpush1.msra.mxu0 0.0
    %1604 = vmatprep.mubr.f32.mxu0 0.0
    %1605 = vmatmul.mubr.f32.gmra.mrb[0].mxu0 %v1535
    %v1606 = vpop.f32.mrb[0].mxu0
    %v1607 = vadd.f32 0.0, %v1606
    %v1608 = vpop.f32.mrb[0].mxu0
    %1609 = vmatprep.mubr.f32.mxu0 0.0
    %1610 = vmatmul.mubr.f32.gmra.mrb[0].mxu0 %v1538
    %v1611 = vpop.f32.mrb[0].mxu0
    %v1612 = vadd.f32 0.0, %v1611
    %v1613 = vpop.f32.mrb[0].mxu0
    %1614 = vdwg.mxu0
    %1615 = vmatprep.subr.mxu0 0.0
    %1616 = vmatpush1.msra.mxu0 %v1524
    %1617 = vmatprep.subr.mxu0 0.0
    %1618 = vmatpush1.msra.mxu0 %v1525
    %1619 = vmatprep.subr.mxu0 0.0
    %1620 = vmatpush1.msra.mxu0 %v1526
    %1621 = vmatprep.subr.mxu0 0.0
    %1622 = vmatpush1.msra.mxu0 %v1527
    %1623 = vmatprep.subr.mxu0 0.0
    %1624 = vmatpush1.msra.mxu0 %v1528
    %1625 = vmatprep.subr.mxu0 0.0
    %1626 = vmatpush1.msra.mxu0 %v1529
    %1627 = vmatprep.subr.mxu0 0.0
    %1628 = vmatpush1.msra.mxu0 %v1530
    %1629 = vmatprep.subr.mxu0 0.0
    %1630 = vmatpush1.msra.mxu0 %v1531
    %1631 = vmatprep.subr.mxu0 0.0
    %1632 = vmatpush1.msra.mxu0 0.0
    %1633 = vmatprep.subr.mxu0 0.0
    %1634 = vmatpush1.msra.mxu0 0.0
    %1635 = vmatprep.subr.mxu0 0.0
    %1636 = vmatpush1.msra.mxu0 0.0
    %1637 = vmatprep.subr.mxu0 0.0
    %1638 = vmatpush1.msra.mxu0 0.0
    %1639 = vmatprep.subr.mxu0 0.0
    %1640 = vmatpush1.msra.mxu0 0.0
    %1641 = vmatprep.subr.mxu0 0.0
    %1642 = vmatpush1.msra.mxu0 0.0
    %1643 = vmatprep.subr.mxu0 0.0
    %1644 = vmatpush1.msra.mxu0 0.0
    %1645 = vmatprep.subr.mxu0 0.0
    %1646 = vmatpush1.msra.mxu0 0.0
    %1647 = vmatprep.subr.mxu0 0.0
    %1648 = vmatpush1.msra.mxu0 0.0
    %1649 = vmatprep.subr.mxu0 0.0
    %1650 = vmatpush1.msra.mxu0 0.0
    %1651 = vmatprep.subr.mxu0 0.0
    %1652 = vmatpush1.msra.mxu0 0.0
    %1653 = vmatprep.subr.mxu0 0.0
    %1654 = vmatpush1.msra.mxu0 0.0
    %1655 = vmatprep.subr.mxu0 0.0
    %1656 = vmatpush1.msra.mxu0 0.0
    %1657 = vmatprep.subr.mxu0 0.0
    %1658 = vmatpush1.msra.mxu0 0.0
    %1659 = vmatprep.subr.mxu0 0.0
    %1660 = vmatpush1.msra.mxu0 0.0
    %1661 = vmatprep.subr.mxu0 0.0
    %1662 = vmatpush1.msra.mxu0 0.0
    %1663 = vmatprep.subr.mxu0 0.0
    %1664 = vmatpush1.msra.mxu0 0.0
    %1665 = vmatprep.subr.mxu0 0.0
    %1666 = vmatpush1.msra.mxu0 0.0
    %1667 = vmatprep.subr.mxu0 0.0
    %1668 = vmatpush1.msra.mxu0 0.0
    %1669 = vmatprep.subr.mxu0 0.0
    %1670 = vmatpush1.msra.mxu0 0.0
    %1671 = vmatprep.subr.mxu0 0.0
    %1672 = vmatpush1.msra.mxu0 0.0
    %1673 = vmatprep.subr.mxu0 0.0
    %1674 = vmatpush1.msra.mxu0 0.0
    %1675 = vmatprep.subr.mxu0 0.0
    %1676 = vmatpush1.msra.mxu0 0.0
    %1677 = vmatprep.subr.mxu0 0.0
    %1678 = vmatpush1.msra.mxu0 0.0
    %1679 = vmatprep.mubr.f32.mxu0 0.0
    %1680 = vmatmul.mubr.f32.gmra.mrb[0].mxu0 %v1535
    %v1681 = vpop.f32.mrb[0].mxu0
    %v1682 = vadd.f32 0.0, %v1681
    %v1683 = vpop.f32.mrb[0].mxu0
    %1684 = vmatprep.mubr.f32.mxu0 0.0
    %1685 = vmatmul.mubr.f32.gmra.mrb[0].mxu0 %v1538
    %v1686 = vpop.f32.mrb[0].mxu0
    %v1687 = vadd.f32 0.0, %v1686
    %v1688 = vpop.f32.mrb[0].mxu0
    %1689 = vdwg.mxu0
    %v1690 = vmax.f32 %v1607, %v1682
    %v1691 = vmax.f32 %v1612, %v1687
    %v1693 = vsel %vm325, %v1532, 0
    %1695 = vmatprep.subr.mxu0 0.0
    %1696 = vmatpush1.msra.mxu0 %v1690
    %1697 = vmatprep.subr.mxu0 0.0
    %1698 = vmatpush1.msra.mxu0 %v1691
    %1699 = vmatprep.subr.mxu0 0.0
    %1700 = vmatpush1.msra.mxu0 0.0
    %1701 = vmatprep.subr.mxu0 0.0
    %1702 = vmatpush1.msra.mxu0 0.0
    %1703 = vmatprep.subr.mxu0 0.0
    %1704 = vmatpush1.msra.mxu0 0.0
    %1705 = vmatprep.subr.mxu0 0.0
    %1706 = vmatpush1.msra.mxu0 0.0
    %1707 = vmatprep.subr.mxu0 0.0
    %1708 = vmatpush1.msra.mxu0 0.0
    %1709 = vmatprep.subr.mxu0 0.0
    %1710 = vmatpush1.msra.mxu0 0.0
    %1711 = vmatprep.subr.mxu0 0.0
    %1712 = vmatpush1.msra.mxu0 0.0
    %1713 = vmatprep.subr.mxu0 0.0
    %1714 = vmatpush1.msra.mxu0 0.0
    %1715 = vmatprep.subr.mxu0 0.0
    %1716 = vmatpush1.msra.mxu0 0.0
    %1717 = vmatprep.subr.mxu0 0.0
    %1718 = vmatpush1.msra.mxu0 0.0
    %1719 = vmatprep.subr.mxu0 0.0
    %1720 = vmatpush1.msra.mxu0 0.0
    %1721 = vmatprep.subr.mxu0 0.0
    %1722 = vmatpush1.msra.mxu0 0.0
    %1723 = vmatprep.subr.mxu0 0.0
    %1724 = vmatpush1.msra.mxu0 0.0
    %1725 = vmatprep.subr.mxu0 0.0
    %1726 = vmatpush1.msra.mxu0 0.0
    %1727 = vmatprep.subr.mxu0 0.0
    %1728 = vmatpush1.msra.mxu0 0.0
    %1729 = vmatprep.subr.mxu0 0.0
    %1730 = vmatpush1.msra.mxu0 0.0
    %1731 = vmatprep.subr.mxu0 0.0
    %1732 = vmatpush1.msra.mxu0 0.0
    %1733 = vmatprep.subr.mxu0 0.0
    %1734 = vmatpush1.msra.mxu0 0.0
    %1735 = vmatprep.subr.mxu0 0.0
    %1736 = vmatpush1.msra.mxu0 0.0
    %1737 = vmatprep.subr.mxu0 0.0
    %1738 = vmatpush1.msra.mxu0 0.0
    %1739 = vmatprep.subr.mxu0 0.0
    %1740 = vmatpush1.msra.mxu0 0.0
    %1741 = vmatprep.subr.mxu0 0.0
    %1742 = vmatpush1.msra.mxu0 0.0
    %1743 = vmatprep.subr.mxu0 0.0
    %1744 = vmatpush1.msra.mxu0 0.0
    %1745 = vmatprep.subr.mxu0 0.0
    %1746 = vmatpush1.msra.mxu0 0.0
    %1747 = vmatprep.subr.mxu0 0.0
    %1748 = vmatpush1.msra.mxu0 0.0
    %1749 = vmatprep.subr.mxu0 0.0
    %1750 = vmatpush1.msra.mxu0 0.0
    %1751 = vmatprep.subr.mxu0 0.0
    %1752 = vmatpush1.msra.mxu0 0.0
    %1753 = vmatprep.subr.mxu0 0.0
    %1754 = vmatpush1.msra.mxu0 0.0
    %1755 = vmatprep.subr.mxu0 0.0
    %1756 = vmatpush1.msra.mxu0 0.0
    %1757 = vmatprep.subr.mxu0 0.0
    %1758 = vmatpush1.msra.mxu0 0.0
    %1759 = vmatprep.mubr.f32.mxu0 0.0
    %1760 = vmatmul.mubr.f32.gmra.mrb[0].mxu0 %v1693
    %v1761 = vpop.f32.mrb[0].mxu0
    %v1762 = vadd.f32 0.0, %v1761
    %v1763 = vpop.f32.mrb[0].mxu0
    %1764 = vdwg.mxu0
    %v1766 = vsel %vm325, %v1533, 0
    %1768 = vmatprep.subr.mxu0 0.0
    %1769 = vmatpush1.msra.mxu0 %v1690
    %1770 = vmatprep.subr.mxu0 0.0
    %1771 = vmatpush1.msra.mxu0 %v1691
    %1772 = vmatprep.subr.mxu0 0.0
    %1773 = vmatpush1.msra.mxu0 0.0
    %1774 = vmatprep.subr.mxu0 0.0
    %1775 = vmatpush1.msra.mxu0 0.0
    %1776 = vmatprep.subr.mxu0 0.0
    %1777 = vmatpush1.msra.mxu0 0.0
    %1778 = vmatprep.subr.mxu0 0.0
    %1779 = vmatpush1.msra.mxu0 0.0
    %1780 = vmatprep.subr.mxu0 0.0
    %1781 = vmatpush1.msra.mxu0 0.0
    %1782 = vmatprep.subr.mxu0 0.0
    %1783 = vmatpush1.msra.mxu0 0.0
    %1784 = vmatprep.subr.mxu0 0.0
    %1785 = vmatpush1.msra.mxu0 0.0
    %1786 = vmatprep.subr.mxu0 0.0
    %1787 = vmatpush1.msra.mxu0 0.0
    %1788 = vmatprep.subr.mxu0 0.0
    %1789 = vmatpush1.msra.mxu0 0.0
    %1790 = vmatprep.subr.mxu0 0.0
    %1791 = vmatpush1.msra.mxu0 0.0
    %1792 = vmatprep.subr.mxu0 0.0
    %1793 = vmatpush1.msra.mxu0 0.0
    %1794 = vmatprep.subr.mxu0 0.0
    %1795 = vmatpush1.msra.mxu0 0.0
    %1796 = vmatprep.subr.mxu0 0.0
    %1797 = vmatpush1.msra.mxu0 0.0
    %1798 = vmatprep.subr.mxu0 0.0
    %1799 = vmatpush1.msra.mxu0 0.0
    %1800 = vmatprep.subr.mxu0 0.0
    %1801 = vmatpush1.msra.mxu0 0.0
    %1802 = vmatprep.subr.mxu0 0.0
    %1803 = vmatpush1.msra.mxu0 0.0
    %1804 = vmatprep.subr.mxu0 0.0
    %1805 = vmatpush1.msra.mxu0 0.0
    %1806 = vmatprep.subr.mxu0 0.0
    %1807 = vmatpush1.msra.mxu0 0.0
    %1808 = vmatprep.subr.mxu0 0.0
    %1809 = vmatpush1.msra.mxu0 0.0
    %1810 = vmatprep.subr.mxu0 0.0
    %1811 = vmatpush1.msra.mxu0 0.0
    %1812 = vmatprep.subr.mxu0 0.0
    %1813 = vmatpush1.msra.mxu0 0.0
    %1814 = vmatprep.subr.mxu0 0.0
    %1815 = vmatpush1.msra.mxu0 0.0
    %1816 = vmatprep.subr.mxu0 0.0
    %1817 = vmatpush1.msra.mxu0 0.0
    %1818 = vmatprep.subr.mxu0 0.0
    %1819 = vmatpush1.msra.mxu0 0.0
    %1820 = vmatprep.subr.mxu0 0.0
    %1821 = vmatpush1.msra.mxu0 0.0
    %1822 = vmatprep.subr.mxu0 0.0
    %1823 = vmatpush1.msra.mxu0 0.0
    %1824 = vmatprep.subr.mxu0 0.0
    %1825 = vmatpush1.msra.mxu0 0.0
    %1826 = vmatprep.subr.mxu0 0.0
    %1827 = vmatpush1.msra.mxu0 0.0
    %1828 = vmatprep.subr.mxu0 0.0
    %1829 = vmatpush1.msra.mxu0 0.0
    %1830 = vmatprep.subr.mxu0 0.0
    %1831 = vmatpush1.msra.mxu0 0.0
    %1832 = vmatprep.mubr.f32.mxu0 0.0
    %1833 = vmatmul.mubr.f32.gmra.mrb[0].mxu0 %v1766
    %v1834 = vpop.f32.mrb[0].mxu0
    %v1835 = vadd.f32 0.0, %v1834
    %v1836 = vpop.f32.mrb[0].mxu0
    %1837 = vdwg.mxu0
    %v1838 = vmax.f32 %v1762, %v1835
    %v1839 = vld [vmem:[#allocation5 + $0xd8] sm:$0xff]
    %v1840 = vld [vmem:[#allocation5 + $0xe0] sm:$0xff]
    %v1841 = vld [vmem:[#allocation5 + $0xe8] sm:$0xff]
    %v1842 = vld [vmem:[#allocation5 + $0xf0] sm:$0xff]
    %v1844 = vsel %vm512, %v1838, 0
    %1846 = vmatprep.subr.mxu0 0.0
    %1847 = vmatpush1.msra.mxu0 %v1839
    %1848 = vmatprep.subr.mxu0 0.0
    %1849 = vmatpush1.msra.mxu0 %v1840
    %1850 = vmatprep.subr.mxu0 0.0
    %1851 = vmatpush1.msra.mxu0 %v1841
    %1852 = vmatprep.subr.mxu0 0.0
    %1853 = vmatpush1.msra.mxu0 %v1842
    %1854 = vmatprep.subr.mxu0 0.0
    %1855 = vmatpush1.msra.mxu0 0.0
    %1856 = vmatprep.subr.mxu0 0.0
    %1857 = vmatpush1.msra.mxu0 0.0
    %1858 = vmatprep.subr.mxu0 0.0
    %1859 = vmatpush1.msra.mxu0 0.0
    %1860 = vmatprep.subr.mxu0 0.0
    %1861 = vmatpush1.msra.mxu0 0.0
    %1862 = vmatprep.subr.mxu0 0.0
    %1863 = vmatpush1.msra.mxu0 0.0
    %1864 = vmatprep.subr.mxu0 0.0
    %1865 = vmatpush1.msra.mxu0 0.0
    %1866 = vmatprep.subr.mxu0 0.0
    %1867 = vmatpush1.msra.mxu0 0.0
    %1868 = vmatprep.subr.mxu0 0.0
    %1869 = vmatpush1.msra.mxu0 0.0
    %1870 = vmatprep.subr.mxu0 0.0
    %1871 = vmatpush1.msra.mxu0 0.0
    %1872 = vmatprep.subr.mxu0 0.0
    %1873 = vmatpush1.msra.mxu0 0.0
    %1874 = vmatprep.subr.mxu0 0.0
    %1875 = vmatpush1.msra.mxu0 0.0
    %1876 = vmatprep.subr.mxu0 0.0
    %1877 = vmatpush1.msra.mxu0 0.0
    %1878 = vmatprep.subr.mxu0 0.0
    %1879 = vmatpush1.msra.mxu0 0.0
    %1880 = vmatprep.subr.mxu0 0.0
    %1881 = vmatpush1.msra.mxu0 0.0
    %1882 = vmatprep.subr.mxu0 0.0
    %1883 = vmatpush1.msra.mxu0 0.0
    %1884 = vmatprep.subr.mxu0 0.0
    %1885 = vmatpush1.msra.mxu0 0.0
    %1886 = vmatprep.subr.mxu0 0.0
    %1887 = vmatpush1.msra.mxu0 0.0
    %1888 = vmatprep.subr.mxu0 0.0
    %1889 = vmatpush1.msra.mxu0 0.0
    %1890 = vmatprep.subr.mxu0 0.0
    %1891 = vmatpush1.msra.mxu0 0.0
    %1892 = vmatprep.subr.mxu0 0.0
    %1893 = vmatpush1.msra.mxu0 0.0
    %1894 = vmatprep.subr.mxu0 0.0
    %1895 = vmatpush1.msra.mxu0 0.0
    %1896 = vmatprep.subr.mxu0 0.0
    %1897 = vmatpush1.msra.mxu0 0.0
    %1898 = vmatprep.subr.mxu0 0.0
    %1899 = vmatpush1.msra.mxu0 0.0
    %1900 = vmatprep.subr.mxu0 0.0
    %1901 = vmatpush1.msra.mxu0 0.0
    %1902 = vmatprep.subr.mxu0 0.0
    %1903 = vmatpush1.msra.mxu0 0.0
    %1904 = vmatprep.subr.mxu0 0.0
    %1905 = vmatpush1.msra.mxu0 0.0
    %1906 = vmatprep.subr.mxu0 0.0
    %1907 = vmatpush1.msra.mxu0 0.0
    %1908 = vmatprep.subr.mxu0 0.0
    %1909 = vmatpush1.msra.mxu0 0.0
    %1910 = vmatprep.mubr.f32.mxu0 0.0
    %1911 = vmatmul.mubr.f32.gmra.mrb[0].mxu0 %v1844
    %v1912 = vpop.f32.mrb[0].mxu0
    %v1913 = vadd.f32 0.0, %v1912
    %v1914 = vpop.f32.mrb[0].mxu0
    %1915 = vdwg.mxu0
    %v1916 = vld [vmem:[#allocation5 + $0xf8] sm:$0xff]
    %v1917 = vld [vmem:[#allocation5 + $0x100] sm:$0xff]
    %v1918 = vld [vmem:[#allocation5 + $0x108] sm:$0xff]
    %v1919 = vld [vmem:[#allocation5 + $0x110] sm:$0xff]
    %v1920 = vld [vmem:[#allocation5 + $0x118] sm:$0xff]
    %v1921 = vld [vmem:[#allocation5 + $0x120] sm:$0xff]
    %v1922 = vld [vmem:[#allocation5 + $0x128] sm:$0xff]
    %v1923 = vld [vmem:[#allocation5 + $0x130] sm:$0xff]
    %1924 = vmatprep.subr.mxu0 0.0
    %1925 = vmatpush1.msra.mxu0 %v1920
    %1926 = vmatprep.subr.mxu0 0.0
    %1927 = vmatpush1.msra.mxu0 %v1921
    %1928 = vmatprep.subr.mxu0 0.0
    %1929 = vmatpush1.msra.mxu0 %v1922
    %1930 = vmatprep.subr.mxu0 0.0
    %1931 = vmatpush1.msra.mxu0 %v1923
    %1932 = vmatprep.subr.mxu0 0.0
    %1933 = vmatpush1.msra.mxu0 0.0
    %1934 = vmatprep.subr.mxu0 0.0
    %1935 = vmatpush1.msra.mxu0 0.0
    %1936 = vmatprep.subr.mxu0 0.0
    %1937 = vmatpush1.msra.mxu0 0.0
    %1938 = vmatprep.subr.mxu0 0.0
    %1939 = vmatpush1.msra.mxu0 0.0
    %1940 = vmatprep.subr.mxu0 0.0
    %1941 = vmatpush1.msra.mxu0 0.0
    %1942 = vmatprep.subr.mxu0 0.0
    %1943 = vmatpush1.msra.mxu0 0.0
    %1944 = vmatprep.subr.mxu0 0.0
    %1945 = vmatpush1.msra.mxu0 0.0
    %1946 = vmatprep.subr.mxu0 0.0
    %1947 = vmatpush1.msra.mxu0 0.0
    %1948 = vmatprep.subr.mxu0 0.0
    %1949 = vmatpush1.msra.mxu0 0.0
    %1950 = vmatprep.subr.mxu0 0.0
    %1951 = vmatpush1.msra.mxu0 0.0
    %1952 = vmatprep.subr.mxu0 0.0
    %1953 = vmatpush1.msra.mxu0 0.0
    %1954 = vmatprep.subr.mxu0 0.0
    %1955 = vmatpush1.msra.mxu0 0.0
    %1956 = vmatprep.subr.mxu0 0.0
    %1957 = vmatpush1.msra.mxu0 0.0
    %1958 = vmatprep.subr.mxu0 0.0
    %1959 = vmatpush1.msra.mxu0 0.0
    %1960 = vmatprep.subr.mxu0 0.0
    %1961 = vmatpush1.msra.mxu0 0.0
    %1962 = vmatprep.subr.mxu0 0.0
    %1963 = vmatpush1.msra.mxu0 0.0
    %1964 = vmatprep.subr.mxu0 0.0
    %1965 = vmatpush1.msra.mxu0 0.0
    %1966 = vmatprep.subr.mxu0 0.0
    %1967 = vmatpush1.msra.mxu0 0.0
    %1968 = vmatprep.subr.mxu0 0.0
    %1969 = vmatpush1.msra.mxu0 0.0
    %1970 = vmatprep.subr.mxu0 0.0
    %1971 = vmatpush1.msra.mxu0 0.0
    %1972 = vmatprep.subr.mxu0 0.0
    %1973 = vmatpush1.msra.mxu0 0.0
    %1974 = vmatprep.subr.mxu0 0.0
    %1975 = vmatpush1.msra.mxu0 0.0
    %1976 = vmatprep.subr.mxu0 0.0
    %1977 = vmatpush1.msra.mxu0 0.0
    %1978 = vmatprep.subr.mxu0 0.0
    %1979 = vmatpush1.msra.mxu0 0.0
    %1980 = vmatprep.subr.mxu0 0.0
    %1981 = vmatpush1.msra.mxu0 0.0
    %1982 = vmatprep.subr.mxu0 0.0
    %1983 = vmatpush1.msra.mxu0 0.0
    %1984 = vmatprep.subr.mxu0 0.0
    %1985 = vmatpush1.msra.mxu0 0.0
    %1986 = vmatprep.subr.mxu0 0.0
    %1987 = vmatpush1.msra.mxu0 0.0
    %1988 = vmatprep.mubr.f32.mxu0 0.0
    %1989 = vmatmul.mubr.f32.gmra.mrb[0].mxu0 %v1844
    %v1990 = vpop.f32.mrb[0].mxu0
    %v1991 = vadd.f32 0.0, %v1990
    %v1992 = vpop.f32.mrb[0].mxu0
    %1993 = vdwg.mxu0
    %v1995 = vsel %vm678, %v311, 0
    %1997 = vmatprep.subr.mxu0 0.0
    %1998 = vmatpush1.msra.mxu0 %v1913
    %1999 = vmatprep.subr.mxu0 0.0
    %2000 = vmatpush1.msra.mxu0 0.0
    %2001 = vmatprep.subr.mxu0 0.0
    %2002 = vmatpush1.msra.mxu0 0.0
    %2003 = vmatprep.subr.mxu0 0.0
    %2004 = vmatpush1.msra.mxu0 0.0
    %2005 = vmatprep.subr.mxu0 0.0
    %2006 = vmatpush1.msra.mxu0 0.0
    %2007 = vmatprep.subr.mxu0 0.0
    %2008 = vmatpush1.msra.mxu0 0.0
    %2009 = vmatprep.subr.mxu0 0.0
    %2010 = vmatpush1.msra.mxu0 0.0
    %2011 = vmatprep.subr.mxu0 0.0
    %2012 = vmatpush1.msra.mxu0 0.0
    %2013 = vmatprep.subr.mxu0 0.0
    %2014 = vmatpush1.msra.mxu0 0.0
    %2015 = vmatprep.subr.mxu0 0.0
    %2016 = vmatpush1.msra.mxu0 0.0
    %2017 = vmatprep.subr.mxu0 0.0
    %2018 = vmatpush1.msra.mxu0 0.0
    %2019 = vmatprep.subr.mxu0 0.0
    %2020 = vmatpush1.msra.mxu0 0.0
    %2021 = vmatprep.subr.mxu0 0.0
    %2022 = vmatpush1.msra.mxu0 0.0
    %2023 = vmatprep.subr.mxu0 0.0
    %2024 = vmatpush1.msra.mxu0 0.0
    %2025 = vmatprep.subr.mxu0 0.0
    %2026 = vmatpush1.msra.mxu0 0.0
    %2027 = vmatprep.subr.mxu0 0.0
    %2028 = vmatpush1.msra.mxu0 0.0
    %2029 = vmatprep.subr.mxu0 0.0
    %2030 = vmatpush1.msra.mxu0 0.0
    %2031 = vmatprep.subr.mxu0 0.0
    %2032 = vmatpush1.msra.mxu0 0.0
    %2033 = vmatprep.subr.mxu0 0.0
    %2034 = vmatpush1.msra.mxu0 0.0
    %2035 = vmatprep.subr.mxu0 0.0
    %2036 = vmatpush1.msra.mxu0 0.0
    %2037 = vmatprep.subr.mxu0 0.0
    %2038 = vmatpush1.msra.mxu0 0.0
    %2039 = vmatprep.subr.mxu0 0.0
    %2040 = vmatpush1.msra.mxu0 0.0
    %2041 = vmatprep.subr.mxu0 0.0
    %2042 = vmatpush1.msra.mxu0 0.0
    %2043 = vmatprep.subr.mxu0 0.0
    %2044 = vmatpush1.msra.mxu0 0.0
    %2045 = vmatprep.subr.mxu0 0.0
    %2046 = vmatpush1.msra.mxu0 0.0
    %2047 = vmatprep.subr.mxu0 0.0
    %2048 = vmatpush1.msra.mxu0 0.0
    %2049 = vmatprep.subr.mxu0 0.0
    %2050 = vmatpush1.msra.mxu0 0.0
    %2051 = vmatprep.subr.mxu0 0.0
    %2052 = vmatpush1.msra.mxu0 0.0
    %2053 = vmatprep.subr.mxu0 0.0
    %2054 = vmatpush1.msra.mxu0 0.0
    %2055 = vmatprep.subr.mxu0 0.0
    %2056 = vmatpush1.msra.mxu0 0.0
    %2057 = vmatprep.subr.mxu0 0.0
    %2058 = vmatpush1.msra.mxu0 0.0
    %2059 = vmatprep.subr.mxu0 0.0
    %2060 = vmatpush1.msra.mxu0 0.0
    %2061 = vmatprep.mubr.f32.mxu0 0.0
    %2062 = vmatmul.mubr.f32.gmra.mrb[0].mxu0 %v1995
    %v2063 = vpop.f32.mrb[0].mxu0
    %v2064 = vadd.f32 0.0, %v2063
    %v2065 = vpop.f32.mrb[0].mxu0
    %2066 = vdwg.mxu0
    %2067 = vmatprep.subr.mxu0 0.0
    %2068 = vmatpush1.msra.mxu0 %v1916
    %2069 = vmatprep.subr.mxu0 0.0
    %2070 = vmatpush1.msra.mxu0 %v1917
    %2071 = vmatprep.subr.mxu0 0.0
    %2072 = vmatpush1.msra.mxu0 %v1918
    %2073 = vmatprep.subr.mxu0 0.0
    %2074 = vmatpush1.msra.mxu0 %v1919
    %2075 = vmatprep.subr.mxu0 0.0
    %2076 = vmatpush1.msra.mxu0 0.0
    %2077 = vmatprep.subr.mxu0 0.0
    %2078 = vmatpush1.msra.mxu0 0.0
    %2079 = vmatprep.subr.mxu0 0.0
    %2080 = vmatpush1.msra.mxu0 0.0
    %2081 = vmatprep.subr.mxu0 0.0
    %2082 = vmatpush1.msra.mxu0 0.0
    %2083 = vmatprep.subr.mxu0 0.0
    %2084 = vmatpush1.msra.mxu0 0.0
    %2085 = vmatprep.subr.mxu0 0.0
    %2086 = vmatpush1.msra.mxu0 0.0
    %2087 = vmatprep.subr.mxu0 0.0
    %2088 = vmatpush1.msra.mxu0 0.0
    %2089 = vmatprep.subr.mxu0 0.0
    %2090 = vmatpush1.msra.mxu0 0.0
    %2091 = vmatprep.subr.mxu0 0.0
    %2092 = vmatpush1.msra.mxu0 0.0
    %2093 = vmatprep.subr.mxu0 0.0
    %2094 = vmatpush1.msra.mxu0 0.0
    %2095 = vmatprep.subr.mxu0 0.0
    %2096 = vmatpush1.msra.mxu0 0.0
    %2097 = vmatprep.subr.mxu0 0.0
    %2098 = vmatpush1.msra.mxu0 0.0
    %2099 = vmatprep.subr.mxu0 0.0
    %2100 = vmatpush1.msra.mxu0 0.0
    %2101 = vmatprep.subr.mxu0 0.0
    %2102 = vmatpush1.msra.mxu0 0.0
    %2103 = vmatprep.subr.mxu0 0.0
    %2104 = vmatpush1.msra.mxu0 0.0
    %2105 = vmatprep.subr.mxu0 0.0
    %2106 = vmatpush1.msra.mxu0 0.0
    %2107 = vmatprep.subr.mxu0 0.0
    %2108 = vmatpush1.msra.mxu0 0.0
    %2109 = vmatprep.subr.mxu0 0.0
    %2110 = vmatpush1.msra.mxu0 0.0
    %2111 = vmatprep.subr.mxu0 0.0
    %2112 = vmatpush1.msra.mxu0 0.0
    %2113 = vmatprep.subr.mxu0 0.0
    %2114 = vmatpush1.msra.mxu0 0.0
    %2115 = vmatprep.subr.mxu0 0.0
    %2116 = vmatpush1.msra.mxu0 0.0
    %2117 = vmatprep.subr.mxu0 0.0
    %2118 = vmatpush1.msra.mxu0 0.0
    %2119 = vmatprep.subr.mxu0 0.0
    %2120 = vmatpush1.msra.mxu0 0.0
    %2121 = vmatprep.subr.mxu0 0.0
    %2122 = vmatpush1.msra.mxu0 0.0
    %2123 = vmatprep.subr.mxu0 0.0
    %2124 = vmatpush1.msra.mxu0 0.0
    %2125 = vmatprep.subr.mxu0 0.0
    %2126 = vmatpush1.msra.mxu0 0.0
    %2127 = vmatprep.subr.mxu0 0.0
    %2128 = vmatpush1.msra.mxu0 0.0
    %2129 = vmatprep.subr.mxu0 0.0
    %2130 = vmatpush1.msra.mxu0 0.0
    %2131 = vmatprep.mubr.f32.mxu0 0.0
    %2132 = vmatmul.mubr.f32.gmra.mrb[0].mxu0 %v1844
    %v2133 = vpop.f32.mrb[0].mxu0
    %v2134 = vadd.f32 %v2064, %v2133
    %v2135 = vpop.f32.mrb[0].mxu0
    %2136 = vdwg.mxu0
    %v2138 = vsel %vm678, %v312, 0
    %2140 = vmatprep.subr.mxu0 0.0
    %2141 = vmatpush1.msra.mxu0 %v1991
    %2142 = vmatprep.subr.mxu0 0.0
    %2143 = vmatpush1.msra.mxu0 0.0
    %2144 = vmatprep.subr.mxu0 0.0
    %2145 = vmatpush1.msra.mxu0 0.0
    %2146 = vmatprep.subr.mxu0 0.0
    %2147 = vmatpush1.msra.mxu0 0.0
    %2148 = vmatprep.subr.mxu0 0.0
    %2149 = vmatpush1.msra.mxu0 0.0
    %2150 = vmatprep.subr.mxu0 0.0
    %2151 = vmatpush1.msra.mxu0 0.0
    %2152 = vmatprep.subr.mxu0 0.0
    %2153 = vmatpush1.msra.mxu0 0.0
    %2154 = vmatprep.subr.mxu0 0.0
    %2155 = vmatpush1.msra.mxu0 0.0
    %2156 = vmatprep.subr.mxu0 0.0
    %2157 = vmatpush1.msra.mxu0 0.0
    %2158 = vmatprep.subr.mxu0 0.0
    %2159 = vmatpush1.msra.mxu0 0.0
    %2160 = vmatprep.subr.mxu0 0.0
    %2161 = vmatpush1.msra.mxu0 0.0
    %2162 = vmatprep.subr.mxu0 0.0
    %2163 = vmatpush1.msra.mxu0 0.0
    %2164 = vmatprep.subr.mxu0 0.0
    %2165 = vmatpush1.msra.mxu0 0.0
    %2166 = vmatprep.subr.mxu0 0.0
    %2167 = vmatpush1.msra.mxu0 0.0
    %2168 = vmatprep.subr.mxu0 0.0
    %2169 = vmatpush1.msra.mxu0 0.0
    %2170 = vmatprep.subr.mxu0 0.0
    %2171 = vmatpush1.msra.mxu0 0.0
    %2172 = vmatprep.subr.mxu0 0.0
    %2173 = vmatpush1.msra.mxu0 0.0
    %2174 = vmatprep.subr.mxu0 0.0
    %2175 = vmatpush1.msra.mxu0 0.0
    %2176 = vmatprep.subr.mxu0 0.0
    %2177 = vmatpush1.msra.mxu0 0.0
    %2178 = vmatprep.subr.mxu0 0.0
    %2179 = vmatpush1.msra.mxu0 0.0
    %2180 = vmatprep.subr.mxu0 0.0
    %2181 = vmatpush1.msra.mxu0 0.0
    %2182 = vmatprep.subr.mxu0 0.0
    %2183 = vmatpush1.msra.mxu0 0.0
    %2184 = vmatprep.subr.mxu0 0.0
    %2185 = vmatpush1.msra.mxu0 0.0
    %2186 = vmatprep.subr.mxu0 0.0
    %2187 = vmatpush1.msra.mxu0 0.0
    %2188 = vmatprep.subr.mxu0 0.0
    %2189 = vmatpush1.msra.mxu0 0.0
    %2190 = vmatprep.subr.mxu0 0.0
    %2191 = vmatpush1.msra.mxu0 0.0
    %2192 = vmatprep.subr.mxu0 0.0
    %2193 = vmatpush1.msra.mxu0 0.0
    %2194 = vmatprep.subr.mxu0 0.0
    %2195 = vmatpush1.msra.mxu0 0.0
    %2196 = vmatprep.subr.mxu0 0.0
    %2197 = vmatpush1.msra.mxu0 0.0
    %2198 = vmatprep.subr.mxu0 0.0
    %2199 = vmatpush1.msra.mxu0 0.0
    %2200 = vmatprep.subr.mxu0 0.0
    %2201 = vmatpush1.msra.mxu0 0.0
    %2202 = vmatprep.subr.mxu0 0.0
    %2203 = vmatpush1.msra.mxu0 0.0
    %2204 = vmatprep.mubr.f32.mxu0 0.0
    %2205 = vmatmul.mubr.f32.gmra.mrb[0].mxu0 %v2138
    %v2206 = vpop.f32.mrb[0].mxu0
    %v2207 = vadd.f32 0.0, %v2206
    %v2208 = vpop.f32.mrb[0].mxu0
    %2209 = vdwg.mxu0
    %v2210 = vadd.f32 %v2134, %v2207
    %v2211 = vld [vmem:[#allocation7 + $0x2] sm:$0x1]
    %v2212 = vlaneseq
    %v2213 = vshrl.u32 %v2212, 7
    %v2214 = vsub.s32 0, %v2213
    %v2215 = vrot.slane %v2211, %v2214
    %v2216 = vmul.f32 %v2210, %v2215
    %v2217 = vld [vmem:[#allocation7 + $0x8] sm:$0x1]
    %v2218 = vlaneseq
    %v2219 = vshrl.u32 %v2218, 7
    %v2220 = vsub.s32 0, %v2219
    %v2221 = vrot.slane %v2217, %v2220
    %v2222 = vadd.f32 %v2216, %v2221
    %v2223 = vmax.f32 %v2222, 0.0
    %v2224 = vld [vmem:[#allocation5 + $0x138] sm:$0xff]
    %v2225 = vld [vmem:[#allocation5 + $0x140] sm:$0xff]
    %v2226 = vld [vmem:[#allocation5 + $0x148] sm:$0xff]
    %v2227 = vld [vmem:[#allocation5 + $0x150] sm:$0xff]
    %v2228 = vld [vmem:[#allocation5 + $0x158] sm:$0xff]
    %v2229 = vld [vmem:[#allocation5 + $0x160] sm:$0xff]
    %v2230 = vld [vmem:[#allocation5 + $0x168] sm:$0xff]
    %v2231 = vld [vmem:[#allocation5 + $0x170] sm:$0xff]
    %v2233 = vsel %vm1100, %v2223, 0
    %2235 = vmatprep.subr.mxu0 0.0
    %2236 = vmatpush1.msra.mxu0 %v2224
    %2237 = vmatprep.subr.mxu0 0.0
    %2238 = vmatpush1.msra.mxu0 %v2225
    %2239 = vmatprep.subr.mxu0 0.0
    %2240 = vmatpush1.msra.mxu0 %v2226
    %2241 = vmatprep.subr.mxu0 0.0
    %2242 = vmatpush1.msra.mxu0 %v2227
    %2243 = vmatprep.subr.mxu0 0.0
    %2244 = vmatpush1.msra.mxu0 %v2228
    %2245 = vmatprep.subr.mxu0 0.0
    %2246 = vmatpush1.msra.mxu0 %v2229
    %2247 = vmatprep.subr.mxu0 0.0
    %2248 = vmatpush1.msra.mxu0 %v2230
    %2249 = vmatprep.subr.mxu0 0.0
    %2250 = vmatpush1.msra.mxu0 %v2231
    %2251 = vmatprep.subr.mxu0 0.0
    %2252 = vmatpush1.msra.mxu0 0.0
    %2253 = vmatprep.subr.mxu0 0.0
    %2254 = vmatpush1.msra.mxu0 0.0
    %2255 = vmatprep.subr.mxu0 0.0
    %2256 = vmatpush1.msra.mxu0 0.0
    %2257 = vmatprep.subr.mxu0 0.0
    %2258 = vmatpush1.msra.mxu0 0.0
    %2259 = vmatprep.subr.mxu0 0.0
    %2260 = vmatpush1.msra.mxu0 0.0
    %2261 = vmatprep.subr.mxu0 0.0
    %2262 = vmatpush1.msra.mxu0 0.0
    %2263 = vmatprep.subr.mxu0 0.0
    %2264 = vmatpush1.msra.mxu0 0.0
    %2265 = vmatprep.subr.mxu0 0.0
    %2266 = vmatpush1.msra.mxu0 0.0
    %2267 = vmatprep.subr.mxu0 0.0
    %2268 = vmatpush1.msra.mxu0 0.0
    %2269 = vmatprep.subr.mxu0 0.0
    %2270 = vmatpush1.msra.mxu0 0.0
    %2271 = vmatprep.subr.mxu0 0.0
    %2272 = vmatpush1.msra.mxu0 0.0
    %2273 = vmatprep.subr.mxu0 0.0
    %2274 = vmatpush1.msra.mxu0 0.0
    %2275 = vmatprep.subr.mxu0 0.0
    %2276 = vmatpush1.msra.mxu0 0.0
    %2277 = vmatprep.subr.mxu0 0.0
    %2278 = vmatpush1.msra.mxu0 0.0
    %2279 = vmatprep.subr.mxu0 0.0
    %2280 = vmatpush1.msra.mxu0 0.0
    %2281 = vmatprep.subr.mxu0 0.0
    %2282 = vmatpush1.msra.mxu0 0.0
    %2283 = vmatprep.subr.mxu0 0.0
    %2284 = vmatpush1.msra.mxu0 0.0
    %2285 = vmatprep.subr.mxu0 0.0
    %2286 = vmatpush1.msra.mxu0 0.0
    %2287 = vmatprep.subr.mxu0 0.0
    %2288 = vmatpush1.msra.mxu0 0.0
    %2289 = vmatprep.subr.mxu0 0.0
    %2290 = vmatpush1.msra.mxu0 0.0
    %2291 = vmatprep.subr.mxu0 0.0
    %2292 = vmatpush1.msra.mxu0 0.0
    %2293 = vmatprep.subr.mxu0 0.0
    %2294 = vmatpush1.msra.mxu0 0.0
    %2295 = vmatprep.subr.mxu0 0.0
    %2296 = vmatpush1.msra.mxu0 0.0
    %2297 = vmatprep.subr.mxu0 0.0
    %2298 = vmatpush1.msra.mxu0 0.0
    %2299 = vmatprep.mubr.f32.mxu0 0.0
    %2300 = vmatmul.mubr.f32.gmra.mrb[0].mxu0 %v2233
    %v2301 = vpop.f32.mrb[0].mxu0
    %v2302 = vadd.f32 0.0, %v2301
    %v2303 = vpop.f32.mrb[0].mxu0
    %2304 = vdwg.mxu0
    %v2305 = vld [vmem:[#allocation5 + $0x178] sm:$0xff]
    %v2306 = vld [vmem:[#allocation5 + $0x180] sm:$0xff]
    %v2307 = vld [vmem:[#allocation5 + $0x188] sm:$0xff]
    %v2308 = vld [vmem:[#allocation5 + $0x190] sm:$0xff]
    %v2309 = vld [vmem:[#allocation5 + $0x198] sm:$0xff]
    %v2310 = vld [vmem:[#allocation5 + $0x1a0] sm:$0xff]
    %v2311 = vld [vmem:[#allocation5 + $0x1a8] sm:$0xff]
    %v2312 = vld [vmem:[#allocation5 + $0x1b0] sm:$0xff]
    %v2313 = vld [vmem:[#allocation5 + $0x1b8] sm:$0xff]
    %v2314 = vld [vmem:[#allocation5 + $0x1c0] sm:$0xff]
    %v2315 = vld [vmem:[#allocation5 + $0x1c8] sm:$0xff]
    %v2316 = vld [vmem:[#allocation5 + $0x1d0] sm:$0xff]
    %v2317 = vld [vmem:[#allocation5 + $0x1d8] sm:$0xff]
    %v2318 = vld [vmem:[#allocation5 + $0x1e0] sm:$0xff]
    %v2319 = vld [vmem:[#allocation5 + $0x1e8] sm:$0xff]
    %v2320 = vld [vmem:[#allocation5 + $0x1f0] sm:$0xff]
    %2321 = vmatprep.subr.mxu0 0.0
    %2322 = vmatpush1.msra.mxu0 %v2313
    %2323 = vmatprep.subr.mxu0 0.0
    %2324 = vmatpush1.msra.mxu0 %v2314
    %2325 = vmatprep.subr.mxu0 0.0
    %2326 = vmatpush1.msra.mxu0 %v2315
    %2327 = vmatprep.subr.mxu0 0.0
    %2328 = vmatpush1.msra.mxu0 %v2316
    %2329 = vmatprep.subr.mxu0 0.0
    %2330 = vmatpush1.msra.mxu0 %v2317
    %2331 = vmatprep.subr.mxu0 0.0
    %2332 = vmatpush1.msra.mxu0 %v2318
    %2333 = vmatprep.subr.mxu0 0.0
    %2334 = vmatpush1.msra.mxu0 %v2319
    %2335 = vmatprep.subr.mxu0 0.0
    %2336 = vmatpush1.msra.mxu0 %v2320
    %2337 = vmatprep.subr.mxu0 0.0
    %2338 = vmatpush1.msra.mxu0 0.0
    %2339 = vmatprep.subr.mxu0 0.0
    %2340 = vmatpush1.msra.mxu0 0.0
    %2341 = vmatprep.subr.mxu0 0.0
    %2342 = vmatpush1.msra.mxu0 0.0
    %2343 = vmatprep.subr.mxu0 0.0
    %2344 = vmatpush1.msra.mxu0 0.0
    %2345 = vmatprep.subr.mxu0 0.0
    %2346 = vmatpush1.msra.mxu0 0.0
    %2347 = vmatprep.subr.mxu0 0.0
    %2348 = vmatpush1.msra.mxu0 0.0
    %2349 = vmatprep.subr.mxu0 0.0
    %2350 = vmatpush1.msra.mxu0 0.0
    %2351 = vmatprep.subr.mxu0 0.0
    %2352 = vmatpush1.msra.mxu0 0.0
    %2353 = vmatprep.subr.mxu0 0.0
    %2354 = vmatpush1.msra.mxu0 0.0
    %2355 = vmatprep.subr.mxu0 0.0
    %2356 = vmatpush1.msra.mxu0 0.0
    %2357 = vmatprep.subr.mxu0 0.0
    %2358 = vmatpush1.msra.mxu0 0.0
    %2359 = vmatprep.subr.mxu0 0.0
    %2360 = vmatpush1.msra.mxu0 0.0
    %2361 = vmatprep.subr.mxu0 0.0
    %2362 = vmatpush1.msra.mxu0 0.0
    %2363 = vmatprep.subr.mxu0 0.0
    %2364 = vmatpush1.msra.mxu0 0.0
    %2365 = vmatprep.subr.mxu0 0.0
    %2366 = vmatpush1.msra.mxu0 0.0
    %2367 = vmatprep.subr.mxu0 0.0
    %2368 = vmatpush1.msra.mxu0 0.0
    %2369 = vmatprep.subr.mxu0 0.0
    %2370 = vmatpush1.msra.mxu0 0.0
    %2371 = vmatprep.subr.mxu0 0.0
    %2372 = vmatpush1.msra.mxu0 0.0
    %2373 = vmatprep.subr.mxu0 0.0
    %2374 = vmatpush1.msra.mxu0 0.0
    %2375 = vmatprep.subr.mxu0 0.0
    %2376 = vmatpush1.msra.mxu0 0.0
    %2377 = vmatprep.subr.mxu0 0.0
    %2378 = vmatpush1.msra.mxu0 0.0
    %2379 = vmatprep.subr.mxu0 0.0
    %2380 = vmatpush1.msra.mxu0 0.0
    %2381 = vmatprep.subr.mxu0 0.0
    %2382 = vmatpush1.msra.mxu0 0.0
    %2383 = vmatprep.subr.mxu0 0.0
    %2384 = vmatpush1.msra.mxu0 0.0
    %2385 = vmatprep.mubr.f32.mxu0 0.0
    %2386 = vmatmul.mubr.f32.gmra.mrb[0].mxu0 %v2233
    %v2387 = vpop.f32.mrb[0].mxu0
    %v2388 = vadd.f32 0.0, %v2387
    %v2389 = vpop.f32.mrb[0].mxu0
    %2390 = vdwg.mxu0
    %2391 = vmatprep.subr.mxu0 0.0
    %2392 = vmatpush1.msra.mxu0 %v2302
    %2393 = vmatprep.subr.mxu0 0.0
    %2394 = vmatpush1.msra.mxu0 0.0
    %2395 = vmatprep.subr.mxu0 0.0
    %2396 = vmatpush1.msra.mxu0 0.0
    %2397 = vmatprep.subr.mxu0 0.0
    %2398 = vmatpush1.msra.mxu0 0.0
    %2399 = vmatprep.subr.mxu0 0.0
    %2400 = vmatpush1.msra.mxu0 0.0
    %2401 = vmatprep.subr.mxu0 0.0
    %2402 = vmatpush1.msra.mxu0 0.0
    %2403 = vmatprep.subr.mxu0 0.0
    %2404 = vmatpush1.msra.mxu0 0.0
    %2405 = vmatprep.subr.mxu0 0.0
    %2406 = vmatpush1.msra.mxu0 0.0
    %2407 = vmatprep.subr.mxu0 0.0
    %2408 = vmatpush1.msra.mxu0 0.0
    %2409 = vmatprep.subr.mxu0 0.0
    %2410 = vmatpush1.msra.mxu0 0.0
    %2411 = vmatprep.subr.mxu0 0.0
    %2412 = vmatpush1.msra.mxu0 0.0
    %2413 = vmatprep.subr.mxu0 0.0
    %2414 = vmatpush1.msra.mxu0 0.0
    %2415 = vmatprep.subr.mxu0 0.0
    %2416 = vmatpush1.msra.mxu0 0.0
    %2417 = vmatprep.subr.mxu0 0.0
    %2418 = vmatpush1.msra.mxu0 0.0
    %2419 = vmatprep.subr.mxu0 0.0
    %2420 = vmatpush1.msra.mxu0 0.0
    %2421 = vmatprep.subr.mxu0 0.0
    %2422 = vmatpush1.msra.mxu0 0.0
    %2423 = vmatprep.subr.mxu0 0.0
    %2424 = vmatpush1.msra.mxu0 0.0
    %2425 = vmatprep.subr.mxu0 0.0
    %2426 = vmatpush1.msra.mxu0 0.0
    %2427 = vmatprep.subr.mxu0 0.0
    %2428 = vmatpush1.msra.mxu0 0.0
    %2429 = vmatprep.subr.mxu0 0.0
    %2430 = vmatpush1.msra.mxu0 0.0
    %2431 = vmatprep.subr.mxu0 0.0
    %2432 = vmatpush1.msra.mxu0 0.0
    %2433 = vmatprep.subr.mxu0 0.0
    %2434 = vmatpush1.msra.mxu0 0.0
    %2435 = vmatprep.subr.mxu0 0.0
    %2436 = vmatpush1.msra.mxu0 0.0
    %2437 = vmatprep.subr.mxu0 0.0
    %2438 = vmatpush1.msra.mxu0 0.0
    %2439 = vmatprep.subr.mxu0 0.0
    %2440 = vmatpush1.msra.mxu0 0.0
    %2441 = vmatprep.subr.mxu0 0.0
    %2442 = vmatpush1.msra.mxu0 0.0
    %2443 = vmatprep.subr.mxu0 0.0
    %2444 = vmatpush1.msra.mxu0 0.0
    %2445 = vmatprep.subr.mxu0 0.0
    %2446 = vmatpush1.msra.mxu0 0.0
    %2447 = vmatprep.subr.mxu0 0.0
    %2448 = vmatpush1.msra.mxu0 0.0
    %2449 = vmatprep.subr.mxu0 0.0
    %2450 = vmatpush1.msra.mxu0 0.0
    %2451 = vmatprep.subr.mxu0 0.0
    %2452 = vmatpush1.msra.mxu0 0.0
    %2453 = vmatprep.subr.mxu0 0.0
    %2454 = vmatpush1.msra.mxu0 0.0
    %2455 = vmatprep.mubr.f32.mxu0 0.0
    %2456 = vmatmul.mubr.f32.gmra.mrb[0].mxu0 %v1995
    %v2457 = vpop.f32.mrb[0].mxu0
    %v2458 = vadd.f32 0.0, %v2457
    %v2459 = vpop.f32.mrb[0].mxu0
    %2460 = vdwg.mxu0
    %2461 = vmatprep.subr.mxu0 0.0
    %2462 = vmatpush1.msra.mxu0 %v2305
    %2463 = vmatprep.subr.mxu0 0.0
    %2464 = vmatpush1.msra.mxu0 %v2306
    %2465 = vmatprep.subr.mxu0 0.0
    %2466 = vmatpush1.msra.mxu0 %v2307
    %2467 = vmatprep.subr.mxu0 0.0
    %2468 = vmatpush1.msra.mxu0 %v2308
    %2469 = vmatprep.subr.mxu0 0.0
    %2470 = vmatpush1.msra.mxu0 %v2309
    %2471 = vmatprep.subr.mxu0 0.0
    %2472 = vmatpush1.msra.mxu0 %v2310
    %2473 = vmatprep.subr.mxu0 0.0
    %2474 = vmatpush1.msra.mxu0 %v2311
    %2475 = vmatprep.subr.mxu0 0.0
    %2476 = vmatpush1.msra.mxu0 %v2312
    %2477 = vmatprep.subr.mxu0 0.0
    %2478 = vmatpush1.msra.mxu0 0.0
    %2479 = vmatprep.subr.mxu0 0.0
    %2480 = vmatpush1.msra.mxu0 0.0
    %2481 = vmatprep.subr.mxu0 0.0
    %2482 = vmatpush1.msra.mxu0 0.0
    %2483 = vmatprep.subr.mxu0 0.0
    %2484 = vmatpush1.msra.mxu0 0.0
    %2485 = vmatprep.subr.mxu0 0.0
    %2486 = vmatpush1.msra.mxu0 0.0
    %2487 = vmatprep.subr.mxu0 0.0
    %2488 = vmatpush1.msra.mxu0 0.0
    %2489 = vmatprep.subr.mxu0 0.0
    %2490 = vmatpush1.msra.mxu0 0.0
    %2491 = vmatprep.subr.mxu0 0.0
    %2492 = vmatpush1.msra.mxu0 0.0
    %2493 = vmatprep.subr.mxu0 0.0
    %2494 = vmatpush1.msra.mxu0 0.0
    %2495 = vmatprep.subr.mxu0 0.0
    %2496 = vmatpush1.msra.mxu0 0.0
    %2497 = vmatprep.subr.mxu0 0.0
    %2498 = vmatpush1.msra.mxu0 0.0
    %2499 = vmatprep.subr.mxu0 0.0
    %2500 = vmatpush1.msra.mxu0 0.0
    %2501 = vmatprep.subr.mxu0 0.0
    %2502 = vmatpush1.msra.mxu0 0.0
    %2503 = vmatprep.subr.mxu0 0.0
    %2504 = vmatpush1.msra.mxu0 0.0
    %2505 = vmatprep.subr.mxu0 0.0
    %2506 = vmatpush1.msra.mxu0 0.0
    %2507 = vmatprep.subr.mxu0 0.0
    %2508 = vmatpush1.msra.mxu0 0.0
    %2509 = vmatprep.subr.mxu0 0.0
    %2510 = vmatpush1.msra.mxu0 0.0
    %2511 = vmatprep.subr.mxu0 0.0
    %2512 = vmatpush1.msra.mxu0 0.0
    %2513 = vmatprep.subr.mxu0 0.0
    %2514 = vmatpush1.msra.mxu0 0.0
    %2515 = vmatprep.subr.mxu0 0.0
    %2516 = vmatpush1.msra.mxu0 0.0
    %2517 = vmatprep.subr.mxu0 0.0
    %2518 = vmatpush1.msra.mxu0 0.0
    %2519 = vmatprep.subr.mxu0 0.0
    %2520 = vmatpush1.msra.mxu0 0.0
    %2521 = vmatprep.subr.mxu0 0.0
    %2522 = vmatpush1.msra.mxu0 0.0
    %2523 = vmatprep.subr.mxu0 0.0
    %2524 = vmatpush1.msra.mxu0 0.0
    %2525 = vmatprep.mubr.f32.mxu0 0.0
    %2526 = vmatmul.mubr.f32.gmra.mrb[0].mxu0 %v2233
    %v2527 = vpop.f32.mrb[0].mxu0
    %v2528 = vadd.f32 %v2458, %v2527
    %v2529 = vpop.f32.mrb[0].mxu0
    %2530 = vdwg.mxu0
    %2531 = vmatprep.subr.mxu0 0.0
    %2532 = vmatpush1.msra.mxu0 %v2388
    %2533 = vmatprep.subr.mxu0 0.0
    %2534 = vmatpush1.msra.mxu0 0.0
    %2535 = vmatprep.subr.mxu0 0.0
    %2536 = vmatpush1.msra.mxu0 0.0
    %2537 = vmatprep.subr.mxu0 0.0
    %2538 = vmatpush1.msra.mxu0 0.0
    %2539 = vmatprep.subr.mxu0 0.0
    %2540 = vmatpush1.msra.mxu0 0.0
    %2541 = vmatprep.subr.mxu0 0.0
    %2542 = vmatpush1.msra.mxu0 0.0
    %2543 = vmatprep.subr.mxu0 0.0
    %2544 = vmatpush1.msra.mxu0 0.0
    %2545 = vmatprep.subr.mxu0 0.0
    %2546 = vmatpush1.msra.mxu0 0.0
    %2547 = vmatprep.subr.mxu0 0.0
    %2548 = vmatpush1.msra.mxu0 0.0
    %2549 = vmatprep.subr.mxu0 0.0
    %2550 = vmatpush1.msra.mxu0 0.0
    %2551 = vmatprep.subr.mxu0 0.0
    %2552 = vmatpush1.msra.mxu0 0.0
    %2553 = vmatprep.subr.mxu0 0.0
    %2554 = vmatpush1.msra.mxu0 0.0
    %2555 = vmatprep.subr.mxu0 0.0
    %2556 = vmatpush1.msra.mxu0 0.0
    %2557 = vmatprep.subr.mxu0 0.0
    %2558 = vmatpush1.msra.mxu0 0.0
    %2559 = vmatprep.subr.mxu0 0.0
    %2560 = vmatpush1.msra.mxu0 0.0
    %2561 = vmatprep.subr.mxu0 0.0
    %2562 = vmatpush1.msra.mxu0 0.0
    %2563 = vmatprep.subr.mxu0 0.0
    %2564 = vmatpush1.msra.mxu0 0.0
    %2565 = vmatprep.subr.mxu0 0.0
    %2566 = vmatpush1.msra.mxu0 0.0
    %2567 = vmatprep.subr.mxu0 0.0
    %2568 = vmatpush1.msra.mxu0 0.0
    %2569 = vmatprep.subr.mxu0 0.0
    %2570 = vmatpush1.msra.mxu0 0.0
    %2571 = vmatprep.subr.mxu0 0.0
    %2572 = vmatpush1.msra.mxu0 0.0
    %2573 = vmatprep.subr.mxu0 0.0
    %2574 = vmatpush1.msra.mxu0 0.0
    %2575 = vmatprep.subr.mxu0 0.0
    %2576 = vmatpush1.msra.mxu0 0.0
    %2577 = vmatprep.subr.mxu0 0.0
    %2578 = vmatpush1.msra.mxu0 0.0
    %2579 = vmatprep.subr.mxu0 0.0
    %2580 = vmatpush1.msra.mxu0 0.0
    %2581 = vmatprep.subr.mxu0 0.0
    %2582 = vmatpush1.msra.mxu0 0.0
    %2583 = vmatprep.subr.mxu0 0.0
    %2584 = vmatpush1.msra.mxu0 0.0
    %2585 = vmatprep.subr.mxu0 0.0
    %2586 = vmatpush1.msra.mxu0 0.0
    %2587 = vmatprep.subr.mxu0 0.0
    %2588 = vmatpush1.msra.mxu0 0.0
    %2589 = vmatprep.subr.mxu0 0.0
    %2590 = vmatpush1.msra.mxu0 0.0
    %2591 = vmatprep.subr.mxu0 0.0
    %2592 = vmatpush1.msra.mxu0 0.0
    %2593 = vmatprep.subr.mxu0 0.0
    %2594 = vmatpush1.msra.mxu0 0.0
    %2595 = vmatprep.mubr.f32.mxu0 0.0
    %2596 = vmatmul.mubr.f32.gmra.mrb[0].mxu0 %v2138
    %v2597 = vpop.f32.mrb[0].mxu0
    %v2598 = vadd.f32 0.0, %v2597
    %v2599 = vpop.f32.mrb[0].mxu0
    %2600 = vdwg.mxu0
    %v2601 = vadd.f32 %v2528, %v2598
    %v2602 = vld [vmem:[#allocation7 + $0x3] sm:$0x1]
    %v2603 = vlaneseq
    %v2604 = vshrl.u32 %v2603, 7
    %v2605 = vsub.s32 0, %v2604
    %v2606 = vrot.slane %v2602, %v2605
    %v2607 = vmul.f32 %v2601, %v2606
    %v2608 = vld [vmem:[#allocation7 + $0x9] sm:$0x1]
    %v2609 = vlaneseq
    %v2610 = vshrl.u32 %v2609, 7
    %v2611 = vsub.s32 0, %v2610
    %v2612 = vrot.slane %v2608, %v2611
    %v2613 = vadd.f32 %v2607, %v2612
    %v2614 = vmax.f32 %v2613, 0.0
    %v2615 = vld [vmem:[#allocation25] sm:$0xff]
    %v2616 = vld [vmem:[#allocation25 + $0x8] sm:$0xff]
    %v2618 = vsel %vm678, %v2615, 0
    %v2621 = vsel %vm678, %v2616, 0
    %2623 = vmatprep.subr.mxu0 0.0
    %2624 = vmatpush1.msra.mxu0 %v2614
    %2625 = vmatprep.subr.mxu0 0.0
    %2626 = vmatpush1.msra.mxu0 0.0
    %2627 = vmatprep.subr.mxu0 0.0
    %2628 = vmatpush1.msra.mxu0 0.0
    %2629 = vmatprep.subr.mxu0 0.0
    %2630 = vmatpush1.msra.mxu0 0.0
    %2631 = vmatprep.subr.mxu0 0.0
    %2632 = vmatpush1.msra.mxu0 0.0
    %2633 = vmatprep.subr.mxu0 0.0
    %2634 = vmatpush1.msra.mxu0 0.0
    %2635 = vmatprep.subr.mxu0 0.0
    %2636 = vmatpush1.msra.mxu0 0.0
    %2637 = vmatprep.subr.mxu0 0.0
    %2638 = vmatpush1.msra.mxu0 0.0
    %2639 = vmatprep.subr.mxu0 0.0
    %2640 = vmatpush1.msra.mxu0 0.0
    %2641 = vmatprep.subr.mxu0 0.0
    %2642 = vmatpush1.msra.mxu0 0.0
    %2643 = vmatprep.subr.mxu0 0.0
    %2644 = vmatpush1.msra.mxu0 0.0
    %2645 = vmatprep.subr.mxu0 0.0
    %2646 = vmatpush1.msra.mxu0 0.0
    %2647 = vmatprep.subr.mxu0 0.0
    %2648 = vmatpush1.msra.mxu0 0.0
    %2649 = vmatprep.subr.mxu0 0.0
    %2650 = vmatpush1.msra.mxu0 0.0
    %2651 = vmatprep.subr.mxu0 0.0
    %2652 = vmatpush1.msra.mxu0 0.0
    %2653 = vmatprep.subr.mxu0 0.0
    %2654 = vmatpush1.msra.mxu0 0.0
    %2655 = vmatprep.subr.mxu0 0.0
    %2656 = vmatpush1.msra.mxu0 0.0
    %2657 = vmatprep.subr.mxu0 0.0
    %2658 = vmatpush1.msra.mxu0 0.0
    %2659 = vmatprep.subr.mxu0 0.0
    %2660 = vmatpush1.msra.mxu0 0.0
    %2661 = vmatprep.subr.mxu0 0.0
    %2662 = vmatpush1.msra.mxu0 0.0
    %2663 = vmatprep.subr.mxu0 0.0
    %2664 = vmatpush1.msra.mxu0 0.0
    %2665 = vmatprep.subr.mxu0 0.0
    %2666 = vmatpush1.msra.mxu0 0.0
    %2667 = vmatprep.subr.mxu0 0.0
    %2668 = vmatpush1.msra.mxu0 0.0
    %2669 = vmatprep.subr.mxu0 0.0
    %2670 = vmatpush1.msra.mxu0 0.0
    %2671 = vmatprep.subr.mxu0 0.0
    %2672 = vmatpush1.msra.mxu0 0.0
    %2673 = vmatprep.subr.mxu0 0.0
    %2674 = vmatpush1.msra.mxu0 0.0
    %2675 = vmatprep.subr.mxu0 0.0
    %2676 = vmatpush1.msra.mxu0 0.0
    %2677 = vmatprep.subr.mxu0 0.0
    %2678 = vmatpush1.msra.mxu0 0.0
    %2679 = vmatprep.subr.mxu0 0.0
    %2680 = vmatpush1.msra.mxu0 0.0
    %2681 = vmatprep.subr.mxu0 0.0
    %2682 = vmatpush1.msra.mxu0 0.0
    %2683 = vmatprep.subr.mxu0 0.0
    %2684 = vmatpush1.msra.mxu0 0.0
    %2685 = vmatprep.subr.mxu0 0.0
    %2686 = vmatpush1.msra.mxu0 0.0
    %2687 = vmatprep.mubr.f32.mxu0 0.0
    %2688 = vmatmul.mubr.f32.gmra.mrb[0].mxu0 %v2618
    %v2689 = vpop.f32.mrb[0].mxu0
    %v2690 = vadd.f32 0.0, %v2689
    %v2691 = vpop.f32.mrb[0].mxu0
    %2692 = vmatprep.mubr.f32.mxu0 0.0
    %2693 = vmatmul.mubr.f32.gmra.mrb[0].mxu0 %v2621
    %v2694 = vpop.f32.mrb[0].mxu0
    %v2695 = vadd.f32 0.0, %v2694
    %v2696 = vpop.f32.mrb[0].mxu0
    %2697 = vdwg.mxu0
    %v2698 = vld [vmem:[#allocation26] sm:$0xff]
    %v2699 = vld [vmem:[#allocation26 + $0x8] sm:$0xff]
    %v2700 = vld [vmem:[#allocation26 + $0x10] sm:$0xff]
    %v2701 = vld [vmem:[#allocation26 + $0x18] sm:$0xff]
    %v2702 = vld [vmem:[#allocation26 + $0x20] sm:$0xff]
    %v2703 = vld [vmem:[#allocation26 + $0x28] sm:$0xff]
    %v2704 = vld [vmem:[#allocation26 + $0x30] sm:$0xff]
    %v2705 = vld [vmem:[#allocation26 + $0x38] sm:$0xff]
    %v2707 = vsel %vm1100, %v2690, 0
    %v2710 = vsel %vm1100, %v2695, 0
    %2712 = vmatprep.subr.mxu0 0.0
    %2713 = vmatpush1.msra.mxu0 %v2698
    %2714 = vmatprep.subr.mxu0 0.0
    %2715 = vmatpush1.msra.mxu0 %v2699
    %2716 = vmatprep.subr.mxu0 0.0
    %2717 = vmatpush1.msra.mxu0 %v2700
    %2718 = vmatprep.subr.mxu0 0.0
    %2719 = vmatpush1.msra.mxu0 %v2701
    %2720 = vmatprep.subr.mxu0 0.0
    %2721 = vmatpush1.msra.mxu0 %v2702
    %2722 = vmatprep.subr.mxu0 0.0
    %2723 = vmatpush1.msra.mxu0 %v2703
    %2724 = vmatprep.subr.mxu0 0.0
    %2725 = vmatpush1.msra.mxu0 %v2704
    %2726 = vmatprep.subr.mxu0 0.0
    %2727 = vmatpush1.msra.mxu0 %v2705
    %2728 = vmatprep.subr.mxu0 0.0
    %2729 = vmatpush1.msra.mxu0 0.0
    %2730 = vmatprep.subr.mxu0 0.0
    %2731 = vmatpush1.msra.mxu0 0.0
    %2732 = vmatprep.subr.mxu0 0.0
    %2733 = vmatpush1.msra.mxu0 0.0
    %2734 = vmatprep.subr.mxu0 0.0
    %2735 = vmatpush1.msra.mxu0 0.0
    %2736 = vmatprep.subr.mxu0 0.0
    %2737 = vmatpush1.msra.mxu0 0.0
    %2738 = vmatprep.subr.mxu0 0.0
    %2739 = vmatpush1.msra.mxu0 0.0
    %2740 = vmatprep.subr.mxu0 0.0
    %2741 = vmatpush1.msra.mxu0 0.0
    %2742 = vmatprep.subr.mxu0 0.0
    %2743 = vmatpush1.msra.mxu0 0.0
    %2744 = vmatprep.subr.mxu0 0.0
    %2745 = vmatpush1.msra.mxu0 0.0
    %2746 = vmatprep.subr.mxu0 0.0
    %2747 = vmatpush1.msra.mxu0 0.0
    %2748 = vmatprep.subr.mxu0 0.0
    %2749 = vmatpush1.msra.mxu0 0.0
    %2750 = vmatprep.subr.mxu0 0.0
    %2751 = vmatpush1.msra.mxu0 0.0
    %2752 = vmatprep.subr.mxu0 0.0
    %2753 = vmatpush1.msra.mxu0 0.0
    %2754 = vmatprep.subr.mxu0 0.0
    %2755 = vmatpush1.msra.mxu0 0.0
    %2756 = vmatprep.subr.mxu0 0.0
    %2757 = vmatpush1.msra.mxu0 0.0
    %2758 = vmatprep.subr.mxu0 0.0
    %2759 = vmatpush1.msra.mxu0 0.0
    %2760 = vmatprep.subr.mxu0 0.0
    %2761 = vmatpush1.msra.mxu0 0.0
    %2762 = vmatprep.subr.mxu0 0.0
    %2763 = vmatpush1.msra.mxu0 0.0
    %2764 = vmatprep.subr.mxu0 0.0
    %2765 = vmatpush1.msra.mxu0 0.0
    %2766 = vmatprep.subr.mxu0 0.0
    %2767 = vmatpush1.msra.mxu0 0.0
    %2768 = vmatprep.subr.mxu0 0.0
    %2769 = vmatpush1.msra.mxu0 0.0
    %2770 = vmatprep.subr.mxu0 0.0
    %2771 = vmatpush1.msra.mxu0 0.0
    %2772 = vmatprep.subr.mxu0 0.0
    %2773 = vmatpush1.msra.mxu0 0.0
    %2774 = vmatprep.subr.mxu0 0.0
    %2775 = vmatpush1.msra.mxu0 0.0
    %2776 = vmatprep.mubr.f32.mxu0 0.0
    %2777 = vmatmul.mubr.f32.gmra.mrb[0].mxu0 %v2707
    %v2778 = vpop.f32.mrb[0].mxu0
    %v2779 = vadd.f32 0.0, %v2778
    %v2780 = vpop.f32.mrb[0].mxu0
    %2781 = vmatprep.mubr.f32.mxu0 0.0
    %2782 = vmatmul.mubr.f32.gmra.mrb[0].mxu0 %v2710
    %v2783 = vpop.f32.mrb[0].mxu0
    %v2784 = vadd.f32 0.0, %v2783
    %v2785 = vpop.f32.mrb[0].mxu0
    %2786 = vdwg.mxu0
    %v2787 = vld [vmem:[#allocation5 + $0x1f8] sm:$0xff]
    %v2788 = vld [vmem:[#allocation5 + $0x200] sm:$0xff]
    %v2789 = vld [vmem:[#allocation5 + $0x208] sm:$0xff]
    %v2790 = vld [vmem:[#allocation5 + $0x210] sm:$0xff]
    %v2791 = vld [vmem:[#allocation5 + $0x218] sm:$0xff]
    %v2792 = vld [vmem:[#allocation5 + $0x220] sm:$0xff]
    %v2793 = vld [vmem:[#allocation5 + $0x228] sm:$0xff]
    %v2794 = vld [vmem:[#allocation5 + $0x230] sm:$0xff]
    %v2795 = vld [vmem:[#allocation5 + $0x238] sm:$0xff]
    %v2796 = vld [vmem:[#allocation5 + $0x240] sm:$0xff]
    %v2797 = vld [vmem:[#allocation5 + $0x248] sm:$0xff]
    %v2798 = vld [vmem:[#allocation5 + $0x250] sm:$0xff]
    %v2799 = vld [vmem:[#allocation5 + $0x258] sm:$0xff]
    %v2800 = vld [vmem:[#allocation5 + $0x260] sm:$0xff]
    %v2801 = vld [vmem:[#allocation5 + $0x268] sm:$0xff]
    %v2802 = vld [vmem:[#allocation5 + $0x270] sm:$0xff]
    %2803 = vmatprep.subr.mxu0 0.0
    %2804 = vmatpush1.msra.mxu0 %v2787
    %2805 = vmatprep.subr.mxu0 0.0
    %2806 = vmatpush1.msra.mxu0 %v2788
    %2807 = vmatprep.subr.mxu0 0.0
    %2808 = vmatpush1.msra.mxu0 %v2789
    %2809 = vmatprep.subr.mxu0 0.0
    %2810 = vmatpush1.msra.mxu0 %v2790
    %2811 = vmatprep.subr.mxu0 0.0
    %2812 = vmatpush1.msra.mxu0 %v2791
    %2813 = vmatprep.subr.mxu0 0.0
    %2814 = vmatpush1.msra.mxu0 %v2792
    %2815 = vmatprep.subr.mxu0 0.0
    %2816 = vmatpush1.msra.mxu0 %v2793
    %2817 = vmatprep.subr.mxu0 0.0
    %2818 = vmatpush1.msra.mxu0 %v2794
    %2819 = vmatprep.subr.mxu0 0.0
    %2820 = vmatpush1.msra.mxu0 %v2795
    %2821 = vmatprep.subr.mxu0 0.0
    %2822 = vmatpush1.msra.mxu0 %v2796
    %2823 = vmatprep.subr.mxu0 0.0
    %2824 = vmatpush1.msra.mxu0 %v2797
    %2825 = vmatprep.subr.mxu0 0.0
    %2826 = vmatpush1.msra.mxu0 %v2798
    %2827 = vmatprep.subr.mxu0 0.0
    %2828 = vmatpush1.msra.mxu0 %v2799
    %2829 = vmatprep.subr.mxu0 0.0
    %2830 = vmatpush1.msra.mxu0 %v2800
    %2831 = vmatprep.subr.mxu0 0.0
    %2832 = vmatpush1.msra.mxu0 %v2801
    %2833 = vmatprep.subr.mxu0 0.0
    %2834 = vmatpush1.msra.mxu0 %v2802
    %2835 = vmatprep.subr.mxu0 0.0
    %2836 = vmatpush1.msra.mxu0 0.0
    %2837 = vmatprep.subr.mxu0 0.0
    %2838 = vmatpush1.msra.mxu0 0.0
    %2839 = vmatprep.subr.mxu0 0.0
    %2840 = vmatpush1.msra.mxu0 0.0
    %2841 = vmatprep.subr.mxu0 0.0
    %2842 = vmatpush1.msra.mxu0 0.0
    %2843 = vmatprep.subr.mxu0 0.0
    %2844 = vmatpush1.msra.mxu0 0.0
    %2845 = vmatprep.subr.mxu0 0.0
    %2846 = vmatpush1.msra.mxu0 0.0
    %2847 = vmatprep.subr.mxu0 0.0
    %2848 = vmatpush1.msra.mxu0 0.0
    %2849 = vmatprep.subr.mxu0 0.0
    %2850 = vmatpush1.msra.mxu0 0.0
    %2851 = vmatprep.subr.mxu0 0.0
    %2852 = vmatpush1.msra.mxu0 0.0
    %2853 = vmatprep.subr.mxu0 0.0
    %2854 = vmatpush1.msra.mxu0 0.0
    %2855 = vmatprep.subr.mxu0 0.0
    %2856 = vmatpush1.msra.mxu0 0.0
    %2857 = vmatprep.subr.mxu0 0.0
    %2858 = vmatpush1.msra.mxu0 0.0
    %2859 = vmatprep.subr.mxu0 0.0
    %2860 = vmatpush1.msra.mxu0 0.0
    %2861 = vmatprep.subr.mxu0 0.0
    %2862 = vmatpush1.msra.mxu0 0.0
    %2863 = vmatprep.subr.mxu0 0.0
    %2864 = vmatpush1.msra.mxu0 0.0
    %2865 = vmatprep.subr.mxu0 0.0
    %2866 = vmatpush1.msra.mxu0 0.0
    %2867 = vmatprep.mubr.f32.mxu0 0.0
    %2868 = vmatmul.mubr.f32.gmra.mrb[0].mxu0 %v2779
    %v2869 = vpop.f32.mrb[0].mxu0
    %v2870 = vadd.f32 0.0, %v2869
    %v2871 = vpop.f32.mrb[0].mxu0
    %2872 = vmatprep.mubr.f32.mxu0 0.0
    %2873 = vmatmul.mubr.f32.gmra.mrb[0].mxu0 %v2784
    %v2874 = vpop.f32.mrb[0].mxu0
    %v2875 = vadd.f32 0.0, %v2874
    %v2876 = vpop.f32.mrb[0].mxu0
    %2877 = vdwg.mxu0
    %v2878 = vld [vmem:[#allocation5 + $0x278] sm:$0xff]
    %v2879 = vld [vmem:[#allocation5 + $0x280] sm:$0xff]
    %v2880 = vld [vmem:[#allocation5 + $0x288] sm:$0xff]
    %v2881 = vld [vmem:[#allocation5 + $0x290] sm:$0xff]
    %v2882 = vld [vmem:[#allocation5 + $0x298] sm:$0xff]
    %v2883 = vld [vmem:[#allocation5 + $0x2a0] sm:$0xff]
    %v2884 = vld [vmem:[#allocation5 + $0x2a8] sm:$0xff]
    %v2885 = vld [vmem:[#allocation5 + $0x2b0] sm:$0xff]
    %v2886 = vld [vmem:[#allocation5 + $0x2b8] sm:$0xff]
    %v2887 = vld [vmem:[#allocation5 + $0x2c0] sm:$0xff]
    %v2888 = vld [vmem:[#allocation5 + $0x2c8] sm:$0xff]
    %v2889 = vld [vmem:[#allocation5 + $0x2d0] sm:$0xff]
    %v2890 = vld [vmem:[#allocation5 + $0x2d8] sm:$0xff]
    %v2891 = vld [vmem:[#allocation5 + $0x2e0] sm:$0xff]
    %v2892 = vld [vmem:[#allocation5 + $0x2e8] sm:$0xff]
    %v2893 = vld [vmem:[#allocation5 + $0x2f0] sm:$0xff]
    %v2894 = vld [vmem:[#allocation5 + $0x2f8] sm:$0xff]
    %v2895 = vld [vmem:[#allocation5 + $0x300] sm:$0xff]
    %v2896 = vld [vmem:[#allocation5 + $0x308] sm:$0xff]
    %v2897 = vld [vmem:[#allocation5 + $0x310] sm:$0xff]
    %v2898 = vld [vmem:[#allocation5 + $0x318] sm:$0xff]
    %v2899 = vld [vmem:[#allocation5 + $0x320] sm:$0xff]
    %v2900 = vld [vmem:[#allocation5 + $0x328] sm:$0xff]
    %v2901 = vld [vmem:[#allocation5 + $0x330] sm:$0xff]
    %v2902 = vld [vmem:[#allocation5 + $0x338] sm:$0xff]
    %v2903 = vld [vmem:[#allocation5 + $0x340] sm:$0xff]
    %v2904 = vld [vmem:[#allocation5 + $0x348] sm:$0xff]
    %v2905 = vld [vmem:[#allocation5 + $0x350] sm:$0xff]
    %v2906 = vld [vmem:[#allocation5 + $0x358] sm:$0xff]
    %v2907 = vld [vmem:[#allocation5 + $0x360] sm:$0xff]
    %v2908 = vld [vmem:[#allocation5 + $0x368] sm:$0xff]
    %v2909 = vld [vmem:[#allocation5 + $0x370] sm:$0xff]
    %2910 = vmatprep.subr.mxu0 0.0
    %2911 = vmatpush1.msra.mxu0 %v2894
    %2912 = vmatprep.subr.mxu0 0.0
    %2913 = vmatpush1.msra.mxu0 %v2895
    %2914 = vmatprep.subr.mxu0 0.0
    %2915 = vmatpush1.msra.mxu0 %v2896
    %2916 = vmatprep.subr.mxu0 0.0
    %2917 = vmatpush1.msra.mxu0 %v2897
    %2918 = vmatprep.subr.mxu0 0.0
    %2919 = vmatpush1.msra.mxu0 %v2898
    %2920 = vmatprep.subr.mxu0 0.0
    %2921 = vmatpush1.msra.mxu0 %v2899
    %2922 = vmatprep.subr.mxu0 0.0
    %2923 = vmatpush1.msra.mxu0 %v2900
    %2924 = vmatprep.subr.mxu0 0.0
    %2925 = vmatpush1.msra.mxu0 %v2901
    %2926 = vmatprep.subr.mxu0 0.0
    %2927 = vmatpush1.msra.mxu0 %v2902
    %2928 = vmatprep.subr.mxu0 0.0
    %2929 = vmatpush1.msra.mxu0 %v2903
    %2930 = vmatprep.subr.mxu0 0.0
    %2931 = vmatpush1.msra.mxu0 %v2904
    %2932 = vmatprep.subr.mxu0 0.0
    %2933 = vmatpush1.msra.mxu0 %v2905
    %2934 = vmatprep.subr.mxu0 0.0
    %2935 = vmatpush1.msra.mxu0 %v2906
    %2936 = vmatprep.subr.mxu0 0.0
    %2937 = vmatpush1.msra.mxu0 %v2907
    %2938 = vmatprep.subr.mxu0 0.0
    %2939 = vmatpush1.msra.mxu0 %v2908
    %2940 = vmatprep.subr.mxu0 0.0
    %2941 = vmatpush1.msra.mxu0 %v2909
    %2942 = vmatprep.subr.mxu0 0.0
    %2943 = vmatpush1.msra.mxu0 0.0
    %2944 = vmatprep.subr.mxu0 0.0
    %2945 = vmatpush1.msra.mxu0 0.0
    %2946 = vmatprep.subr.mxu0 0.0
    %2947 = vmatpush1.msra.mxu0 0.0
    %2948 = vmatprep.subr.mxu0 0.0
    %2949 = vmatpush1.msra.mxu0 0.0
    %2950 = vmatprep.subr.mxu0 0.0
    %2951 = vmatpush1.msra.mxu0 0.0
    %2952 = vmatprep.subr.mxu0 0.0
    %2953 = vmatpush1.msra.mxu0 0.0
    %2954 = vmatprep.subr.mxu0 0.0
    %2955 = vmatpush1.msra.mxu0 0.0
    %2956 = vmatprep.subr.mxu0 0.0
    %2957 = vmatpush1.msra.mxu0 0.0
    %2958 = vmatprep.subr.mxu0 0.0
    %2959 = vmatpush1.msra.mxu0 0.0
    %2960 = vmatprep.subr.mxu0 0.0
    %2961 = vmatpush1.msra.mxu0 0.0
    %2962 = vmatprep.subr.mxu0 0.0
    %2963 = vmatpush1.msra.mxu0 0.0
    %2964 = vmatprep.subr.mxu0 0.0
    %2965 = vmatpush1.msra.mxu0 0.0
    %2966 = vmatprep.subr.mxu0 0.0
    %2967 = vmatpush1.msra.mxu0 0.0
    %2968 = vmatprep.subr.mxu0 0.0
    %2969 = vmatpush1.msra.mxu0 0.0
    %2970 = vmatprep.subr.mxu0 0.0
    %2971 = vmatpush1.msra.mxu0 0.0
    %2972 = vmatprep.subr.mxu0 0.0
    %2973 = vmatpush1.msra.mxu0 0.0
    %2974 = vmatprep.mubr.f32.mxu0 0.0
    %2975 = vmatmul.mubr.f32.gmra.mrb[0].mxu0 %v2779
    %v2976 = vpop.f32.mrb[0].mxu0
    %v2977 = vadd.f32 0.0, %v2976
    %v2978 = vpop.f32.mrb[0].mxu0
    %2979 = vmatprep.mubr.f32.mxu0 0.0
    %2980 = vmatmul.mubr.f32.gmra.mrb[0].mxu0 %v2784
    %v2981 = vpop.f32.mrb[0].mxu0
    %v2982 = vadd.f32 0.0, %v2981
    %v2983 = vpop.f32.mrb[0].mxu0
    %2984 = vdwg.mxu0
    %2985 = vmatprep.subr.mxu0 0.0
    %2986 = vmatpush1.msra.mxu0 %v2870
    %2987 = vmatprep.subr.mxu0 0.0
    %2988 = vmatpush1.msra.mxu0 %v2875
    %2989 = vmatprep.subr.mxu0 0.0
    %2990 = vmatpush1.msra.mxu0 0.0
    %2991 = vmatprep.subr.mxu0 0.0
    %2992 = vmatpush1.msra.mxu0 0.0
    %2993 = vmatprep.subr.mxu0 0.0
    %2994 = vmatpush1.msra.mxu0 0.0
    %2995 = vmatprep.subr.mxu0 0.0
    %2996 = vmatpush1.msra.mxu0 0.0
    %2997 = vmatprep.subr.mxu0 0.0
    %2998 = vmatpush1.msra.mxu0 0.0
    %2999 = vmatprep.subr.mxu0 0.0
    %3000 = vmatpush1.msra.mxu0 0.0
    %3001 = vmatprep.subr.mxu0 0.0
    %3002 = vmatpush1.msra.mxu0 0.0
    %3003 = vmatprep.subr.mxu0 0.0
    %3004 = vmatpush1.msra.mxu0 0.0
    %3005 = vmatprep.subr.mxu0 0.0
    %3006 = vmatpush1.msra.mxu0 0.0
    %3007 = vmatprep.subr.mxu0 0.0
    %3008 = vmatpush1.msra.mxu0 0.0
    %3009 = vmatprep.subr.mxu0 0.0
    %3010 = vmatpush1.msra.mxu0 0.0
    %3011 = vmatprep.subr.mxu0 0.0
    %3012 = vmatpush1.msra.mxu0 0.0
    %3013 = vmatprep.subr.mxu0 0.0
    %3014 = vmatpush1.msra.mxu0 0.0
    %3015 = vmatprep.subr.mxu0 0.0
    %3016 = vmatpush1.msra.mxu0 0.0
    %3017 = vmatprep.subr.mxu0 0.0
    %3018 = vmatpush1.msra.mxu0 0.0
    %3019 = vmatprep.subr.mxu0 0.0
    %3020 = vmatpush1.msra.mxu0 0.0
    %3021 = vmatprep.subr.mxu0 0.0
    %3022 = vmatpush1.msra.mxu0 0.0
    %3023 = vmatprep.subr.mxu0 0.0
    %3024 = vmatpush1.msra.mxu0 0.0
    %3025 = vmatprep.subr.mxu0 0.0
    %3026 = vmatpush1.msra.mxu0 0.0
    %3027 = vmatprep.subr.mxu0 0.0
    %3028 = vmatpush1.msra.mxu0 0.0
    %3029 = vmatprep.subr.mxu0 0.0
    %3030 = vmatpush1.msra.mxu0 0.0
    %3031 = vmatprep.subr.mxu0 0.0
    %3032 = vmatpush1.msra.mxu0 0.0
    %3033 = vmatprep.subr.mxu0 0.0
    %3034 = vmatpush1.msra.mxu0 0.0
    %3035 = vmatprep.subr.mxu0 0.0
    %3036 = vmatpush1.msra.mxu0 0.0
    %3037 = vmatprep.subr.mxu0 0.0
    %3038 = vmatpush1.msra.mxu0 0.0
    %3039 = vmatprep.subr.mxu0 0.0
    %3040 = vmatpush1.msra.mxu0 0.0
    %3041 = vmatprep.subr.mxu0 0.0
    %3042 = vmatpush1.msra.mxu0 0.0
    %3043 = vmatprep.subr.mxu0 0.0
    %3044 = vmatpush1.msra.mxu0 0.0
    %3045 = vmatprep.subr.mxu0 0.0
    %3046 = vmatpush1.msra.mxu0 0.0
    %3047 = vmatprep.subr.mxu0 0.0
    %3048 = vmatpush1.msra.mxu0 0.0
    %3049 = vmatprep.mubr.f32.mxu0 0.0
    %3050 = vmatmul.mubr.f32.gmra.mrb[0].mxu0 %v838
    %v3051 = vpop.f32.mrb[0].mxu0
    %v3052 = vadd.f32 0.0, %v3051
    %v3053 = vpop.f32.mrb[0].mxu0
    %3054 = vmatprep.mubr.f32.mxu0 0.0
    %3055 = vmatmul.mubr.f32.gmra.mrb[0].mxu0 %v841
    %v3056 = vpop.f32.mrb[0].mxu0
    %v3057 = vadd.f32 0.0, %v3056
    %v3058 = vpop.f32.mrb[0].mxu0
    %3059 = vdwg.mxu0
    %3060 = vmatprep.subr.mxu0 0.0
    %3061 = vmatpush1.msra.mxu0 %v2878
    %3062 = vmatprep.subr.mxu0 0.0
    %3063 = vmatpush1.msra.mxu0 %v2879
    %3064 = vmatprep.subr.mxu0 0.0
    %3065 = vmatpush1.msra.mxu0 %v2880
    %3066 = vmatprep.subr.mxu0 0.0
    %3067 = vmatpush1.msra.mxu0 %v2881
    %3068 = vmatprep.subr.mxu0 0.0
    %3069 = vmatpush1.msra.mxu0 %v2882
    %3070 = vmatprep.subr.mxu0 0.0
    %3071 = vmatpush1.msra.mxu0 %v2883
    %3072 = vmatprep.subr.mxu0 0.0
    %3073 = vmatpush1.msra.mxu0 %v2884
    %3074 = vmatprep.subr.mxu0 0.0
    %3075 = vmatpush1.msra.mxu0 %v2885
    %3076 = vmatprep.subr.mxu0 0.0
    %3077 = vmatpush1.msra.mxu0 %v2886
    %3078 = vmatprep.subr.mxu0 0.0
    %3079 = vmatpush1.msra.mxu0 %v2887
    %3080 = vmatprep.subr.mxu0 0.0
    %3081 = vmatpush1.msra.mxu0 %v2888
    %3082 = vmatprep.subr.mxu0 0.0
    %3083 = vmatpush1.msra.mxu0 %v2889
    %3084 = vmatprep.subr.mxu0 0.0
    %3085 = vmatpush1.msra.mxu0 %v2890
    %3086 = vmatprep.subr.mxu0 0.0
    %3087 = vmatpush1.msra.mxu0 %v2891
    %3088 = vmatprep.subr.mxu0 0.0
    %3089 = vmatpush1.msra.mxu0 %v2892
    %3090 = vmatprep.subr.mxu0 0.0
    %3091 = vmatpush1.msra.mxu0 %v2893
    %3092 = vmatprep.subr.mxu0 0.0
    %3093 = vmatpush1.msra.mxu0 0.0
    %3094 = vmatprep.subr.mxu0 0.0
    %3095 = vmatpush1.msra.mxu0 0.0
    %3096 = vmatprep.subr.mxu0 0.0
    %3097 = vmatpush1.msra.mxu0 0.0
    %3098 = vmatprep.subr.mxu0 0.0
    %3099 = vmatpush1.msra.mxu0 0.0
    %3100 = vmatprep.subr.mxu0 0.0
    %3101 = vmatpush1.msra.mxu0 0.0
    %3102 = vmatprep.subr.mxu0 0.0
    %3103 = vmatpush1.msra.mxu0 0.0
    %3104 = vmatprep.subr.mxu0 0.0
    %3105 = vmatpush1.msra.mxu0 0.0
    %3106 = vmatprep.subr.mxu0 0.0
    %3107 = vmatpush1.msra.mxu0 0.0
    %3108 = vmatprep.subr.mxu0 0.0
    %3109 = vmatpush1.msra.mxu0 0.0
    %3110 = vmatprep.subr.mxu0 0.0
    %3111 = vmatpush1.msra.mxu0 0.0
    %3112 = vmatprep.subr.mxu0 0.0
    %3113 = vmatpush1.msra.mxu0 0.0
    %3114 = vmatprep.subr.mxu0 0.0
    %3115 = vmatpush1.msra.mxu0 0.0
    %3116 = vmatprep.subr.mxu0 0.0
    %3117 = vmatpush1.msra.mxu0 0.0
    %3118 = vmatprep.subr.mxu0 0.0
    %3119 = vmatpush1.msra.mxu0 0.0
    %3120 = vmatprep.subr.mxu0 0.0
    %3121 = vmatpush1.msra.mxu0 0.0
    %3122 = vmatprep.subr.mxu0 0.0
    %3123 = vmatpush1.msra.mxu0 0.0
    %3124 = vmatprep.mubr.f32.mxu0 0.0
    %3125 = vmatmul.mubr.f32.gmra.mrb[0].mxu0 %v2779
    %v3126 = vpop.f32.mrb[0].mxu0
    %v3127 = vadd.f32 %v3052, %v3126
    %v3128 = vpop.f32.mrb[0].mxu0
    %3129 = vmatprep.mubr.f32.mxu0 0.0
    %3130 = vmatmul.mubr.f32.gmra.mrb[0].mxu0 %v2784
    %v3131 = vpop.f32.mrb[0].mxu0
    %v3132 = vadd.f32 %v3057, %v3131
    %v3133 = vpop.f32.mrb[0].mxu0
    %3134 = vdwg.mxu0
    %3135 = vmatprep.subr.mxu0 0.0
    %3136 = vmatpush1.msra.mxu0 %v2977
    %3137 = vmatprep.subr.mxu0 0.0
    %3138 = vmatpush1.msra.mxu0 %v2982
    %3139 = vmatprep.subr.mxu0 0.0
    %3140 = vmatpush1.msra.mxu0 0.0
    %3141 = vmatprep.subr.mxu0 0.0
    %3142 = vmatpush1.msra.mxu0 0.0
    %3143 = vmatprep.subr.mxu0 0.0
    %3144 = vmatpush1.msra.mxu0 0.0
    %3145 = vmatprep.subr.mxu0 0.0
    %3146 = vmatpush1.msra.mxu0 0.0
    %3147 = vmatprep.subr.mxu0 0.0
    %3148 = vmatpush1.msra.mxu0 0.0
    %3149 = vmatprep.subr.mxu0 0.0
    %3150 = vmatpush1.msra.mxu0 0.0
    %3151 = vmatprep.subr.mxu0 0.0
    %3152 = vmatpush1.msra.mxu0 0.0
    %3153 = vmatprep.subr.mxu0 0.0
    %3154 = vmatpush1.msra.mxu0 0.0
    %3155 = vmatprep.subr.mxu0 0.0
    %3156 = vmatpush1.msra.mxu0 0.0
    %3157 = vmatprep.subr.mxu0 0.0
    %3158 = vmatpush1.msra.mxu0 0.0
    %3159 = vmatprep.subr.mxu0 0.0
    %3160 = vmatpush1.msra.mxu0 0.0
    %3161 = vmatprep.subr.mxu0 0.0
    %3162 = vmatpush1.msra.mxu0 0.0
    %3163 = vmatprep.subr.mxu0 0.0
    %3164 = vmatpush1.msra.mxu0 0.0
    %3165 = vmatprep.subr.mxu0 0.0
    %3166 = vmatpush1.msra.mxu0 0.0
    %3167 = vmatprep.subr.mxu0 0.0
    %3168 = vmatpush1.msra.mxu0 0.0
    %3169 = vmatprep.subr.mxu0 0.0
    %3170 = vmatpush1.msra.mxu0 0.0
    %3171 = vmatprep.subr.mxu0 0.0
    %3172 = vmatpush1.msra.mxu0 0.0
    %3173 = vmatprep.subr.mxu0 0.0
    %3174 = vmatpush1.msra.mxu0 0.0
    %3175 = vmatprep.subr.mxu0 0.0
    %3176 = vmatpush1.msra.mxu0 0.0
    %3177 = vmatprep.subr.mxu0 0.0
    %3178 = vmatpush1.msra.mxu0 0.0
    %3179 = vmatprep.subr.mxu0 0.0
    %3180 = vmatpush1.msra.mxu0 0.0
    %3181 = vmatprep.subr.mxu0 0.0
    %3182 = vmatpush1.msra.mxu0 0.0
    %3183 = vmatprep.subr.mxu0 0.0
    %3184 = vmatpush1.msra.mxu0 0.0
    %3185 = vmatprep.subr.mxu0 0.0
    %3186 = vmatpush1.msra.mxu0 0.0
    %3187 = vmatprep.subr.mxu0 0.0
    %3188 = vmatpush1.msra.mxu0 0.0
    %3189 = vmatprep.subr.mxu0 0.0
    %3190 = vmatpush1.msra.mxu0 0.0
    %3191 = vmatprep.subr.mxu0 0.0
    %3192 = vmatpush1.msra.mxu0 0.0
    %3193 = vmatprep.subr.mxu0 0.0
    %3194 = vmatpush1.msra.mxu0 0.0
    %3195 = vmatprep.subr.mxu0 0.0
    %3196 = vmatpush1.msra.mxu0 0.0
    %3197 = vmatprep.subr.mxu0 0.0
    %3198 = vmatpush1.msra.mxu0 0.0
    %3199 = vmatprep.mubr.f32.mxu0 0.0
    %3200 = vmatmul.mubr.f32.gmra.mrb[0].mxu0 %v994
    %v3201 = vpop.f32.mrb[0].mxu0
    %v3202 = vadd.f32 0.0, %v3201
    %v3203 = vpop.f32.mrb[0].mxu0
    %3204 = vmatprep.mubr.f32.mxu0 0.0
    %3205 = vmatmul.mubr.f32.gmra.mrb[0].mxu0 %v997
    %v3206 = vpop.f32.mrb[0].mxu0
    %v3207 = vadd.f32 0.0, %v3206
    %v3208 = vpop.f32.mrb[0].mxu0
    %3209 = vdwg.mxu0
    %v3210 = vadd.f32 %v3127, %v3202
    %v3211 = vadd.f32 %v3132, %v3207
    %v3212 = vld [vmem:[#allocation7 + $0x4] sm:$0x1]
    %v3213 = vlaneseq
    %v3214 = vshrl.u32 %v3213, 7
    %v3215 = vsub.s32 0, %v3214
    %v3216 = vrot.slane %v3212, %v3215
    %v3217 = vmul.f32 %v3210, %v3216
    %v3218 = vmul.f32 %v3211, %v3216
    %v3219 = vld [vmem:[#allocation7 + $0xa] sm:$0x1]
    %v3220 = vlaneseq
    %v3221 = vshrl.u32 %v3220, 7
    %v3222 = vsub.s32 0, %v3221
    %v3223 = vrot.slane %v3219, %v3222
    %v3224 = vadd.f32 %v3217, %v3223
    %v3225 = vadd.f32 %v3218, %v3223
    %v3226 = vmax.f32 %v3224, 0.0
    %v3227 = vmax.f32 %v3225, 0.0
    %v3228 = vld [vmem:[#allocation5 + $0x378] sm:$0xff]
    %v3229 = vld [vmem:[#allocation5 + $0x380] sm:$0xff]
    %v3230 = vld [vmem:[#allocation5 + $0x388] sm:$0xff]
    %v3231 = vld [vmem:[#allocation5 + $0x390] sm:$0xff]
    %v3232 = vld [vmem:[#allocation5 + $0x398] sm:$0xff]
    %v3233 = vld [vmem:[#allocation5 + $0x3a0] sm:$0xff]
    %v3234 = vld [vmem:[#allocation5 + $0x3a8] sm:$0xff]
    %v3235 = vld [vmem:[#allocation5 + $0x3b0] sm:$0xff]
    %v3237 = vsel %vm1100, %v3226, 0
    %v3240 = vsel %vm1100, %v3227, 0
    %3242 = vmatprep.subr.mxu0 0.0
    %3243 = vmatpush1.msra.mxu0 %v3228
    %3244 = vmatprep.subr.mxu0 0.0
    %3245 = vmatpush1.msra.mxu0 %v3229
    %3246 = vmatprep.subr.mxu0 0.0
    %3247 = vmatpush1.msra.mxu0 %v3230
    %3248 = vmatprep.subr.mxu0 0.0
    %3249 = vmatpush1.msra.mxu0 %v3231
    %3250 = vmatprep.subr.mxu0 0.0
    %3251 = vmatpush1.msra.mxu0 %v3232
    %3252 = vmatprep.subr.mxu0 0.0
    %3253 = vmatpush1.msra.mxu0 %v3233
    %3254 = vmatprep.subr.mxu0 0.0
    %3255 = vmatpush1.msra.mxu0 %v3234
    %3256 = vmatprep.subr.mxu0 0.0
    %3257 = vmatpush1.msra.mxu0 %v3235
    %3258 = vmatprep.subr.mxu0 0.0
    %3259 = vmatpush1.msra.mxu0 0.0
    %3260 = vmatprep.subr.mxu0 0.0
    %3261 = vmatpush1.msra.mxu0 0.0
    %3262 = vmatprep.subr.mxu0 0.0
    %3263 = vmatpush1.msra.mxu0 0.0
    %3264 = vmatprep.subr.mxu0 0.0
    %3265 = vmatpush1.msra.mxu0 0.0
    %3266 = vmatprep.subr.mxu0 0.0
    %3267 = vmatpush1.msra.mxu0 0.0
    %3268 = vmatprep.subr.mxu0 0.0
    %3269 = vmatpush1.msra.mxu0 0.0
    %3270 = vmatprep.subr.mxu0 0.0
    %3271 = vmatpush1.msra.mxu0 0.0
    %3272 = vmatprep.subr.mxu0 0.0
    %3273 = vmatpush1.msra.mxu0 0.0
    %3274 = vmatprep.subr.mxu0 0.0
    %3275 = vmatpush1.msra.mxu0 0.0
    %3276 = vmatprep.subr.mxu0 0.0
    %3277 = vmatpush1.msra.mxu0 0.0
    %3278 = vmatprep.subr.mxu0 0.0
    %3279 = vmatpush1.msra.mxu0 0.0
    %3280 = vmatprep.subr.mxu0 0.0
    %3281 = vmatpush1.msra.mxu0 0.0
    %3282 = vmatprep.subr.mxu0 0.0
    %3283 = vmatpush1.msra.mxu0 0.0
    %3284 = vmatprep.subr.mxu0 0.0
    %3285 = vmatpush1.msra.mxu0 0.0
    %3286 = vmatprep.subr.mxu0 0.0
    %3287 = vmatpush1.msra.mxu0 0.0
    %3288 = vmatprep.subr.mxu0 0.0
    %3289 = vmatpush1.msra.mxu0 0.0
    %3290 = vmatprep.subr.mxu0 0.0
    %3291 = vmatpush1.msra.mxu0 0.0
    %3292 = vmatprep.subr.mxu0 0.0
    %3293 = vmatpush1.msra.mxu0 0.0
    %3294 = vmatprep.subr.mxu0 0.0
    %3295 = vmatpush1.msra.mxu0 0.0
    %3296 = vmatprep.subr.mxu0 0.0
    %3297 = vmatpush1.msra.mxu0 0.0
    %3298 = vmatprep.subr.mxu0 0.0
    %3299 = vmatpush1.msra.mxu0 0.0
    %3300 = vmatprep.subr.mxu0 0.0
    %3301 = vmatpush1.msra.mxu0 0.0
    %3302 = vmatprep.subr.mxu0 0.0
    %3303 = vmatpush1.msra.mxu0 0.0
    %3304 = vmatprep.subr.mxu0 0.0
    %3305 = vmatpush1.msra.mxu0 0.0
    %3306 = vmatprep.mubr.f32.mxu0 0.0
    %3307 = vmatmul.mubr.f32.gmra.mrb[0].mxu0 %v3237
    %v3308 = vpop.f32.mrb[0].mxu0
    %v3309 = vadd.f32 0.0, %v3308
    %v3310 = vpop.f32.mrb[0].mxu0
    %3311 = vmatprep.mubr.f32.mxu0 0.0
    %3312 = vmatmul.mubr.f32.gmra.mrb[0].mxu0 %v3240
    %v3313 = vpop.f32.mrb[0].mxu0
    %v3314 = vadd.f32 0.0, %v3313
    %v3315 = vpop.f32.mrb[0].mxu0
    %3316 = vdwg.mxu0
    %v3317 = vld [vmem:[#allocation5 + $0x3b8] sm:$0xff]
    %v3318 = vld [vmem:[#allocation5 + $0x3c0] sm:$0xff]
    %v3319 = vld [vmem:[#allocation5 + $0x3c8] sm:$0xff]
    %v3320 = vld [vmem:[#allocation5 + $0x3d0] sm:$0xff]
    %v3321 = vld [vmem:[#allocation5 + $0x3d8] sm:$0xff]
    %v3322 = vld [vmem:[#allocation5 + $0x3e0] sm:$0xff]
    %v3323 = vld [vmem:[#allocation5 + $0x3e8] sm:$0xff]
    %v3324 = vld [vmem:[#allocation5 + $0x3f0] sm:$0xff]
    %v3325 = vld [vmem:[#allocation5 + $0x3f8] sm:$0xff]
    %v3326 = vld [vmem:[#allocation5 + $0x400] sm:$0xff]
    %v3327 = vld [vmem:[#allocation5 + $0x408] sm:$0xff]
    %v3328 = vld [vmem:[#allocation5 + $0x410] sm:$0xff]
    %v3329 = vld [vmem:[#allocation5 + $0x418] sm:$0xff]
    %v3330 = vld [vmem:[#allocation5 + $0x420] sm:$0xff]
    %v3331 = vld [vmem:[#allocation5 + $0x428] sm:$0xff]
    %v3332 = vld [vmem:[#allocation5 + $0x430] sm:$0xff]
    %3333 = vmatprep.subr.mxu0 0.0
    %3334 = vmatpush1.msra.mxu0 %v3325
    %3335 = vmatprep.subr.mxu0 0.0
    %3336 = vmatpush1.msra.mxu0 %v3326
    %3337 = vmatprep.subr.mxu0 0.0
    %3338 = vmatpush1.msra.mxu0 %v3327
    %3339 = vmatprep.subr.mxu0 0.0
    %3340 = vmatpush1.msra.mxu0 %v3328
    %3341 = vmatprep.subr.mxu0 0.0
    %3342 = vmatpush1.msra.mxu0 %v3329
    %3343 = vmatprep.subr.mxu0 0.0
    %3344 = vmatpush1.msra.mxu0 %v3330
    %3345 = vmatprep.subr.mxu0 0.0
    %3346 = vmatpush1.msra.mxu0 %v3331
    %3347 = vmatprep.subr.mxu0 0.0
    %3348 = vmatpush1.msra.mxu0 %v3332
    %3349 = vmatprep.subr.mxu0 0.0
    %3350 = vmatpush1.msra.mxu0 0.0
    %3351 = vmatprep.subr.mxu0 0.0
    %3352 = vmatpush1.msra.mxu0 0.0
    %3353 = vmatprep.subr.mxu0 0.0
    %3354 = vmatpush1.msra.mxu0 0.0
    %3355 = vmatprep.subr.mxu0 0.0
    %3356 = vmatpush1.msra.mxu0 0.0
    %3357 = vmatprep.subr.mxu0 0.0
    %3358 = vmatpush1.msra.mxu0 0.0
    %3359 = vmatprep.subr.mxu0 0.0
    %3360 = vmatpush1.msra.mxu0 0.0
    %3361 = vmatprep.subr.mxu0 0.0
    %3362 = vmatpush1.msra.mxu0 0.0
    %3363 = vmatprep.subr.mxu0 0.0
    %3364 = vmatpush1.msra.mxu0 0.0
    %3365 = vmatprep.subr.mxu0 0.0
    %3366 = vmatpush1.msra.mxu0 0.0
    %3367 = vmatprep.subr.mxu0 0.0
    %3368 = vmatpush1.msra.mxu0 0.0
    %3369 = vmatprep.subr.mxu0 0.0
    %3370 = vmatpush1.msra.mxu0 0.0
    %3371 = vmatprep.subr.mxu0 0.0
    %3372 = vmatpush1.msra.mxu0 0.0
    %3373 = vmatprep.subr.mxu0 0.0
    %3374 = vmatpush1.msra.mxu0 0.0
    %3375 = vmatprep.subr.mxu0 0.0
    %3376 = vmatpush1.msra.mxu0 0.0
    %3377 = vmatprep.subr.mxu0 0.0
    %3378 = vmatpush1.msra.mxu0 0.0
    %3379 = vmatprep.subr.mxu0 0.0
    %3380 = vmatpush1.msra.mxu0 0.0
    %3381 = vmatprep.subr.mxu0 0.0
    %3382 = vmatpush1.msra.mxu0 0.0
    %3383 = vmatprep.subr.mxu0 0.0
    %3384 = vmatpush1.msra.mxu0 0.0
    %3385 = vmatprep.subr.mxu0 0.0
    %3386 = vmatpush1.msra.mxu0 0.0
    %3387 = vmatprep.subr.mxu0 0.0
    %3388 = vmatpush1.msra.mxu0 0.0
    %3389 = vmatprep.subr.mxu0 0.0
    %3390 = vmatpush1.msra.mxu0 0.0
    %3391 = vmatprep.subr.mxu0 0.0
    %3392 = vmatpush1.msra.mxu0 0.0
    %3393 = vmatprep.subr.mxu0 0.0
    %3394 = vmatpush1.msra.mxu0 0.0
    %3395 = vmatprep.subr.mxu0 0.0
    %3396 = vmatpush1.msra.mxu0 0.0
    %3397 = vmatprep.mubr.f32.mxu0 0.0
    %3398 = vmatmul.mubr.f32.gmra.mrb[0].mxu0 %v3237
    %v3399 = vpop.f32.mrb[0].mxu0
    %v3400 = vadd.f32 0.0, %v3399
    %v3401 = vpop.f32.mrb[0].mxu0
    %3402 = vmatprep.mubr.f32.mxu0 0.0
    %3403 = vmatmul.mubr.f32.gmra.mrb[0].mxu0 %v3240
    %v3404 = vpop.f32.mrb[0].mxu0
    %v3405 = vadd.f32 0.0, %v3404
    %v3406 = vpop.f32.mrb[0].mxu0
    %3407 = vdwg.mxu0
    %3408 = vmatprep.subr.mxu0 0.0
    %3409 = vmatpush1.msra.mxu0 %v3309
    %3410 = vmatprep.subr.mxu0 0.0
    %3411 = vmatpush1.msra.mxu0 %v3314
    %3412 = vmatprep.subr.mxu0 0.0
    %3413 = vmatpush1.msra.mxu0 0.0
    %3414 = vmatprep.subr.mxu0 0.0
    %3415 = vmatpush1.msra.mxu0 0.0
    %3416 = vmatprep.subr.mxu0 0.0
    %3417 = vmatpush1.msra.mxu0 0.0
    %3418 = vmatprep.subr.mxu0 0.0
    %3419 = vmatpush1.msra.mxu0 0.0
    %3420 = vmatprep.subr.mxu0 0.0
    %3421 = vmatpush1.msra.mxu0 0.0
    %3422 = vmatprep.subr.mxu0 0.0
    %3423 = vmatpush1.msra.mxu0 0.0
    %3424 = vmatprep.subr.mxu0 0.0
    %3425 = vmatpush1.msra.mxu0 0.0
    %3426 = vmatprep.subr.mxu0 0.0
    %3427 = vmatpush1.msra.mxu0 0.0
    %3428 = vmatprep.subr.mxu0 0.0
    %3429 = vmatpush1.msra.mxu0 0.0
    %3430 = vmatprep.subr.mxu0 0.0
    %3431 = vmatpush1.msra.mxu0 0.0
    %3432 = vmatprep.subr.mxu0 0.0
    %3433 = vmatpush1.msra.mxu0 0.0
    %3434 = vmatprep.subr.mxu0 0.0
    %3435 = vmatpush1.msra.mxu0 0.0
    %3436 = vmatprep.subr.mxu0 0.0
    %3437 = vmatpush1.msra.mxu0 0.0
    %3438 = vmatprep.subr.mxu0 0.0
    %3439 = vmatpush1.msra.mxu0 0.0
    %3440 = vmatprep.subr.mxu0 0.0
    %3441 = vmatpush1.msra.mxu0 0.0
    %3442 = vmatprep.subr.mxu0 0.0
    %3443 = vmatpush1.msra.mxu0 0.0
    %3444 = vmatprep.subr.mxu0 0.0
    %3445 = vmatpush1.msra.mxu0 0.0
    %3446 = vmatprep.subr.mxu0 0.0
    %3447 = vmatpush1.msra.mxu0 0.0
    %3448 = vmatprep.subr.mxu0 0.0
    %3449 = vmatpush1.msra.mxu0 0.0
    %3450 = vmatprep.subr.mxu0 0.0
    %3451 = vmatpush1.msra.mxu0 0.0
    %3452 = vmatprep.subr.mxu0 0.0
    %3453 = vmatpush1.msra.mxu0 0.0
    %3454 = vmatprep.subr.mxu0 0.0
    %3455 = vmatpush1.msra.mxu0 0.0
    %3456 = vmatprep.subr.mxu0 0.0
    %3457 = vmatpush1.msra.mxu0 0.0
    %3458 = vmatprep.subr.mxu0 0.0
    %3459 = vmatpush1.msra.mxu0 0.0
    %3460 = vmatprep.subr.mxu0 0.0
    %3461 = vmatpush1.msra.mxu0 0.0
    %3462 = vmatprep.subr.mxu0 0.0
    %3463 = vmatpush1.msra.mxu0 0.0
    %3464 = vmatprep.subr.mxu0 0.0
    %3465 = vmatpush1.msra.mxu0 0.0
    %3466 = vmatprep.subr.mxu0 0.0
    %3467 = vmatpush1.msra.mxu0 0.0
    %3468 = vmatprep.subr.mxu0 0.0
    %3469 = vmatpush1.msra.mxu0 0.0
    %3470 = vmatprep.subr.mxu0 0.0
    %3471 = vmatpush1.msra.mxu0 0.0
    %3472 = vmatprep.mubr.f32.mxu0 0.0
    %3473 = vmatmul.mubr.f32.gmra.mrb[0].mxu0 %v838
    %v3474 = vpop.f32.mrb[0].mxu0
    %v3475 = vadd.f32 0.0, %v3474
    %v3476 = vpop.f32.mrb[0].mxu0
    %3477 = vmatprep.mubr.f32.mxu0 0.0
    %3478 = vmatmul.mubr.f32.gmra.mrb[0].mxu0 %v841
    %v3479 = vpop.f32.mrb[0].mxu0
    %v3480 = vadd.f32 0.0, %v3479
    %v3481 = vpop.f32.mrb[0].mxu0
    %3482 = vdwg.mxu0
    %3483 = vmatprep.subr.mxu0 0.0
    %3484 = vmatpush1.msra.mxu0 %v3317
    %3485 = vmatprep.subr.mxu0 0.0
    %3486 = vmatpush1.msra.mxu0 %v3318
    %3487 = vmatprep.subr.mxu0 0.0
    %3488 = vmatpush1.msra.mxu0 %v3319
    %3489 = vmatprep.subr.mxu0 0.0
    %3490 = vmatpush1.msra.mxu0 %v3320
    %3491 = vmatprep.subr.mxu0 0.0
    %3492 = vmatpush1.msra.mxu0 %v3321
    %3493 = vmatprep.subr.mxu0 0.0
    %3494 = vmatpush1.msra.mxu0 %v3322
    %3495 = vmatprep.subr.mxu0 0.0
    %3496 = vmatpush1.msra.mxu0 %v3323
    %3497 = vmatprep.subr.mxu0 0.0
    %3498 = vmatpush1.msra.mxu0 %v3324
    %3499 = vmatprep.subr.mxu0 0.0
    %3500 = vmatpush1.msra.mxu0 0.0
    %3501 = vmatprep.subr.mxu0 0.0
    %3502 = vmatpush1.msra.mxu0 0.0
    %3503 = vmatprep.subr.mxu0 0.0
    %3504 = vmatpush1.msra.mxu0 0.0
    %3505 = vmatprep.subr.mxu0 0.0
    %3506 = vmatpush1.msra.mxu0 0.0
    %3507 = vmatprep.subr.mxu0 0.0
    %3508 = vmatpush1.msra.mxu0 0.0
    %3509 = vmatprep.subr.mxu0 0.0
    %3510 = vmatpush1.msra.mxu0 0.0
    %3511 = vmatprep.subr.mxu0 0.0
    %3512 = vmatpush1.msra.mxu0 0.0
    %3513 = vmatprep.subr.mxu0 0.0
    %3514 = vmatpush1.msra.mxu0 0.0
    %3515 = vmatprep.subr.mxu0 0.0
    %3516 = vmatpush1.msra.mxu0 0.0
    %3517 = vmatprep.subr.mxu0 0.0
    %3518 = vmatpush1.msra.mxu0 0.0
    %3519 = vmatprep.subr.mxu0 0.0
    %3520 = vmatpush1.msra.mxu0 0.0
    %3521 = vmatprep.subr.mxu0 0.0
    %3522 = vmatpush1.msra.mxu0 0.0
    %3523 = vmatprep.subr.mxu0 0.0
    %3524 = vmatpush1.msra.mxu0 0.0
    %3525 = vmatprep.subr.mxu0 0.0
    %3526 = vmatpush1.msra.mxu0 0.0
    %3527 = vmatprep.subr.mxu0 0.0
    %3528 = vmatpush1.msra.mxu0 0.0
    %3529 = vmatprep.subr.mxu0 0.0
    %3530 = vmatpush1.msra.mxu0 0.0
    %3531 = vmatprep.subr.mxu0 0.0
    %3532 = vmatpush1.msra.mxu0 0.0
    %3533 = vmatprep.subr.mxu0 0.0
    %3534 = vmatpush1.msra.mxu0 0.0
    %3535 = vmatprep.subr.mxu0 0.0
    %3536 = vmatpush1.msra.mxu0 0.0
    %3537 = vmatprep.subr.mxu0 0.0
    %3538 = vmatpush1.msra.mxu0 0.0
    %3539 = vmatprep.subr.mxu0 0.0
    %3540 = vmatpush1.msra.mxu0 0.0
    %3541 = vmatprep.subr.mxu0 0.0
    %3542 = vmatpush1.msra.mxu0 0.0
    %3543 = vmatprep.subr.mxu0 0.0
    %3544 = vmatpush1.msra.mxu0 0.0
    %3545 = vmatprep.subr.mxu0 0.0
    %3546 = vmatpush1.msra.mxu0 0.0
    %3547 = vmatprep.mubr.f32.mxu0 0.0
    %3548 = vmatmul.mubr.f32.gmra.mrb[0].mxu0 %v3237
    %v3549 = vpop.f32.mrb[0].mxu0
    %v3550 = vadd.f32 %v3475, %v3549
    %v3551 = vpop.f32.mrb[0].mxu0
    %3552 = vmatprep.mubr.f32.mxu0 0.0
    %3553 = vmatmul.mubr.f32.gmra.mrb[0].mxu0 %v3240
    %v3554 = vpop.f32.mrb[0].mxu0
    %v3555 = vadd.f32 %v3480, %v3554
    %v3556 = vpop.f32.mrb[0].mxu0
    %3557 = vdwg.mxu0
    %3558 = vmatprep.subr.mxu0 0.0
    %3559 = vmatpush1.msra.mxu0 %v3400
    %3560 = vmatprep.subr.mxu0 0.0
    %3561 = vmatpush1.msra.mxu0 %v3405
    %3562 = vmatprep.subr.mxu0 0.0
    %3563 = vmatpush1.msra.mxu0 0.0
    %3564 = vmatprep.subr.mxu0 0.0
    %3565 = vmatpush1.msra.mxu0 0.0
    %3566 = vmatprep.subr.mxu0 0.0
    %3567 = vmatpush1.msra.mxu0 0.0
    %3568 = vmatprep.subr.mxu0 0.0
    %3569 = vmatpush1.msra.mxu0 0.0
    %3570 = vmatprep.subr.mxu0 0.0
    %3571 = vmatpush1.msra.mxu0 0.0
    %3572 = vmatprep.subr.mxu0 0.0
    %3573 = vmatpush1.msra.mxu0 0.0
    %3574 = vmatprep.subr.mxu0 0.0
    %3575 = vmatpush1.msra.mxu0 0.0
    %3576 = vmatprep.subr.mxu0 0.0
    %3577 = vmatpush1.msra.mxu0 0.0
    %3578 = vmatprep.subr.mxu0 0.0
    %3579 = vmatpush1.msra.mxu0 0.0
    %3580 = vmatprep.subr.mxu0 0.0
    %3581 = vmatpush1.msra.mxu0 0.0
    %3582 = vmatprep.subr.mxu0 0.0
    %3583 = vmatpush1.msra.mxu0 0.0
    %3584 = vmatprep.subr.mxu0 0.0
    %3585 = vmatpush1.msra.mxu0 0.0
    %3586 = vmatprep.subr.mxu0 0.0
    %3587 = vmatpush1.msra.mxu0 0.0
    %3588 = vmatprep.subr.mxu0 0.0
    %3589 = vmatpush1.msra.mxu0 0.0
    %3590 = vmatprep.subr.mxu0 0.0
    %3591 = vmatpush1.msra.mxu0 0.0
    %3592 = vmatprep.subr.mxu0 0.0
    %3593 = vmatpush1.msra.mxu0 0.0
    %3594 = vmatprep.subr.mxu0 0.0
    %3595 = vmatpush1.msra.mxu0 0.0
    %3596 = vmatprep.subr.mxu0 0.0
    %3597 = vmatpush1.msra.mxu0 0.0
    %3598 = vmatprep.subr.mxu0 0.0
    %3599 = vmatpush1.msra.mxu0 0.0
    %3600 = vmatprep.subr.mxu0 0.0
    %3601 = vmatpush1.msra.mxu0 0.0
    %3602 = vmatprep.subr.mxu0 0.0
    %3603 = vmatpush1.msra.mxu0 0.0
    %3604 = vmatprep.subr.mxu0 0.0
    %3605 = vmatpush1.msra.mxu0 0.0
    %3606 = vmatprep.subr.mxu0 0.0
    %3607 = vmatpush1.msra.mxu0 0.0
    %3608 = vmatprep.subr.mxu0 0.0
    %3609 = vmatpush1.msra.mxu0 0.0
    %3610 = vmatprep.subr.mxu0 0.0
    %3611 = vmatpush1.msra.mxu0 0.0
    %3612 = vmatprep.subr.mxu0 0.0
    %3613 = vmatpush1.msra.mxu0 0.0
    %3614 = vmatprep.subr.mxu0 0.0
    %3615 = vmatpush1.msra.mxu0 0.0
    %3616 = vmatprep.subr.mxu0 0.0
    %3617 = vmatpush1.msra.mxu0 0.0
    %3618 = vmatprep.subr.mxu0 0.0
    %3619 = vmatpush1.msra.mxu0 0.0
    %3620 = vmatprep.subr.mxu0 0.0
    %3621 = vmatpush1.msra.mxu0 0.0
    %3622 = vmatprep.mubr.f32.mxu0 0.0
    %3623 = vmatmul.mubr.f32.gmra.mrb[0].mxu0 %v994
    %v3624 = vpop.f32.mrb[0].mxu0
    %v3625 = vadd.f32 0.0, %v3624
    %v3626 = vpop.f32.mrb[0].mxu0
    %3627 = vmatprep.mubr.f32.mxu0 0.0
    %3628 = vmatmul.mubr.f32.gmra.mrb[0].mxu0 %v997
    %v3629 = vpop.f32.mrb[0].mxu0
    %v3630 = vadd.f32 0.0, %v3629
    %v3631 = vpop.f32.mrb[0].mxu0
    %3632 = vdwg.mxu0
    %v3633 = vadd.f32 %v3550, %v3625
    %v3634 = vadd.f32 %v3555, %v3630
    %v3635 = vld [vmem:[#allocation7 + $0x5] sm:$0x1]
    %v3636 = vlaneseq
    %v3637 = vshrl.u32 %v3636, 7
    %v3638 = vsub.s32 0, %v3637
    %v3639 = vrot.slane %v3635, %v3638
    %v3640 = vmul.f32 %v3633, %v3639
    %v3641 = vmul.f32 %v3634, %v3639
    %v3642 = vld [vmem:[#allocation7 + $0xb] sm:$0x1]
    %v3643 = vlaneseq
    %v3644 = vshrl.u32 %v3643, 7
    %v3645 = vsub.s32 0, %v3644
    %v3646 = vrot.slane %v3642, %v3645
    %v3647 = vadd.f32 %v3640, %v3646
    %v3648 = vadd.f32 %v3641, %v3646
    %v3649 = vmax.f32 %v3647, 0.0
    %v3650 = vmax.f32 %v3648, 0.0
    %v3651 = vld [vmem:[#allocation28] sm:$0xff]
    %v3652 = vld [vmem:[#allocation28 + $0x8] sm:$0xff]
    %v3653 = vld [vmem:[#allocation28 + $0x10] sm:$0xff]
    %v3654 = vld [vmem:[#allocation28 + $0x18] sm:$0xff]
    %v3656 = vsel %vm325, %v3651, 0
    %v3659 = vsel %vm325, %v3652, 0
    %v3662 = vsel %vm325, %v3653, 0
    %v3665 = vsel %vm325, %v3654, 0
    %3667 = vmatprep.subr.mxu0 0.0
    %3668 = vmatpush1.msra.mxu0 %v3649
    %3669 = vmatprep.subr.mxu0 0.0
    %3670 = vmatpush1.msra.mxu0 %v3650
    %3671 = vmatprep.subr.mxu0 0.0
    %3672 = vmatpush1.msra.mxu0 0.0
    %3673 = vmatprep.subr.mxu0 0.0
    %3674 = vmatpush1.msra.mxu0 0.0
    %3675 = vmatprep.subr.mxu0 0.0
    %3676 = vmatpush1.msra.mxu0 0.0
    %3677 = vmatprep.subr.mxu0 0.0
    %3678 = vmatpush1.msra.mxu0 0.0
    %3679 = vmatprep.subr.mxu0 0.0
    %3680 = vmatpush1.msra.mxu0 0.0
    %3681 = vmatprep.subr.mxu0 0.0
    %3682 = vmatpush1.msra.mxu0 0.0
    %3683 = vmatprep.subr.mxu0 0.0
    %3684 = vmatpush1.msra.mxu0 0.0
    %3685 = vmatprep.subr.mxu0 0.0
    %3686 = vmatpush1.msra.mxu0 0.0
    %3687 = vmatprep.subr.mxu0 0.0
    %3688 = vmatpush1.msra.mxu0 0.0
    %3689 = vmatprep.subr.mxu0 0.0
    %3690 = vmatpush1.msra.mxu0 0.0
    %3691 = vmatprep.subr.mxu0 0.0
    %3692 = vmatpush1.msra.mxu0 0.0
    %3693 = vmatprep.subr.mxu0 0.0
    %3694 = vmatpush1.msra.mxu0 0.0
    %3695 = vmatprep.subr.mxu0 0.0
    %3696 = vmatpush1.msra.mxu0 0.0
    %3697 = vmatprep.subr.mxu0 0.0
    %3698 = vmatpush1.msra.mxu0 0.0
    %3699 = vmatprep.subr.mxu0 0.0
    %3700 = vmatpush1.msra.mxu0 0.0
    %3701 = vmatprep.subr.mxu0 0.0
    %3702 = vmatpush1.msra.mxu0 0.0
    %3703 = vmatprep.subr.mxu0 0.0
    %3704 = vmatpush1.msra.mxu0 0.0
    %3705 = vmatprep.subr.mxu0 0.0
    %3706 = vmatpush1.msra.mxu0 0.0
    %3707 = vmatprep.subr.mxu0 0.0
    %3708 = vmatpush1.msra.mxu0 0.0
    %3709 = vmatprep.subr.mxu0 0.0
    %3710 = vmatpush1.msra.mxu0 0.0
    %3711 = vmatprep.subr.mxu0 0.0
    %3712 = vmatpush1.msra.mxu0 0.0
    %3713 = vmatprep.subr.mxu0 0.0
    %3714 = vmatpush1.msra.mxu0 0.0
    %3715 = vmatprep.subr.mxu0 0.0
    %3716 = vmatpush1.msra.mxu0 0.0
    %3717 = vmatprep.subr.mxu0 0.0
    %3718 = vmatpush1.msra.mxu0 0.0
    %3719 = vmatprep.subr.mxu0 0.0
    %3720 = vmatpush1.msra.mxu0 0.0
    %3721 = vmatprep.subr.mxu0 0.0
    %3722 = vmatpush1.msra.mxu0 0.0
    %3723 = vmatprep.subr.mxu0 0.0
    %3724 = vmatpush1.msra.mxu0 0.0
    %3725 = vmatprep.subr.mxu0 0.0
    %3726 = vmatpush1.msra.mxu0 0.0
    %3727 = vmatprep.subr.mxu0 0.0
    %3728 = vmatpush1.msra.mxu0 0.0
    %3729 = vmatprep.subr.mxu0 0.0
    %3730 = vmatpush1.msra.mxu0 0.0
    %3731 = vmatprep.mubr.f32.mxu0 0.0
    %3732 = vmatmul.mubr.f32.gmra.mrb[0].mxu0 %v3656
    %v3733 = vpop.f32.mrb[0].mxu0
    %v3734 = vadd.f32 0.0, %v3733
    %v3735 = vpop.f32.mrb[0].mxu0
    %3736 = vmatprep.mubr.f32.mxu0 0.0
    %3737 = vmatmul.mubr.f32.gmra.mrb[0].mxu0 %v3659
    %v3738 = vpop.f32.mrb[0].mxu0
    %v3739 = vadd.f32 0.0, %v3738
    %v3740 = vpop.f32.mrb[0].mxu0
    %3741 = vmatprep.mubr.f32.mxu0 0.0
    %3742 = vmatmul.mubr.f32.gmra.mrb[0].mxu0 %v3662
    %v3743 = vpop.f32.mrb[0].mxu0
    %v3744 = vadd.f32 0.0, %v3743
    %v3745 = vpop.f32.mrb[0].mxu0
    %3746 = vmatprep.mubr.f32.mxu0 0.0
    %3747 = vmatmul.mubr.f32.gmra.mrb[0].mxu0 %v3665
    %v3748 = vpop.f32.mrb[0].mxu0
    %v3749 = vadd.f32 0.0, %v3748
    %v3750 = vpop.f32.mrb[0].mxu0
    %3751 = vdwg.mxu0
    %v3752 = vld [vmem:[%s18] sm:$0xff]
    %v3753 = vld [vmem:[%s18 + $0x8] sm:$0xff]
    %v3754 = vld [vmem:[%s18 + $0x10] sm:$0xff]
    %v3755 = vld [vmem:[%s18 + $0x18] sm:$0xff]
    %v3756 = vld [vmem:[%s18 + $0x20] sm:$0xff]
    %v3757 = vld [vmem:[%s18 + $0x28] sm:$0xff]
    %v3758 = vld [vmem:[%s18 + $0x30] sm:$0xff]
    %v3759 = vld [vmem:[%s18 + $0x38] sm:$0xff]
    %v3761 = vsel %vm1100, %v3734, 0
    %v3764 = vsel %vm1100, %v3739, 0
    %v3767 = vsel %vm1100, %v3744, 0
    %v3770 = vsel %vm1100, %v3749, 0
    %3772 = vmatprep.subr.mxu0 0.0
    %3773 = vmatpush1.msra.mxu0 %v3752
    %3774 = vmatprep.subr.mxu0 0.0
    %3775 = vmatpush1.msra.mxu0 %v3753
    %3776 = vmatprep.subr.mxu0 0.0
    %3777 = vmatpush1.msra.mxu0 %v3754
    %3778 = vmatprep.subr.mxu0 0.0
    %3779 = vmatpush1.msra.mxu0 %v3755
    %3780 = vmatprep.subr.mxu0 0.0
    %3781 = vmatpush1.msra.mxu0 %v3756
    %3782 = vmatprep.subr.mxu0 0.0
    %3783 = vmatpush1.msra.mxu0 %v3757
    %3784 = vmatprep.subr.mxu0 0.0
    %3785 = vmatpush1.msra.mxu0 %v3758
    %3786 = vmatprep.subr.mxu0 0.0
    %3787 = vmatpush1.msra.mxu0 %v3759
    %3788 = vmatprep.subr.mxu0 0.0
    %3789 = vmatpush1.msra.mxu0 0.0
    %3790 = vmatprep.subr.mxu0 0.0
    %3791 = vmatpush1.msra.mxu0 0.0
    %3792 = vmatprep.subr.mxu0 0.0
    %3793 = vmatpush1.msra.mxu0 0.0
    %3794 = vmatprep.subr.mxu0 0.0
    %3795 = vmatpush1.msra.mxu0 0.0
    %3796 = vmatprep.subr.mxu0 0.0
    %3797 = vmatpush1.msra.mxu0 0.0
    %3798 = vmatprep.subr.mxu0 0.0
    %3799 = vmatpush1.msra.mxu0 0.0
    %3800 = vmatprep.subr.mxu0 0.0
    %3801 = vmatpush1.msra.mxu0 0.0
    %3802 = vmatprep.subr.mxu0 0.0
    %3803 = vmatpush1.msra.mxu0 0.0
    %3804 = vmatprep.subr.mxu0 0.0
    %3805 = vmatpush1.msra.mxu0 0.0
    %3806 = vmatprep.subr.mxu0 0.0
    %3807 = vmatpush1.msra.mxu0 0.0
    %3808 = vmatprep.subr.mxu0 0.0
    %3809 = vmatpush1.msra.mxu0 0.0
    %3810 = vmatprep.subr.mxu0 0.0
    %3811 = vmatpush1.msra.mxu0 0.0
    %3812 = vmatprep.subr.mxu0 0.0
    %3813 = vmatpush1.msra.mxu0 0.0
    %3814 = vmatprep.subr.mxu0 0.0
    %3815 = vmatpush1.msra.mxu0 0.0
    %3816 = vmatprep.subr.mxu0 0.0
    %3817 = vmatpush1.msra.mxu0 0.0
    %3818 = vmatprep.subr.mxu0 0.0
    %3819 = vmatpush1.msra.mxu0 0.0
    %3820 = vmatprep.subr.mxu0 0.0
    %3821 = vmatpush1.msra.mxu0 0.0
    %3822 = vmatprep.subr.mxu0 0.0
    %3823 = vmatpush1.msra.mxu0 0.0
    %3824 = vmatprep.subr.mxu0 0.0
    %3825 = vmatpush1.msra.mxu0 0.0
    %3826 = vmatprep.subr.mxu0 0.0
    %3827 = vmatpush1.msra.mxu0 0.0
    %3828 = vmatprep.subr.mxu0 0.0
    %3829 = vmatpush1.msra.mxu0 0.0
    %3830 = vmatprep.subr.mxu0 0.0
    %3831 = vmatpush1.msra.mxu0 0.0
    %3832 = vmatprep.subr.mxu0 0.0
    %3833 = vmatpush1.msra.mxu0 0.0
    %3834 = vmatprep.subr.mxu0 0.0
    %3835 = vmatpush1.msra.mxu0 0.0
    %3836 = vmatprep.mubr.f32.mxu0 0.0
    %3837 = vmatmul.mubr.f32.gmra.mrb[0].mxu0 %v3761
    %v3838 = vpop.f32.mrb[0].mxu0
    %v3839 = vadd.f32 0.0, %v3838
    %v3840 = vpop.f32.mrb[0].mxu0
    %3841 = vmatprep.mubr.f32.mxu0 0.0
    %3842 = vmatmul.mubr.f32.gmra.mrb[0].mxu0 %v3764
    %v3843 = vpop.f32.mrb[0].mxu0
    %v3844 = vadd.f32 0.0, %v3843
    %v3845 = vpop.f32.mrb[0].mxu0
    %3846 = vmatprep.mubr.f32.mxu0 0.0
    %3847 = vmatmul.mubr.f32.gmra.mrb[0].mxu0 %v3767
    %v3848 = vpop.f32.mrb[0].mxu0
    %v3849 = vadd.f32 0.0, %v3848
    %v3850 = vpop.f32.mrb[0].mxu0
    %3851 = vmatprep.mubr.f32.mxu0 0.0
    %3852 = vmatmul.mubr.f32.gmra.mrb[0].mxu0 %v3770
    %v3853 = vpop.f32.mrb[0].mxu0
    %v3854 = vadd.f32 0.0, %v3853
    %v3855 = vpop.f32.mrb[0].mxu0
    %3856 = vdwg.mxu0
    %v3857 = vld [vmem:[#allocation29] sm:$0xff]
    %v3858 = vld [vmem:[#allocation29 + $0x8] sm:$0xff]
    %v3859 = vld [vmem:[#allocation29 + $0x10] sm:$0xff]
    %v3860 = vld [vmem:[#allocation29 + $0x18] sm:$0xff]
    %v3861 = vld [vmem:[#allocation29 + $0x20] sm:$0xff]
    %v3862 = vld [vmem:[#allocation29 + $0x28] sm:$0xff]
    %v3863 = vld [vmem:[#allocation29 + $0x30] sm:$0xff]
    %v3864 = vld [vmem:[#allocation29 + $0x38] sm:$0xff]
    %v3865 = vld [vmem:[#allocation29 + $0x40] sm:$0xff]
    %v3866 = vld [vmem:[#allocation29 + $0x48] sm:$0xff]
    %v3867 = vld [vmem:[#allocation29 + $0x50] sm:$0xff]
    %v3868 = vld [vmem:[#allocation29 + $0x58] sm:$0xff]
    %v3869 = vld [vmem:[#allocation29 + $0x60] sm:$0xff]
    %v3870 = vld [vmem:[#allocation29 + $0x68] sm:$0xff]
    %v3871 = vld [vmem:[#allocation29 + $0x70] sm:$0xff]
    %v3872 = vld [vmem:[#allocation29 + $0x78] sm:$0xff]
    %v3873 = vld [vmem:[%s20] sm:$0x1]
    %v3875 = vlaneseq
    %v3876 = vshrl.u32 %v3875, 7
    %v3877 = vsub.s32 0, %v3876
    %v3878 = vrot.slane %v3873, %v3877
    %3880 = vmatprep.subr.mxu0 0.0
    %3881 = vmatpush1.msra.mxu0 %v3857
    %3882 = vmatprep.subr.mxu0 0.0
    %3883 = vmatpush1.msra.mxu0 %v3858
    %3884 = vmatprep.subr.mxu0 0.0
    %3885 = vmatpush1.msra.mxu0 %v3859
    %3886 = vmatprep.subr.mxu0 0.0
    %3887 = vmatpush1.msra.mxu0 %v3860
    %3888 = vmatprep.subr.mxu0 0.0
    %3889 = vmatpush1.msra.mxu0 %v3861
    %3890 = vmatprep.subr.mxu0 0.0
    %3891 = vmatpush1.msra.mxu0 %v3862
    %3892 = vmatprep.subr.mxu0 0.0
    %3893 = vmatpush1.msra.mxu0 %v3863
    %3894 = vmatprep.subr.mxu0 0.0
    %3895 = vmatpush1.msra.mxu0 %v3864
    %3896 = vmatprep.subr.mxu0 0.0
    %3897 = vmatpush1.msra.mxu0 %v3865
    %3898 = vmatprep.subr.mxu0 0.0
    %3899 = vmatpush1.msra.mxu0 %v3866
    %3900 = vmatprep.subr.mxu0 0.0
    %3901 = vmatpush1.msra.mxu0 %v3867
    %3902 = vmatprep.subr.mxu0 0.0
    %3903 = vmatpush1.msra.mxu0 %v3868
    %3904 = vmatprep.subr.mxu0 0.0
    %3905 = vmatpush1.msra.mxu0 %v3869
    %3906 = vmatprep.subr.mxu0 0.0
    %3907 = vmatpush1.msra.mxu0 %v3870
    %3908 = vmatprep.subr.mxu0 0.0
    %3909 = vmatpush1.msra.mxu0 %v3871
    %3910 = vmatprep.subr.mxu0 0.0
    %3911 = vmatpush1.msra.mxu0 %v3872
    %3912 = vmatprep.subr.mxu0 0.0
    %3913 = vmatpush1.msra.mxu0 0.0
    %3914 = vmatprep.subr.mxu0 0.0
    %3915 = vmatpush1.msra.mxu0 0.0
    %3916 = vmatprep.subr.mxu0 0.0
    %3917 = vmatpush1.msra.mxu0 0.0
    %3918 = vmatprep.subr.mxu0 0.0
    %3919 = vmatpush1.msra.mxu0 0.0
    %3920 = vmatprep.subr.mxu0 0.0
    %3921 = vmatpush1.msra.mxu0 0.0
    %3922 = vmatprep.subr.mxu0 0.0
    %3923 = vmatpush1.msra.mxu0 0.0
    %3924 = vmatprep.subr.mxu0 0.0
    %3925 = vmatpush1.msra.mxu0 0.0
    %3926 = vmatprep.subr.mxu0 0.0
    %3927 = vmatpush1.msra.mxu0 0.0
    %3928 = vmatprep.subr.mxu0 0.0
    %3929 = vmatpush1.msra.mxu0 0.0
    %3930 = vmatprep.subr.mxu0 0.0
    %3931 = vmatpush1.msra.mxu0 0.0
    %3932 = vmatprep.subr.mxu0 0.0
    %3933 = vmatpush1.msra.mxu0 0.0
    %3934 = vmatprep.subr.mxu0 0.0
    %3935 = vmatpush1.msra.mxu0 0.0
    %3936 = vmatprep.subr.mxu0 0.0
    %3937 = vmatpush1.msra.mxu0 0.0
    %3938 = vmatprep.subr.mxu0 0.0
    %3939 = vmatpush1.msra.mxu0 0.0
    %3940 = vmatprep.subr.mxu0 0.0
    %3941 = vmatpush1.msra.mxu0 0.0
    %3942 = vmatprep.subr.mxu0 0.0
    %3943 = vmatpush1.msra.mxu0 0.0
    %3944 = vmatprep.mubr.f32.mxu0 0.0
    %3945 = vmatmul.mubr.f32.gmra.mrb[0].mxu0 %v3839
    %v3946 = vpop.f32.mrb[0].mxu0
    %v3947 = vadd.f32 %v3878, %v3946
    %v3948 = vpop.f32.mrb[0].mxu0
    %3949 = vmatprep.mubr.f32.mxu0 0.0
    %3950 = vmatmul.mubr.f32.gmra.mrb[0].mxu0 %v3844
    %v3951 = vpop.f32.mrb[0].mxu0
    %v3952 = vadd.f32 %v3878, %v3951
    %v3953 = vpop.f32.mrb[0].mxu0
    %3954 = vmatprep.mubr.f32.mxu0 0.0
    %3955 = vmatmul.mubr.f32.gmra.mrb[0].mxu0 %v3849
    %v3956 = vpop.f32.mrb[0].mxu0
    %v3957 = vadd.f32 %v3878, %v3956
    %v3958 = vpop.f32.mrb[0].mxu0
    %3959 = vmatprep.mubr.f32.mxu0 0.0
    %3960 = vmatmul.mubr.f32.gmra.mrb[0].mxu0 %v3854
    %v3961 = vpop.f32.mrb[0].mxu0
    %v3962 = vadd.f32 %v3878, %v3961
    %v3963 = vpop.f32.mrb[0].mxu0
    %3964 = vdwg.mxu0
    %v3965 = vxor.u32 %v3947, 2147483648
    %v3966 = vxor.u32 %v3952, 2147483648
    %v3967 = vxor.u32 %v3957, 2147483648
    %v3968 = vxor.u32 %v3962, 2147483648
    %v3969 = vmul.f32 %v3965, 1.442695
    %v3970 = vpow.pop %v3969
    %v3971 = vmul.f32 %v3966, 1.442695
    %v3972 = vpow.pop %v3971
    %v3973 = vmul.f32 %v3967, 1.442695
    %v3974 = vpow.pop %v3973
    %v3975 = vmul.f32 %v3968, 1.442695
    %v3976 = vpow.pop %v3975
    %v3977 = vadd.f32 %v3970, 1.0
    %v3978 = vadd.f32 %v3972, 1.0
    %v3979 = vadd.f32 %v3974, 1.0
    %v3980 = vadd.f32 %v3976, 1.0
    %v3981 = vrcp.pop %v3977
    %v3982 = vmul.f32 1.0, %v3981
    %v3983 = vrcp.pop %v3978
    %v3984 = vmul.f32 1.0, %v3983
    %v3985 = vrcp.pop %v3979
    %v3986 = vmul.f32 1.0, %v3985
    %v3987 = vrcp.pop %v3980
    %v3988 = vmul.f32 1.0, %v3987
    %v3989 = vmul.f32 %v3982, 256.0
    %v3990 = vmul.f32 %v3984, 256.0
    %v3991 = vmul.f32 %v3986, 256.0
    %v3992 = vmul.f32 %v3988, 256.0
    %3993 = vst.msk [vmem:[#allocation31] sm:$0xff] %vm325, %v3989
    %3994 = vst.msk [vmem:[#allocation31 + $0x8] sm:$0xff] %vm325, %v3990
    %3995 = vst.msk [vmem:[#allocation31 + $0x10] sm:$0xff] %vm325, %v3991
    %3996 = vst.msk [vmem:[#allocation31 + $0x18] sm:$0xff] %vm325, %v3992
    // Predicated region
    $region158: #{forward.1} parent=1 // pred_check
      _
    $region159: #{forward.1} parent=1 // pred_check_branch
      %3998 = sbr.rel (0) target = $region161
    $region160: #{forward.1} parent=1 // pred_region
      %s4000 = ssub.s32 512, 512
      %4001 = vsyncadd [#allocation4], %s4000
      %s4002 = sshll.u32 [#allocation31], 4
      %s4003 = int_to_ptr.vmem [resolvable:$true] %s4002
      %4008 = dma.vmem_to_hbm [thread:$0]  %s4003, 512, %s21, [#allocation4], 128, 128, 8
    $region161: #{forward.1} parent=1 // pred_fallthru
      _
    // Predicated region
    $region162: #{forward.1} parent=1 // pred_check
      _
    $region163: #{forward.1} parent=1 // pred_check_branch
      %4010 = sbr.rel (0) target = $region165
    $region164: #{forward.1} parent=1 // pred_region
      %4011 = dma.done [#allocation4], 512
    $region165: #{forward.1} parent=1 // pred_fallthru
      _
    %4012 = vsyncpa [#allocation3], 1
    %4013 = vsyncpa [#allocation6], 1
    %4014 = vsyncpa [#allocation9], 1
    %4015 = vsyncpa [#allocation12], 1
    %4016 = vsyncpa [#allocation15], 1
    %4017 = vsyncpa [#allocation18], 1
    %4018 = vsyncpa [#allocation21], 1
    %4019 = vsyncpa [#allocation24], 1
    %4020 = vsyncpa [#allocation27], 1
    %4021 = vsyncpa [#allocation30], 1
    %4022 = vsyncpa [#allocation4], 1

</llo_original>
